<compile_context>
chip_gen: v7x
topology: tpu7x:2x2x1
jax: 0.10.0
libtpu: 0.0.40
codegen_flags: <defaults>
</compile_context>

<pallas_src>
import numpy as np
import jax
import jax.numpy as jnp
from jax.experimental import pallas as pl
from jax.experimental.pallas import tpu as pltpu

KH = KW = 5
H = W = 28                     # input spatial size implied by fc1 in_features=288
OH = OW = H - KH + 1           # 24
POOL = 4
PH = PW = OH // POOL           # 6
C_OUT = 8
FC_IN = C_OUT * PH * PW        # 288
FC_OUT = 10
KROW = KH * W                  # 140  : flattened 5-input-row window length
NCONV = C_OUT * OW             # 192  : conv outputs per output row, col index = c*24 + ow

# constant shift matrices E[kw, iw, ow] = 1 iff iw == ow + kw  (banded conv structure)
_E = np.stack([np.eye(W, OW, k=-kw, dtype=np.float32) for kw in range(KW)])   # (5, 28, 24)
_PH_OF_OH = np.arange(OH) // POOL                                             # (24,)
_PW_OF_OW = np.arange(OW) // POOL                                             # (24,)


def _round_up(a, b):
    return (a + b - 1) // b * b


def _cdiv(a, b):
    return (a + b - 1) // b


def fused_kernel(x_ref, w1_ref, q_ref, b_ref, out_ref):
    # x_ref : (bt, 784)      bf16   raw images, row-major flattened 28x28
    # w1_ref: (140, 192)     bf16   conv as row-window matmul weight
    # q_ref : (24, 192, 10)  bf16   fused pool+flatten+fc weight, per output row
    # b_ref : (1, 10)        f32    fc bias
    # out   : (bt, 10)       f32    logits
    bt = x_ref.shape[0]
    w1 = w1_ref[...]
    acc = jnp.zeros((bt, FC_OUT), jnp.float32)
    for oh in range(OH):                                   # 24 unrolled, well-shaped matmuls
        win = x_ref[:, oh * W: oh * W + KROW]              # (bt, 140) static lane slice (VMEM)
        fm = jnp.dot(win, w1, preferred_element_type=jnp.float32)   # conv row -> (bt, 192)
        fm = jnp.maximum(fm, 0.0).astype(jnp.bfloat16)     # ReLU (fused), bf16 for 2nd matmul
        # AvgPool(4) + channel-major flatten + fc1 folded into Q[oh]; channel is contracted.
        acc = acc + jnp.dot(fm, q_ref[oh], preferred_element_type=jnp.float32)  # (bt, 10)
    out_ref[...] = acc + b_ref[...]


def _build_w1(w_conv):
    # W1[kh*28 + iw, c*24 + ow] = w_conv[c, 0, kh, iw - ow] if 0 <= iw-ow < 5 else 0
    w3 = w_conv.reshape(C_OUT, KH, KW)                     # (c, kh, kw)
    blk = jnp.einsum("ckq,qio->kico", w3, jnp.asarray(_E)) # (kh, iw, c, ow)
    return blk.reshape(KROW, NCONV)                        # (140, 192)


def _build_q(w_fc):
    # Q[oh, c*24 + ow, o] = w_fc[o, c*36 + (oh//4)*6 + (ow//4)] / 16
    w_r = w_fc.reshape(FC_OUT, C_OUT, PH, PW)              # (o, c, ph, pw)
    q = w_r[:, :, _PH_OF_OH, :]                            # (o, c, oh, pw)
    q = q[:, :, :, _PW_OF_OW]                              # (o, c, oh, ow)
    q = jnp.transpose(q, (2, 1, 3, 0))                     # (oh, c, ow, o)
    return q.reshape(OH, NCONV, FC_OUT) / float(POOL * POOL)


def my_conv_net_forward(x, w_conv, w_fc, b_fc, *, max_block=256):
    n = x.shape[0]
    x_flat = x.reshape(n, H * W).astype(jnp.bfloat16)      # raw images = only streamed input
    w1 = _build_w1(w_conv).astype(jnp.bfloat16)            # (140, 192), VMEM-resident
    q = _build_q(w_fc).astype(jnp.bfloat16)                # (24, 192, 10), VMEM-resident
    bias = b_fc.reshape(1, FC_OUT).astype(jnp.float32)

    # Batch tiling: pad to a multiple of 8 only, pick nblocks so padding stays tiny and the
    # grid has >= 2 blocks when possible (so v7x's two TensorCores both get work).
    n8 = _round_up(n, 8)
    nb = _cdiv(n8, max_block)
    if n8 >= 16:
        nb = max(nb, 2)
    bt = _round_up(_cdiv(n8, nb), 8)
    nb = _cdiv(n8, bt)
    n_pad = nb * bt
    if n_pad != n:
        x_flat = jnp.pad(x_flat, ((0, n_pad - n), (0, 0)))

    out = pl.pallas_call(
        fused_kernel,
        out_shape=jax.ShapeDtypeStruct((n_pad, FC_OUT), jnp.float32),
        grid=(nb,),
        in_specs=[
            pl.BlockSpec((bt, H * W), lambda i: (i, 0)),        # raw images (streamed)
            pl.BlockSpec((KROW, NCONV), lambda i: (0, 0)),      # conv row-window weight
            pl.BlockSpec((OH, NCONV, FC_OUT), lambda i: (0, 0, 0)),  # fused pool+fc weight
            pl.BlockSpec((1, FC_OUT), lambda i: (0, 0)),        # fc bias
        ],
        out_specs=pl.BlockSpec((bt, FC_OUT), lambda i: (i, 0)),
        compiler_params=pltpu.CompilerParams(
            dimension_semantics=("parallel",),                  # shard batch blocks over TCs
            vmem_limit_bytes=32 * 1024 * 1024,                  # ample; footprint is a few MB
        ),
    )(x_flat, w1, q, bias)
    return out[:n]


def reference_forward(x, w_conv, w_fc, b_fc):
    # pure-JAX f32 reference with identical semantics to the PyTorch module
    n = x.shape[0]
    fm = jax.lax.conv_general_dilated(
        x, w_conv, window_strides=(1, 1), padding="VALID",
        dimension_numbers=("NCHW", "OIHW", "NCHW"))
    fm = jnp.maximum(fm, 0.0)
    pooled = fm.reshape(n, C_OUT, PH, POOL, PW, POOL).mean(axis=(3, 5))
    flat = pooled.reshape(n, FC_IN)
    return flat @ jnp.transpose(w_fc) + b_fc


if __name__ == "__main__":
    key = jax.random.PRNGKey(0)
    k1, k2, k3, k4 = jax.random.split(key, 4)
    # deterministic synthetic parameters (shapes from MyConvNet.__init__)
    w_conv = jax.random.normal(k1, (C_OUT, 1, KH, KW), jnp.float32) * 0.1
    w_fc = jax.random.normal(k2, (FC_OUT, FC_IN), jnp.float32) * 0.05
    b_fc = jax.random.normal(k3, (FC_OUT,), jnp.float32) * 0.05
    x = jax.random.normal(k4, (2, 1, H, W), jnp.float32)        # batch=2, NCHW

    fwd = jax.jit(my_conv_net_forward)
    out = jax.block_until_ready(fwd(x, w_conv, w_fc, b_fc))
    ref = jax.block_until_ready(reference_forward(x, w_conv, w_fc, b_fc))

    assert out.shape == (2, FC_OUT)
    # bf16 operand streams with f32 accumulation -> loosened tolerance (review-noted)
    np.testing.assert_allclose(np.asarray(out), np.asarray(ref), atol=2e-2, rtol=2e-2)
    print("KERNEL_OK")
</pallas_src>

<mosaic_0001>
module attributes {stable_mosaic.version = 11 : i64} {
  func.func @fused_kernel(%arg0: i32, %arg1: memref<8x784xbf16, #tpu.memory_space<vmem>>, %arg2: memref<140x192xbf16, #tpu.memory_space<vmem>>, %arg3: memref<24x192x10xbf16, #tpu.memory_space<vmem>>, %arg4: memref<1x10xf32, #tpu.memory_space<vmem>>, %arg5: memref<8x10xf32, #tpu.memory_space<vmem>>) attributes {dimension_semantics = [#tpu.dimension_semantics<parallel>], iteration_bounds = array<i64: 1>, scalar_prefetch = 0 : i64, scratch_operands = 0 : i64, tpu.core_type = #tpu.core_type<tc>, window_params = [{transform_indices = @transform_0, window_bounds = array<i64: 8, 784>}, {pipeline_mode = #tpu.pipeline_mode<synchronous>, transform_indices = @transform_1, window_bounds = array<i64: 140, 192>}, {pipeline_mode = #tpu.pipeline_mode<synchronous>, transform_indices = @transform_2, window_bounds = array<i64: 24, 192, 10>}, {pipeline_mode = #tpu.pipeline_mode<synchronous>, transform_indices = @transform_3, window_bounds = array<i64: 1, 10>}, {transform_indices = @transform_4, window_bounds = array<i64: 8, 10>}]} {
    %c0 = arith.constant 0 : index
    %c0_0 = arith.constant 0 : index
    %0 = vector.load %arg2[%c0, %c0_0] : memref<140x192xbf16, #tpu.memory_space<vmem>>, vector<140x192xbf16>
    %cst = arith.constant 0.000000e+00 : f32
    %1 = vector.broadcast %cst : f32 to vector<8x10xf32>
    %c0_1 = arith.constant 0 : index
    %c0_2 = arith.constant 0 : index
    %2 = vector.load %arg1[%c0_1, %c0_2] : memref<8x784xbf16, #tpu.memory_space<vmem>>, vector<8x140xbf16>
    %cst_3 = arith.constant dense<0.000000e+00> : vector<8x192xf32>
    %3 = tpu.matmul %2, %0, %cst_3 {dimension_numbers = #tpu.dot_dimension_numbers<[1], [0], [0], [1], [0, 0, 1, 1], [], []>} : vector<8x140xbf16>, vector<140x192xbf16>, vector<8x192xf32> -> vector<8x192xf32>
    %cst_4 = arith.constant 0.000000e+00 : f32
    %4 = vector.broadcast %cst_4 : f32 to vector<8x192xf32>
    %5 = arith.maximumf %3, %4 : vector<8x192xf32>
    %6 = arith.truncf %5 : vector<8x192xf32> to vector<8x192xbf16>
    %c0_5 = arith.constant 0 : index
    %c0_6 = arith.constant 0 : index
    %c0_7 = arith.constant 0 : index
    %7 = vector.load %arg3[%c0_5, %c0_6, %c0_7] : memref<24x192x10xbf16, #tpu.memory_space<vmem>>, vector<1x192x10xbf16>
    %8 = vector.shape_cast %7 : vector<1x192x10xbf16> to vector<192x10xbf16>
    %cst_8 = arith.constant dense<0.000000e+00> : vector<8x10xf32>
    %9 = tpu.matmul %6, %8, %cst_8 {dimension_numbers = #tpu.dot_dimension_numbers<[1], [0], [0], [1], [0, 0, 1, 1], [], []>} : vector<8x192xbf16>, vector<192x10xbf16>, vector<8x10xf32> -> vector<8x10xf32>
    %10 = arith.addf %1, %9 : vector<8x10xf32>
    %c0_9 = arith.constant 0 : index
    %c28 = arith.constant 28 : index
    %11 = vector.load %arg1[%c0_9, %c28] : memref<8x784xbf16, #tpu.memory_space<vmem>>, vector<8x140xbf16>
    %cst_10 = arith.constant dense<0.000000e+00> : vector<8x192xf32>
    %12 = tpu.matmul %11, %0, %cst_10 {dimension_numbers = #tpu.dot_dimension_numbers<[1], [0], [0], [1], [0, 0, 1, 1], [], []>} : vector<8x140xbf16>, vector<140x192xbf16>, vector<8x192xf32> -> vector<8x192xf32>
    %cst_11 = arith.constant 0.000000e+00 : f32
    %13 = vector.broadcast %cst_11 : f32 to vector<8x192xf32>
    %14 = arith.maximumf %12, %13 : vector<8x192xf32>
    %15 = arith.truncf %14 : vector<8x192xf32> to vector<8x192xbf16>
    %c1 = arith.constant 1 : index
    %c0_12 = arith.constant 0 : index
    %c0_13 = arith.constant 0 : index
    %16 = vector.load %arg3[%c1, %c0_12, %c0_13] : memref<24x192x10xbf16, #tpu.memory_space<vmem>>, vector<1x192x10xbf16>
    %17 = vector.shape_cast %16 : vector<1x192x10xbf16> to vector<192x10xbf16>
    %cst_14 = arith.constant dense<0.000000e+00> : vector<8x10xf32>
    %18 = tpu.matmul %15, %17, %cst_14 {dimension_numbers = #tpu.dot_dimension_numbers<[1], [0], [0], [1], [0, 0, 1, 1], [], []>} : vector<8x192xbf16>, vector<192x10xbf16>, vector<8x10xf32> -> vector<8x10xf32>
    %19 = arith.addf %10, %18 : vector<8x10xf32>
    %c0_15 = arith.constant 0 : index
    %c56 = arith.constant 56 : index
    %20 = vector.load %arg1[%c0_15, %c56] : memref<8x784xbf16, #tpu.memory_space<vmem>>, vector<8x140xbf16>
    %cst_16 = arith.constant dense<0.000000e+00> : vector<8x192xf32>
    %21 = tpu.matmul %20, %0, %cst_16 {dimension_numbers = #tpu.dot_dimension_numbers<[1], [0], [0], [1], [0, 0, 1, 1], [], []>} : vector<8x140xbf16>, vector<140x192xbf16>, vector<8x192xf32> -> vector<8x192xf32>
    %cst_17 = arith.constant 0.000000e+00 : f32
    %22 = vector.broadcast %cst_17 : f32 to vector<8x192xf32>
    %23 = arith.maximumf %21, %22 : vector<8x192xf32>
    %24 = arith.truncf %23 : vector<8x192xf32> to vector<8x192xbf16>
    %c2 = arith.constant 2 : index
    %c0_18 = arith.constant 0 : index
    %c0_19 = arith.constant 0 : index
    %25 = vector.load %arg3[%c2, %c0_18, %c0_19] : memref<24x192x10xbf16, #tpu.memory_space<vmem>>, vector<1x192x10xbf16>
    %26 = vector.shape_cast %25 : vector<1x192x10xbf16> to vector<192x10xbf16>
    %cst_20 = arith.constant dense<0.000000e+00> : vector<8x10xf32>
    %27 = tpu.matmul %24, %26, %cst_20 {dimension_numbers = #tpu.dot_dimension_numbers<[1], [0], [0], [1], [0, 0, 1, 1], [], []>} : vector<8x192xbf16>, vector<192x10xbf16>, vector<8x10xf32> -> vector<8x10xf32>
    %28 = arith.addf %19, %27 : vector<8x10xf32>
    %c0_21 = arith.constant 0 : index
    %c84 = arith.constant 84 : index
    %29 = vector.load %arg1[%c0_21, %c84] : memref<8x784xbf16, #tpu.memory_space<vmem>>, vector<8x140xbf16>
    %cst_22 = arith.constant dense<0.000000e+00> : vector<8x192xf32>
    %30 = tpu.matmul %29, %0, %cst_22 {dimension_numbers = #tpu.dot_dimension_numbers<[1], [0], [0], [1], [0, 0, 1, 1], [], []>} : vector<8x140xbf16>, vector<140x192xbf16>, vector<8x192xf32> -> vector<8x192xf32>
    %cst_23 = arith.constant 0.000000e+00 : f32
    %31 = vector.broadcast %cst_23 : f32 to vector<8x192xf32>
    %32 = arith.maximumf %30, %31 : vector<8x192xf32>
    %33 = arith.truncf %32 : vector<8x192xf32> to vector<8x192xbf16>
    %c3 = arith.constant 3 : index
    %c0_24 = arith.constant 0 : index
    %c0_25 = arith.constant 0 : index
    %34 = vector.load %arg3[%c3, %c0_24, %c0_25] : memref<24x192x10xbf16, #tpu.memory_space<vmem>>, vector<1x192x10xbf16>
    %35 = vector.shape_cast %34 : vector<1x192x10xbf16> to vector<192x10xbf16>
    %cst_26 = arith.constant dense<0.000000e+00> : vector<8x10xf32>
    %36 = tpu.matmul %33, %35, %cst_26 {dimension_numbers = #tpu.dot_dimension_numbers<[1], [0], [0], [1], [0, 0, 1, 1], [], []>} : vector<8x192xbf16>, vector<192x10xbf16>, vector<8x10xf32> -> vector<8x10xf32>
    %37 = arith.addf %28, %36 : vector<8x10xf32>
    %c0_27 = arith.constant 0 : index
    %c112 = arith.constant 112 : index
    %38 = vector.load %arg1[%c0_27, %c112] : memref<8x784xbf16, #tpu.memory_space<vmem>>, vector<8x140xbf16>
    %cst_28 = arith.constant dense<0.000000e+00> : vector<8x192xf32>
    %39 = tpu.matmul %38, %0, %cst_28 {dimension_numbers = #tpu.dot_dimension_numbers<[1], [0], [0], [1], [0, 0, 1, 1], [], []>} : vector<8x140xbf16>, vector<140x192xbf16>, vector<8x192xf32> -> vector<8x192xf32>
    %cst_29 = arith.constant 0.000000e+00 : f32
    %40 = vector.broadcast %cst_29 : f32 to vector<8x192xf32>
    %41 = arith.maximumf %39, %40 : vector<8x192xf32>
    %42 = arith.truncf %41 : vector<8x192xf32> to vector<8x192xbf16>
    %c4 = arith.constant 4 : index
    %c0_30 = arith.constant 0 : index
    %c0_31 = arith.constant 0 : index
    %43 = vector.load %arg3[%c4, %c0_30, %c0_31] : memref<24x192x10xbf16, #tpu.memory_space<vmem>>, vector<1x192x10xbf16>
    %44 = vector.shape_cast %43 : vector<1x192x10xbf16> to vector<192x10xbf16>
    %cst_32 = arith.constant dense<0.000000e+00> : vector<8x10xf32>
    %45 = tpu.matmul %42, %44, %cst_32 {dimension_numbers = #tpu.dot_dimension_numbers<[1], [0], [0], [1], [0, 0, 1, 1], [], []>} : vector<8x192xbf16>, vector<192x10xbf16>, vector<8x10xf32> -> vector<8x10xf32>
    %46 = arith.addf %37, %45 : vector<8x10xf32>
    %c0_33 = arith.constant 0 : index
    %c140 = arith.constant 140 : index
    %47 = vector.load %arg1[%c0_33, %c140] : memref<8x784xbf16, #tpu.memory_space<vmem>>, vector<8x140xbf16>
    %cst_34 = arith.constant dense<0.000000e+00> : vector<8x192xf32>
    %48 = tpu.matmul %47, %0, %cst_34 {dimension_numbers = #tpu.dot_dimension_numbers<[1], [0], [0], [1], [0, 0, 1, 1], [], []>} : vector<8x140xbf16>, vector<140x192xbf16>, vector<8x192xf32> -> vector<8x192xf32>
    %cst_35 = arith.constant 0.000000e+00 : f32
    %49 = vector.broadcast %cst_35 : f32 to vector<8x192xf32>
    %50 = arith.maximumf %48, %49 : vector<8x192xf32>
    %51 = arith.truncf %50 : vector<8x192xf32> to vector<8x192xbf16>
    %c5 = arith.constant 5 : index
    %c0_36 = arith.constant 0 : index
    %c0_37 = arith.constant 0 : index
    %52 = vector.load %arg3[%c5, %c0_36, %c0_37] : memref<24x192x10xbf16, #tpu.memory_space<vmem>>, vector<1x192x10xbf16>
    %53 = vector.shape_cast %52 : vector<1x192x10xbf16> to vector<192x10xbf16>
    %cst_38 = arith.constant dense<0.000000e+00> : vector<8x10xf32>
    %54 = tpu.matmul %51, %53, %cst_38 {dimension_numbers = #tpu.dot_dimension_numbers<[1], [0], [0], [1], [0, 0, 1, 1], [], []>} : vector<8x192xbf16>, vector<192x10xbf16>, vector<8x10xf32> -> vector<8x10xf32>
    %55 = arith.addf %46, %54 : vector<8x10xf32>
    %c0_39 = arith.constant 0 : index
    %c168 = arith.constant 168 : index
    %56 = vector.load %arg1[%c0_39, %c168] : memref<8x784xbf16, #tpu.memory_space<vmem>>, vector<8x140xbf16>
    %cst_40 = arith.constant dense<0.000000e+00> : vector<8x192xf32>
    %57 = tpu.matmul %56, %0, %cst_40 {dimension_numbers = #tpu.dot_dimension_numbers<[1], [0], [0], [1], [0, 0, 1, 1], [], []>} : vector<8x140xbf16>, vector<140x192xbf16>, vector<8x192xf32> -> vector<8x192xf32>
    %cst_41 = arith.constant 0.000000e+00 : f32
    %58 = vector.broadcast %cst_41 : f32 to vector<8x192xf32>
    %59 = arith.maximumf %57, %58 : vector<8x192xf32>
    %60 = arith.truncf %59 : vector<8x192xf32> to vector<8x192xbf16>
    %c6 = arith.constant 6 : index
    %c0_42 = arith.constant 0 : index
    %c0_43 = arith.constant 0 : index
    %61 = vector.load %arg3[%c6, %c0_42, %c0_43] : memref<24x192x10xbf16, #tpu.memory_space<vmem>>, vector<1x192x10xbf16>
    %62 = vector.shape_cast %61 : vector<1x192x10xbf16> to vector<192x10xbf16>
    %cst_44 = arith.constant dense<0.000000e+00> : vector<8x10xf32>
    %63 = tpu.matmul %60, %62, %cst_44 {dimension_numbers = #tpu.dot_dimension_numbers<[1], [0], [0], [1], [0, 0, 1, 1], [], []>} : vector<8x192xbf16>, vector<192x10xbf16>, vector<8x10xf32> -> vector<8x10xf32>
    %64 = arith.addf %55, %63 : vector<8x10xf32>
    %c0_45 = arith.constant 0 : index
    %c196 = arith.constant 196 : index
    %65 = vector.load %arg1[%c0_45, %c196] : memref<8x784xbf16, #tpu.memory_space<vmem>>, vector<8x140xbf16>
    %cst_46 = arith.constant dense<0.000000e+00> : vector<8x192xf32>
    %66 = tpu.matmul %65, %0, %cst_46 {dimension_numbers = #tpu.dot_dimension_numbers<[1], [0], [0], [1], [0, 0, 1, 1], [], []>} : vector<8x140xbf16>, vector<140x192xbf16>, vector<8x192xf32> -> vector<8x192xf32>
    %cst_47 = arith.constant 0.000000e+00 : f32
    %67 = vector.broadcast %cst_47 : f32 to vector<8x192xf32>
    %68 = arith.maximumf %66, %67 : vector<8x192xf32>
    %69 = arith.truncf %68 : vector<8x192xf32> to vector<8x192xbf16>
    %c7 = arith.constant 7 : index
    %c0_48 = arith.constant 0 : index
    %c0_49 = arith.constant 0 : index
    %70 = vector.load %arg3[%c7, %c0_48, %c0_49] : memref<24x192x10xbf16, #tpu.memory_space<vmem>>, vector<1x192x10xbf16>
    %71 = vector.shape_cast %70 : vector<1x192x10xbf16> to vector<192x10xbf16>
    %cst_50 = arith.constant dense<0.000000e+00> : vector<8x10xf32>
    %72 = tpu.matmul %69, %71, %cst_50 {dimension_numbers = #tpu.dot_dimension_numbers<[1], [0], [0], [1], [0, 0, 1, 1], [], []>} : vector<8x192xbf16>, vector<192x10xbf16>, vector<8x10xf32> -> vector<8x10xf32>
    %73 = arith.addf %64, %72 : vector<8x10xf32>
    %c0_51 = arith.constant 0 : index
    %c224 = arith.constant 224 : index
    %74 = vector.load %arg1[%c0_51, %c224] : memref<8x784xbf16, #tpu.memory_space<vmem>>, vector<8x140xbf16>
    %cst_52 = arith.constant dense<0.000000e+00> : vector<8x192xf32>
    %75 = tpu.matmul %74, %0, %cst_52 {dimension_numbers = #tpu.dot_dimension_numbers<[1], [0], [0], [1], [0, 0, 1, 1], [], []>} : vector<8x140xbf16>, vector<140x192xbf16>, vector<8x192xf32> -> vector<8x192xf32>
    %cst_53 = arith.constant 0.000000e+00 : f32
    %76 = vector.broadcast %cst_53 : f32 to vector<8x192xf32>
    %77 = arith.maximumf %75, %76 : vector<8x192xf32>
    %78 = arith.truncf %77 : vector<8x192xf32> to vector<8x192xbf16>
    %c8 = arith.constant 8 : index
    %c0_54 = arith.constant 0 : index
    %c0_55 = arith.constant 0 : index
    %79 = vector.load %arg3[%c8, %c0_54, %c0_55] : memref<24x192x10xbf16, #tpu.memory_space<vmem>>, vector<1x192x10xbf16>
    %80 = vector.shape_cast %79 : vector<1x192x10xbf16> to vector<192x10xbf16>
    %cst_56 = arith.constant dense<0.000000e+00> : vector<8x10xf32>
    %81 = tpu.matmul %78, %80, %cst_56 {dimension_numbers = #tpu.dot_dimension_numbers<[1], [0], [0], [1], [0, 0, 1, 1], [], []>} : vector<8x192xbf16>, vector<192x10xbf16>, vector<8x10xf32> -> vector<8x10xf32>
    %82 = arith.addf %73, %81 : vector<8x10xf32>
    %c0_57 = arith.constant 0 : index
    %c252 = arith.constant 252 : index
    %83 = vector.load %arg1[%c0_57, %c252] : memref<8x784xbf16, #tpu.memory_space<vmem>>, vector<8x140xbf16>
    %cst_58 = arith.constant dense<0.000000e+00> : vector<8x192xf32>
    %84 = tpu.matmul %83, %0, %cst_58 {dimension_numbers = #tpu.dot_dimension_numbers<[1], [0], [0], [1], [0, 0, 1, 1], [], []>} : vector<8x140xbf16>, vector<140x192xbf16>, vector<8x192xf32> -> vector<8x192xf32>
    %cst_59 = arith.constant 0.000000e+00 : f32
    %85 = vector.broadcast %cst_59 : f32 to vector<8x192xf32>
    %86 = arith.maximumf %84, %85 : vector<8x192xf32>
    %87 = arith.truncf %86 : vector<8x192xf32> to vector<8x192xbf16>
    %c9 = arith.constant 9 : index
    %c0_60 = arith.constant 0 : index
    %c0_61 = arith.constant 0 : index
    %88 = vector.load %arg3[%c9, %c0_60, %c0_61] : memref<24x192x10xbf16, #tpu.memory_space<vmem>>, vector<1x192x10xbf16>
    %89 = vector.shape_cast %88 : vector<1x192x10xbf16> to vector<192x10xbf16>
    %cst_62 = arith.constant dense<0.000000e+00> : vector<8x10xf32>
    %90 = tpu.matmul %87, %89, %cst_62 {dimension_numbers = #tpu.dot_dimension_numbers<[1], [0], [0], [1], [0, 0, 1, 1], [], []>} : vector<8x192xbf16>, vector<192x10xbf16>, vector<8x10xf32> -> vector<8x10xf32>
    %91 = arith.addf %82, %90 : vector<8x10xf32>
    %c0_63 = arith.constant 0 : index
    %c280 = arith.constant 280 : index
    %92 = vector.load %arg1[%c0_63, %c280] : memref<8x784xbf16, #tpu.memory_space<vmem>>, vector<8x140xbf16>
    %cst_64 = arith.constant dense<0.000000e+00> : vector<8x192xf32>
    %93 = tpu.matmul %92, %0, %cst_64 {dimension_numbers = #tpu.dot_dimension_numbers<[1], [0], [0], [1], [0, 0, 1, 1], [], []>} : vector<8x140xbf16>, vector<140x192xbf16>, vector<8x192xf32> -> vector<8x192xf32>
    %cst_65 = arith.constant 0.000000e+00 : f32
    %94 = vector.broadcast %cst_65 : f32 to vector<8x192xf32>
    %95 = arith.maximumf %93, %94 : vector<8x192xf32>
    %96 = arith.truncf %95 : vector<8x192xf32> to vector<8x192xbf16>
    %c10 = arith.constant 10 : index
    %c0_66 = arith.constant 0 : index
    %c0_67 = arith.constant 0 : index
    %97 = vector.load %arg3[%c10, %c0_66, %c0_67] : memref<24x192x10xbf16, #tpu.memory_space<vmem>>, vector<1x192x10xbf16>
    %98 = vector.shape_cast %97 : vector<1x192x10xbf16> to vector<192x10xbf16>
    %cst_68 = arith.constant dense<0.000000e+00> : vector<8x10xf32>
    %99 = tpu.matmul %96, %98, %cst_68 {dimension_numbers = #tpu.dot_dimension_numbers<[1], [0], [0], [1], [0, 0, 1, 1], [], []>} : vector<8x192xbf16>, vector<192x10xbf16>, vector<8x10xf32> -> vector<8x10xf32>
    %100 = arith.addf %91, %99 : vector<8x10xf32>
    %c0_69 = arith.constant 0 : index
    %c308 = arith.constant 308 : index
    %101 = vector.load %arg1[%c0_69, %c308] : memref<8x784xbf16, #tpu.memory_space<vmem>>, vector<8x140xbf16>
    %cst_70 = arith.constant dense<0.000000e+00> : vector<8x192xf32>
    %102 = tpu.matmul %101, %0, %cst_70 {dimension_numbers = #tpu.dot_dimension_numbers<[1], [0], [0], [1], [0, 0, 1, 1], [], []>} : vector<8x140xbf16>, vector<140x192xbf16>, vector<8x192xf32> -> vector<8x192xf32>
    %cst_71 = arith.constant 0.000000e+00 : f32
    %103 = vector.broadcast %cst_71 : f32 to vector<8x192xf32>
    %104 = arith.maximumf %102, %103 : vector<8x192xf32>
    %105 = arith.truncf %104 : vector<8x192xf32> to vector<8x192xbf16>
    %c11 = arith.constant 11 : index
    %c0_72 = arith.constant 0 : index
    %c0_73 = arith.constant 0 : index
    %106 = vector.load %arg3[%c11, %c0_72, %c0_73] : memref<24x192x10xbf16, #tpu.memory_space<vmem>>, vector<1x192x10xbf16>
    %107 = vector.shape_cast %106 : vector<1x192x10xbf16> to vector<192x10xbf16>
    %cst_74 = arith.constant dense<0.000000e+00> : vector<8x10xf32>
    %108 = tpu.matmul %105, %107, %cst_74 {dimension_numbers = #tpu.dot_dimension_numbers<[1], [0], [0], [1], [0, 0, 1, 1], [], []>} : vector<8x192xbf16>, vector<192x10xbf16>, vector<8x10xf32> -> vector<8x10xf32>
    %109 = arith.addf %100, %108 : vector<8x10xf32>
    %c0_75 = arith.constant 0 : index
    %c336 = arith.constant 336 : index
    %110 = vector.load %arg1[%c0_75, %c336] : memref<8x784xbf16, #tpu.memory_space<vmem>>, vector<8x140xbf16>
    %cst_76 = arith.constant dense<0.000000e+00> : vector<8x192xf32>
    %111 = tpu.matmul %110, %0, %cst_76 {dimension_numbers = #tpu.dot_dimension_numbers<[1], [0], [0], [1], [0, 0, 1, 1], [], []>} : vector<8x140xbf16>, vector<140x192xbf16>, vector<8x192xf32> -> vector<8x192xf32>
    %cst_77 = arith.constant 0.000000e+00 : f32
    %112 = vector.broadcast %cst_77 : f32 to vector<8x192xf32>
    %113 = arith.maximumf %111, %112 : vector<8x192xf32>
    %114 = arith.truncf %113 : vector<8x192xf32> to vector<8x192xbf16>
    %c12 = arith.constant 12 : index
    %c0_78 = arith.constant 0 : index
    %c0_79 = arith.constant 0 : index
    %115 = vector.load %arg3[%c12, %c0_78, %c0_79] : memref<24x192x10xbf16, #tpu.memory_space<vmem>>, vector<1x192x10xbf16>
    %116 = vector.shape_cast %115 : vector<1x192x10xbf16> to vector<192x10xbf16>
    %cst_80 = arith.constant dense<0.000000e+00> : vector<8x10xf32>
    %117 = tpu.matmul %114, %116, %cst_80 {dimension_numbers = #tpu.dot_dimension_numbers<[1], [0], [0], [1], [0, 0, 1, 1], [], []>} : vector<8x192xbf16>, vector<192x10xbf16>, vector<8x10xf32> -> vector<8x10xf32>
    %118 = arith.addf %109, %117 : vector<8x10xf32>
    %c0_81 = arith.constant 0 : index
    %c364 = arith.constant 364 : index
    %119 = vector.load %arg1[%c0_81, %c364] : memref<8x784xbf16, #tpu.memory_space<vmem>>, vector<8x140xbf16>
    %cst_82 = arith.constant dense<0.000000e+00> : vector<8x192xf32>
    %120 = tpu.matmul %119, %0, %cst_82 {dimension_numbers = #tpu.dot_dimension_numbers<[1], [0], [0], [1], [0, 0, 1, 1], [], []>} : vector<8x140xbf16>, vector<140x192xbf16>, vector<8x192xf32> -> vector<8x192xf32>
    %cst_83 = arith.constant 0.000000e+00 : f32
    %121 = vector.broadcast %cst_83 : f32 to vector<8x192xf32>
    %122 = arith.maximumf %120, %121 : vector<8x192xf32>
    %123 = arith.truncf %122 : vector<8x192xf32> to vector<8x192xbf16>
    %c13 = arith.constant 13 : index
    %c0_84 = arith.constant 0 : index
    %c0_85 = arith.constant 0 : index
    %124 = vector.load %arg3[%c13, %c0_84, %c0_85] : memref<24x192x10xbf16, #tpu.memory_space<vmem>>, vector<1x192x10xbf16>
    %125 = vector.shape_cast %124 : vector<1x192x10xbf16> to vector<192x10xbf16>
    %cst_86 = arith.constant dense<0.000000e+00> : vector<8x10xf32>
    %126 = tpu.matmul %123, %125, %cst_86 {dimension_numbers = #tpu.dot_dimension_numbers<[1], [0], [0], [1], [0, 0, 1, 1], [], []>} : vector<8x192xbf16>, vector<192x10xbf16>, vector<8x10xf32> -> vector<8x10xf32>
    %127 = arith.addf %118, %126 : vector<8x10xf32>
    %c0_87 = arith.constant 0 : index
    %c392 = arith.constant 392 : index
    %128 = vector.load %arg1[%c0_87, %c392] : memref<8x784xbf16, #tpu.memory_space<vmem>>, vector<8x140xbf16>
    %cst_88 = arith.constant dense<0.000000e+00> : vector<8x192xf32>
    %129 = tpu.matmul %128, %0, %cst_88 {dimension_numbers = #tpu.dot_dimension_numbers<[1], [0], [0], [1], [0, 0, 1, 1], [], []>} : vector<8x140xbf16>, vector<140x192xbf16>, vector<8x192xf32> -> vector<8x192xf32>
    %cst_89 = arith.constant 0.000000e+00 : f32
    %130 = vector.broadcast %cst_89 : f32 to vector<8x192xf32>
    %131 = arith.maximumf %129, %130 : vector<8x192xf32>
    %132 = arith.truncf %131 : vector<8x192xf32> to vector<8x192xbf16>
    %c14 = arith.constant 14 : index
    %c0_90 = arith.constant 0 : index
    %c0_91 = arith.constant 0 : index
    %133 = vector.load %arg3[%c14, %c0_90, %c0_91] : memref<24x192x10xbf16, #tpu.memory_space<vmem>>, vector<1x192x10xbf16>
    %134 = vector.shape_cast %133 : vector<1x192x10xbf16> to vector<192x10xbf16>
    %cst_92 = arith.constant dense<0.000000e+00> : vector<8x10xf32>
    %135 = tpu.matmul %132, %134, %cst_92 {dimension_numbers = #tpu.dot_dimension_numbers<[1], [0], [0], [1], [0, 0, 1, 1], [], []>} : vector<8x192xbf16>, vector<192x10xbf16>, vector<8x10xf32> -> vector<8x10xf32>
    %136 = arith.addf %127, %135 : vector<8x10xf32>
    %c0_93 = arith.constant 0 : index
    %c420 = arith.constant 420 : index
    %137 = vector.load %arg1[%c0_93, %c420] : memref<8x784xbf16, #tpu.memory_space<vmem>>, vector<8x140xbf16>
    %cst_94 = arith.constant dense<0.000000e+00> : vector<8x192xf32>
    %138 = tpu.matmul %137, %0, %cst_94 {dimension_numbers = #tpu.dot_dimension_numbers<[1], [0], [0], [1], [0, 0, 1, 1], [], []>} : vector<8x140xbf16>, vector<140x192xbf16>, vector<8x192xf32> -> vector<8x192xf32>
    %cst_95 = arith.constant 0.000000e+00 : f32
    %139 = vector.broadcast %cst_95 : f32 to vector<8x192xf32>
    %140 = arith.maximumf %138, %139 : vector<8x192xf32>
    %141 = arith.truncf %140 : vector<8x192xf32> to vector<8x192xbf16>
    %c15 = arith.constant 15 : index
    %c0_96 = arith.constant 0 : index
    %c0_97 = arith.constant 0 : index
    %142 = vector.load %arg3[%c15, %c0_96, %c0_97] : memref<24x192x10xbf16, #tpu.memory_space<vmem>>, vector<1x192x10xbf16>
    %143 = vector.shape_cast %142 : vector<1x192x10xbf16> to vector<192x10xbf16>
    %cst_98 = arith.constant dense<0.000000e+00> : vector<8x10xf32>
    %144 = tpu.matmul %141, %143, %cst_98 {dimension_numbers = #tpu.dot_dimension_numbers<[1], [0], [0], [1], [0, 0, 1, 1], [], []>} : vector<8x192xbf16>, vector<192x10xbf16>, vector<8x10xf32> -> vector<8x10xf32>
    %145 = arith.addf %136, %144 : vector<8x10xf32>
    %c0_99 = arith.constant 0 : index
    %c448 = arith.constant 448 : index
    %146 = vector.load %arg1[%c0_99, %c448] : memref<8x784xbf16, #tpu.memory_space<vmem>>, vector<8x140xbf16>
    %cst_100 = arith.constant dense<0.000000e+00> : vector<8x192xf32>
    %147 = tpu.matmul %146, %0, %cst_100 {dimension_numbers = #tpu.dot_dimension_numbers<[1], [0], [0], [1], [0, 0, 1, 1], [], []>} : vector<8x140xbf16>, vector<140x192xbf16>, vector<8x192xf32> -> vector<8x192xf32>
    %cst_101 = arith.constant 0.000000e+00 : f32
    %148 = vector.broadcast %cst_101 : f32 to vector<8x192xf32>
    %149 = arith.maximumf %147, %148 : vector<8x192xf32>
    %150 = arith.truncf %149 : vector<8x192xf32> to vector<8x192xbf16>
    %c16 = arith.constant 16 : index
    %c0_102 = arith.constant 0 : index
    %c0_103 = arith.constant 0 : index
    %151 = vector.load %arg3[%c16, %c0_102, %c0_103] : memref<24x192x10xbf16, #tpu.memory_space<vmem>>, vector<1x192x10xbf16>
    %152 = vector.shape_cast %151 : vector<1x192x10xbf16> to vector<192x10xbf16>
    %cst_104 = arith.constant dense<0.000000e+00> : vector<8x10xf32>
    %153 = tpu.matmul %150, %152, %cst_104 {dimension_numbers = #tpu.dot_dimension_numbers<[1], [0], [0], [1], [0, 0, 1, 1], [], []>} : vector<8x192xbf16>, vector<192x10xbf16>, vector<8x10xf32> -> vector<8x10xf32>
    %154 = arith.addf %145, %153 : vector<8x10xf32>
    %c0_105 = arith.constant 0 : index
    %c476 = arith.constant 476 : index
    %155 = vector.load %arg1[%c0_105, %c476] : memref<8x784xbf16, #tpu.memory_space<vmem>>, vector<8x140xbf16>
    %cst_106 = arith.constant dense<0.000000e+00> : vector<8x192xf32>
    %156 = tpu.matmul %155, %0, %cst_106 {dimension_numbers = #tpu.dot_dimension_numbers<[1], [0], [0], [1], [0, 0, 1, 1], [], []>} : vector<8x140xbf16>, vector<140x192xbf16>, vector<8x192xf32> -> vector<8x192xf32>
    %cst_107 = arith.constant 0.000000e+00 : f32
    %157 = vector.broadcast %cst_107 : f32 to vector<8x192xf32>
    %158 = arith.maximumf %156, %157 : vector<8x192xf32>
    %159 = arith.truncf %158 : vector<8x192xf32> to vector<8x192xbf16>
    %c17 = arith.constant 17 : index
    %c0_108 = arith.constant 0 : index
    %c0_109 = arith.constant 0 : index
    %160 = vector.load %arg3[%c17, %c0_108, %c0_109] : memref<24x192x10xbf16, #tpu.memory_space<vmem>>, vector<1x192x10xbf16>
    %161 = vector.shape_cast %160 : vector<1x192x10xbf16> to vector<192x10xbf16>
    %cst_110 = arith.constant dense<0.000000e+00> : vector<8x10xf32>
    %162 = tpu.matmul %159, %161, %cst_110 {dimension_numbers = #tpu.dot_dimension_numbers<[1], [0], [0], [1], [0, 0, 1, 1], [], []>} : vector<8x192xbf16>, vector<192x10xbf16>, vector<8x10xf32> -> vector<8x10xf32>
    %163 = arith.addf %154, %162 : vector<8x10xf32>
    %c0_111 = arith.constant 0 : index
    %c504 = arith.constant 504 : index
    %164 = vector.load %arg1[%c0_111, %c504] : memref<8x784xbf16, #tpu.memory_space<vmem>>, vector<8x140xbf16>
    %cst_112 = arith.constant dense<0.000000e+00> : vector<8x192xf32>
    %165 = tpu.matmul %164, %0, %cst_112 {dimension_numbers = #tpu.dot_dimension_numbers<[1], [0], [0], [1], [0, 0, 1, 1], [], []>} : vector<8x140xbf16>, vector<140x192xbf16>, vector<8x192xf32> -> vector<8x192xf32>
    %cst_113 = arith.constant 0.000000e+00 : f32
    %166 = vector.broadcast %cst_113 : f32 to vector<8x192xf32>
    %167 = arith.maximumf %165, %166 : vector<8x192xf32>
    %168 = arith.truncf %167 : vector<8x192xf32> to vector<8x192xbf16>
    %c18 = arith.constant 18 : index
    %c0_114 = arith.constant 0 : index
    %c0_115 = arith.constant 0 : index
    %169 = vector.load %arg3[%c18, %c0_114, %c0_115] : memref<24x192x10xbf16, #tpu.memory_space<vmem>>, vector<1x192x10xbf16>
    %170 = vector.shape_cast %169 : vector<1x192x10xbf16> to vector<192x10xbf16>
    %cst_116 = arith.constant dense<0.000000e+00> : vector<8x10xf32>
    %171 = tpu.matmul %168, %170, %cst_116 {dimension_numbers = #tpu.dot_dimension_numbers<[1], [0], [0], [1], [0, 0, 1, 1], [], []>} : vector<8x192xbf16>, vector<192x10xbf16>, vector<8x10xf32> -> vector<8x10xf32>
    %172 = arith.addf %163, %171 : vector<8x10xf32>
    %c0_117 = arith.constant 0 : index
    %c532 = arith.constant 532 : index
    %173 = vector.load %arg1[%c0_117, %c532] : memref<8x784xbf16, #tpu.memory_space<vmem>>, vector<8x140xbf16>
    %cst_118 = arith.constant dense<0.000000e+00> : vector<8x192xf32>
    %174 = tpu.matmul %173, %0, %cst_118 {dimension_numbers = #tpu.dot_dimension_numbers<[1], [0], [0], [1], [0, 0, 1, 1], [], []>} : vector<8x140xbf16>, vector<140x192xbf16>, vector<8x192xf32> -> vector<8x192xf32>
    %cst_119 = arith.constant 0.000000e+00 : f32
    %175 = vector.broadcast %cst_119 : f32 to vector<8x192xf32>
    %176 = arith.maximumf %174, %175 : vector<8x192xf32>
    %177 = arith.truncf %176 : vector<8x192xf32> to vector<8x192xbf16>
    %c19 = arith.constant 19 : index
    %c0_120 = arith.constant 0 : index
    %c0_121 = arith.constant 0 : index
    %178 = vector.load %arg3[%c19, %c0_120, %c0_121] : memref<24x192x10xbf16, #tpu.memory_space<vmem>>, vector<1x192x10xbf16>
    %179 = vector.shape_cast %178 : vector<1x192x10xbf16> to vector<192x10xbf16>
    %cst_122 = arith.constant dense<0.000000e+00> : vector<8x10xf32>
    %180 = tpu.matmul %177, %179, %cst_122 {dimension_numbers = #tpu.dot_dimension_numbers<[1], [0], [0], [1], [0, 0, 1, 1], [], []>} : vector<8x192xbf16>, vector<192x10xbf16>, vector<8x10xf32> -> vector<8x10xf32>
    %181 = arith.addf %172, %180 : vector<8x10xf32>
    %c0_123 = arith.constant 0 : index
    %c560 = arith.constant 560 : index
    %182 = vector.load %arg1[%c0_123, %c560] : memref<8x784xbf16, #tpu.memory_space<vmem>>, vector<8x140xbf16>
    %cst_124 = arith.constant dense<0.000000e+00> : vector<8x192xf32>
    %183 = tpu.matmul %182, %0, %cst_124 {dimension_numbers = #tpu.dot_dimension_numbers<[1], [0], [0], [1], [0, 0, 1, 1], [], []>} : vector<8x140xbf16>, vector<140x192xbf16>, vector<8x192xf32> -> vector<8x192xf32>
    %cst_125 = arith.constant 0.000000e+00 : f32
    %184 = vector.broadcast %cst_125 : f32 to vector<8x192xf32>
    %185 = arith.maximumf %183, %184 : vector<8x192xf32>
    %186 = arith.truncf %185 : vector<8x192xf32> to vector<8x192xbf16>
    %c20 = arith.constant 20 : index
    %c0_126 = arith.constant 0 : index
    %c0_127 = arith.constant 0 : index
    %187 = vector.load %arg3[%c20, %c0_126, %c0_127] : memref<24x192x10xbf16, #tpu.memory_space<vmem>>, vector<1x192x10xbf16>
    %188 = vector.shape_cast %187 : vector<1x192x10xbf16> to vector<192x10xbf16>
    %cst_128 = arith.constant dense<0.000000e+00> : vector<8x10xf32>
    %189 = tpu.matmul %186, %188, %cst_128 {dimension_numbers = #tpu.dot_dimension_numbers<[1], [0], [0], [1], [0, 0, 1, 1], [], []>} : vector<8x192xbf16>, vector<192x10xbf16>, vector<8x10xf32> -> vector<8x10xf32>
    %190 = arith.addf %181, %189 : vector<8x10xf32>
    %c0_129 = arith.constant 0 : index
    %c588 = arith.constant 588 : index
    %191 = vector.load %arg1[%c0_129, %c588] : memref<8x784xbf16, #tpu.memory_space<vmem>>, vector<8x140xbf16>
    %cst_130 = arith.constant dense<0.000000e+00> : vector<8x192xf32>
    %192 = tpu.matmul %191, %0, %cst_130 {dimension_numbers = #tpu.dot_dimension_numbers<[1], [0], [0], [1], [0, 0, 1, 1], [], []>} : vector<8x140xbf16>, vector<140x192xbf16>, vector<8x192xf32> -> vector<8x192xf32>
    %cst_131 = arith.constant 0.000000e+00 : f32
    %193 = vector.broadcast %cst_131 : f32 to vector<8x192xf32>
    %194 = arith.maximumf %192, %193 : vector<8x192xf32>
    %195 = arith.truncf %194 : vector<8x192xf32> to vector<8x192xbf16>
    %c21 = arith.constant 21 : index
    %c0_132 = arith.constant 0 : index
    %c0_133 = arith.constant 0 : index
    %196 = vector.load %arg3[%c21, %c0_132, %c0_133] : memref<24x192x10xbf16, #tpu.memory_space<vmem>>, vector<1x192x10xbf16>
    %197 = vector.shape_cast %196 : vector<1x192x10xbf16> to vector<192x10xbf16>
    %cst_134 = arith.constant dense<0.000000e+00> : vector<8x10xf32>
    %198 = tpu.matmul %195, %197, %cst_134 {dimension_numbers = #tpu.dot_dimension_numbers<[1], [0], [0], [1], [0, 0, 1, 1], [], []>} : vector<8x192xbf16>, vector<192x10xbf16>, vector<8x10xf32> -> vector<8x10xf32>
    %199 = arith.addf %190, %198 : vector<8x10xf32>
    %c0_135 = arith.constant 0 : index
    %c616 = arith.constant 616 : index
    %200 = vector.load %arg1[%c0_135, %c616] : memref<8x784xbf16, #tpu.memory_space<vmem>>, vector<8x140xbf16>
    %cst_136 = arith.constant dense<0.000000e+00> : vector<8x192xf32>
    %201 = tpu.matmul %200, %0, %cst_136 {dimension_numbers = #tpu.dot_dimension_numbers<[1], [0], [0], [1], [0, 0, 1, 1], [], []>} : vector<8x140xbf16>, vector<140x192xbf16>, vector<8x192xf32> -> vector<8x192xf32>
    %cst_137 = arith.constant 0.000000e+00 : f32
    %202 = vector.broadcast %cst_137 : f32 to vector<8x192xf32>
    %203 = arith.maximumf %201, %202 : vector<8x192xf32>
    %204 = arith.truncf %203 : vector<8x192xf32> to vector<8x192xbf16>
    %c22 = arith.constant 22 : index
    %c0_138 = arith.constant 0 : index
    %c0_139 = arith.constant 0 : index
    %205 = vector.load %arg3[%c22, %c0_138, %c0_139] : memref<24x192x10xbf16, #tpu.memory_space<vmem>>, vector<1x192x10xbf16>
    %206 = vector.shape_cast %205 : vector<1x192x10xbf16> to vector<192x10xbf16>
    %cst_140 = arith.constant dense<0.000000e+00> : vector<8x10xf32>
    %207 = tpu.matmul %204, %206, %cst_140 {dimension_numbers = #tpu.dot_dimension_numbers<[1], [0], [0], [1], [0, 0, 1, 1], [], []>} : vector<8x192xbf16>, vector<192x10xbf16>, vector<8x10xf32> -> vector<8x10xf32>
    %208 = arith.addf %199, %207 : vector<8x10xf32>
    %c0_141 = arith.constant 0 : index
    %c644 = arith.constant 644 : index
    %209 = vector.load %arg1[%c0_141, %c644] : memref<8x784xbf16, #tpu.memory_space<vmem>>, vector<8x140xbf16>
    %cst_142 = arith.constant dense<0.000000e+00> : vector<8x192xf32>
    %210 = tpu.matmul %209, %0, %cst_142 {dimension_numbers = #tpu.dot_dimension_numbers<[1], [0], [0], [1], [0, 0, 1, 1], [], []>} : vector<8x140xbf16>, vector<140x192xbf16>, vector<8x192xf32> -> vector<8x192xf32>
    %cst_143 = arith.constant 0.000000e+00 : f32
    %211 = vector.broadcast %cst_143 : f32 to vector<8x192xf32>
    %212 = arith.maximumf %210, %211 : vector<8x192xf32>
    %213 = arith.truncf %212 : vector<8x192xf32> to vector<8x192xbf16>
    %c23 = arith.constant 23 : index
    %c0_144 = arith.constant 0 : index
    %c0_145 = arith.constant 0 : index
    %214 = vector.load %arg3[%c23, %c0_144, %c0_145] : memref<24x192x10xbf16, #tpu.memory_space<vmem>>, vector<1x192x10xbf16>
    %215 = vector.shape_cast %214 : vector<1x192x10xbf16> to vector<192x10xbf16>
    %cst_146 = arith.constant dense<0.000000e+00> : vector<8x10xf32>
    %216 = tpu.matmul %213, %215, %cst_146 {dimension_numbers = #tpu.dot_dimension_numbers<[1], [0], [0], [1], [0, 0, 1, 1], [], []>} : vector<8x192xbf16>, vector<192x10xbf16>, vector<8x10xf32> -> vector<8x10xf32>
    %217 = arith.addf %208, %216 : vector<8x10xf32>
    %c0_147 = arith.constant 0 : index
    %c0_148 = arith.constant 0 : index
    %218 = vector.load %arg4[%c0_147, %c0_148] : memref<1x10xf32, #tpu.memory_space<vmem>>, vector<1x10xf32>
    %219 = vector.broadcast %218 : vector<1x10xf32> to vector<8x10xf32>
    %220 = arith.addf %217, %219 : vector<8x10xf32>
    %c0_149 = arith.constant 0 : index
    %c0_150 = arith.constant 0 : index
    %221 = vector.load %arg5[%c0_149, %c0_150] : memref<8x10xf32, #tpu.memory_space<vmem>>, vector<8x10xf32>
    tpu.vector_store %arg5[%c0_149, %c0_150], %220 {strides = array<i32>} : memref<8x10xf32, #tpu.memory_space<vmem>>, vector<8x10xf32>,
    return
  }
  func.func @transform_0(%arg0: i32) -> (i32, i32) {
    %c0_i32 = arith.constant 0 : i32
    %c0_i32_0 = arith.constant 0 : i32
    return %arg0, %c0_i32 : i32, i32
  }
  func.func @transform_1(%arg0: i32) -> (i32, i32) {
    %c0_i32 = arith.constant 0 : i32
    %c0_i32_0 = arith.constant 0 : i32
    %c0_i32_1 = arith.constant 0 : i32
    return %c0_i32, %c0_i32_0 : i32, i32
  }
  func.func @transform_2(%arg0: i32) -> (i32, i32, i32) {
    %c0_i32 = arith.constant 0 : i32
    %c0_i32_0 = arith.constant 0 : i32
    %c0_i32_1 = arith.constant 0 : i32
    %c0_i32_2 = arith.constant 0 : i32
    return %c0_i32, %c0_i32_0, %c0_i32_1 : i32, i32, i32
  }
  func.func @transform_3(%arg0: i32) -> (i32, i32) {
    %c0_i32 = arith.constant 0 : i32
    %c0_i32_0 = arith.constant 0 : i32
    %c0_i32_1 = arith.constant 0 : i32
    return %c0_i32, %c0_i32_0 : i32, i32
  }
  func.func @transform_4(%arg0: i32) -> (i32, i32) {
    %c0_i32 = arith.constant 0 : i32
    %c0_i32_0 = arith.constant 0 : i32
    return %arg0, %c0_i32 : i32, i32
  }
}

</mosaic_0001>

<llo_original>
// kernel: my_conv_net_forward.1
$region0: #{my_conv_net_forward.1}
  #allocation0 [shape = 'u32[]', space=smem, size = 0x4, offset = 0x4, fixed_abs, tag = 'smem constant byte address 0x4 - core index']
  #allocation1 [shape = 'u32[144,128]{1,0:T(1,128)}', space=vmem, size = 0x12000, scoped, tag = 'internal scratch']
  %s0 = inlined_call_operand.vmem [shape: bf16[8,784], index: 0, kind: input, shape index: {}]
  %s1 = inlined_call_operand.vmem [shape: bf16[140,192], index: 1, kind: input, shape index: {}]
  %s2 = inlined_call_operand.vmem [shape: bf16[24,192,10], index: 2, kind: input, shape index: {}]
  %s3 = inlined_call_operand.vmem [shape: f32[1,10], index: 3, kind: input, shape index: {}]
  %s4 = inlined_call_operand.vmem [shape: f32[8,10], index: 4, kind: output, shape index: {}]
  %s5 = sld [smem:[#allocation0]]
  $region26: #{my_conv_net_forward.1} parent=0
    _
  %s7 = ssub.s32 1, %s5
  %s8 = scalar_select 0, %s7, %s5
  // Predicated region
  $region2: #{my_conv_net_forward.1} parent=0 // pred_check
    _
  $region3: #{my_conv_net_forward.1} parent=0 // pred_check_branch
    %10 = sbr.rel (0) target = $region5
  $region4: #{my_conv_net_forward.1} parent=0 // pred_region
    _
  $region5: #{my_conv_net_forward.1} parent=0 // pred_fallthru
    _
  // Predicated region
  $region6: #{my_conv_net_forward.1} parent=0 // pred_check
    _
  $region7: #{my_conv_net_forward.1} parent=0 // pred_check_branch
    %12 = sbr.rel (0) target = $region9
  $region8: #{my_conv_net_forward.1} parent=0 // pred_region
    _
  $region9: #{my_conv_net_forward.1} parent=0 // pred_fallthru
    _
  // Predicated region
  $region10: #{my_conv_net_forward.1} parent=0 // pred_check
    _
  $region11: #{my_conv_net_forward.1} parent=0 // pred_check_branch
    %14 = sbr.rel (0) target = $region13
  $region12: #{my_conv_net_forward.1} parent=0 // pred_region
    _
  $region13: #{my_conv_net_forward.1} parent=0 // pred_fallthru
    _
  // Predicated region
  $region14: #{my_conv_net_forward.1} parent=0 // pred_check
    _
  $region15: #{my_conv_net_forward.1} parent=0 // pred_check_branch
    %16 = sbr.rel (0) target = $region17
  $region16: #{my_conv_net_forward.1} parent=0 // pred_region
    _
  $region17: #{my_conv_net_forward.1} parent=0 // pred_fallthru
    _
  %v18 = vld [vmem:[%s1] sm:$0xff]
  %v19 = vld [vmem:[%s1 + $0x8] sm:$0xff]
  %v20 = vld [vmem:[%s1 + $0x10] sm:$0xff]
  %v21 = vld [vmem:[%s1 + $0x18] sm:$0xff]
  %v22 = vld [vmem:[%s1 + $0x20] sm:$0xff]
  %v23 = vld [vmem:[%s1 + $0x28] sm:$0xff]
  %v24 = vld [vmem:[%s1 + $0x30] sm:$0xff]
  %v25 = vld [vmem:[%s1 + $0x38] sm:$0xff]
  %v26 = vld [vmem:[%s1 + $0x40] sm:$0xff]
  %v27 = vld [vmem:[%s1 + $0x48] sm:$0xff]
  %v28 = vld [vmem:[%s1 + $0x50] sm:$0xff]
  %v29 = vld [vmem:[%s1 + $0x58] sm:$0xff]
  %v30 = vld [vmem:[%s1 + $0x60] sm:$0xff]
  %v31 = vld [vmem:[%s1 + $0x68] sm:$0xff]
  %v32 = vld [vmem:[%s1 + $0x70] sm:$0xff]
  %v33 = vld [vmem:[%s1 + $0x78] sm:$0xff]
  %v34 = vld [vmem:[%s1 + $0x80] sm:$0xff]
  %v35 = vld [vmem:[%s1 + $0x88] sm:$0x33]
  %v36 = vld [vmem:[%s0] sm:$0xff]
  %v38 = vunpack.c.l.b16 %v36
  %v39 = vunpack.c.h.b16 %v36
  %v40 = vpack.c.b16 %v38, %v38
  %v41 = vpack.c.b16 %v39, %v39
  %v61 = vunpack.c.l.b16 %v18
  %v62 = vunpack.c.h.b16 %v18
  %v63 = vunpack.c.l.b16 %v19
  %v64 = vunpack.c.h.b16 %v19
  %v65 = vunpack.c.l.b16 %v20
  %v66 = vunpack.c.h.b16 %v20
  %v67 = vunpack.c.l.b16 %v21
  %v68 = vunpack.c.h.b16 %v21
  %v69 = vunpack.c.l.b16 %v22
  %v70 = vunpack.c.h.b16 %v22
  %v71 = vunpack.c.l.b16 %v23
  %v72 = vunpack.c.h.b16 %v23
  %v73 = vunpack.c.l.b16 %v24
  %v74 = vunpack.c.h.b16 %v24
  %v75 = vunpack.c.l.b16 %v25
  %v76 = vunpack.c.h.b16 %v25
  %v77 = vunpack.c.l.b16 %v26
  %v78 = vunpack.c.h.b16 %v26
  %v79 = vunpack.c.l.b16 %v27
  %v80 = vunpack.c.h.b16 %v27
  %v81 = vunpack.c.l.b16 %v28
  %v82 = vunpack.c.h.b16 %v28
  %v83 = vunpack.c.l.b16 %v29
  %v84 = vunpack.c.h.b16 %v29
  %v85 = vunpack.c.l.b16 %v30
  %v86 = vunpack.c.h.b16 %v30
  %v87 = vunpack.c.l.b16 %v31
  %v88 = vunpack.c.h.b16 %v31
  %v89 = vunpack.c.l.b16 %v32
  %v90 = vunpack.c.h.b16 %v32
  %v91 = vunpack.c.l.b16 %v33
  %v92 = vunpack.c.h.b16 %v33
  %v93 = vunpack.c.l.b16 %v34
  %v94 = vunpack.c.h.b16 %v34
  %v95 = vunpack.c.l.b16 %v35
  %v96 = vunpack.c.h.b16 %v35
  %v97 = vpack.c.b16 %v63, %v61
  %v98 = vpack.c.b16 %v64, %v62
  %v99 = vpack.c.b16 %v67, %v65
  %v100 = vpack.c.b16 %v68, %v66
  %v101 = vpack.c.b16 %v71, %v69
  %v102 = vpack.c.b16 %v72, %v70
  %v103 = vpack.c.b16 %v75, %v73
  %v104 = vpack.c.b16 %v76, %v74
  %v105 = vpack.c.b16 %v79, %v77
  %v106 = vpack.c.b16 %v80, %v78
  %v107 = vpack.c.b16 %v83, %v81
  %v108 = vpack.c.b16 %v84, %v82
  %v109 = vpack.c.b16 %v87, %v85
  %v110 = vpack.c.b16 %v88, %v86
  %v111 = vpack.c.b16 %v91, %v89
  %v112 = vpack.c.b16 %v92, %v90
  %v113 = vpack.c.b16 %v95, %v93
  %v114 = vpack.c.b16 %v96, %v94
  %vm131 = vcmask 97280
  %v133 = vsel %vm131, %v41, 0
  %vm135 = vcmask 1045504
  %v137 = vsel %vm135, %v113, 0
  %v140 = vsel %vm135, %v114, 0
  %142 = vmatprep.subr.bf16.mxu0 %v98
  %143 = vmatpush1.bf16.msra.mxu0 %v97
  %144 = vmatprep.subr.bf16.mxu0 %v100
  %145 = vmatpush1.bf16.msra.mxu0 %v99
  %146 = vmatprep.subr.bf16.mxu0 %v102
  %147 = vmatpush1.bf16.msra.mxu0 %v101
  %148 = vmatprep.subr.bf16.mxu0 %v104
  %149 = vmatpush1.bf16.msra.mxu0 %v103
  %150 = vmatprep.subr.bf16.mxu0 %v106
  %151 = vmatpush1.bf16.msra.mxu0 %v105
  %152 = vmatprep.subr.bf16.mxu0 %v108
  %153 = vmatpush1.bf16.msra.mxu0 %v107
  %154 = vmatprep.subr.bf16.mxu0 %v110
  %155 = vmatpush1.bf16.msra.mxu0 %v109
  %156 = vmatprep.subr.bf16.mxu0 %v112
  %157 = vmatpush1.bf16.msra.mxu0 %v111
  %158 = vmatprep.subr.bf16.mxu0 %v140
  %159 = vmatpush1.bf16.msra.mxu0 %v137
  %160 = vmatprep.subr.bf16.mxu0 0
  %161 = vmatpush1.bf16.msra.mxu0 0
  %162 = vmatprep.subr.bf16.mxu0 0
  %163 = vmatpush1.bf16.msra.mxu0 0
  %164 = vmatprep.subr.bf16.mxu0 0
  %165 = vmatpush1.bf16.msra.mxu0 0
  %166 = vmatprep.subr.bf16.mxu0 0
  %167 = vmatpush1.bf16.msra.mxu0 0
  %168 = vmatprep.subr.bf16.mxu0 0
  %169 = vmatpush1.bf16.msra.mxu0 0
  %170 = vmatprep.subr.bf16.mxu0 0
  %171 = vmatpush1.bf16.msra.mxu0 0
  %172 = vmatprep.subr.bf16.mxu0 0
  %173 = vmatpush1.bf16.msra.mxu0 0
  %174 = vmatprep.mubr.bf16.mxu0 %v133
  %175 = vmatmul.mubr.bf16.gmra.mrb[0].mxu0 %v40
  %v176 = vpop.f32.mrb[0].mxu0
  %v177 = vadd.f32 0.0, %v176
  %v178 = vpop.f32.mrb[0].mxu0
  %v179 = vadd.f32 0.0, %v178
  %v180 = vpop.f32.mrb[0].mxu0
  %v181 = vpop.f32.mrb[0].mxu0
  %182 = vdwg.mxu0
  %v183 = vmax.f32 %v177, 0.0
  %v184 = vmax.f32 %v179, 0.0
  %v185 = vpack.c.bf16 %v183, %v183
  %v186 = vpack.c.bf16 %v184, %v184
  %v187 = vld [vmem:[%s2] sm:$0xf]
  %v188 = vld [vmem:[%s2 + $0x4] sm:$0xf]
  %v189 = vld [vmem:[%s2 + $0x8] sm:$0xf]
  %v190 = vld [vmem:[%s2 + $0xc] sm:$0xf]
  %v191 = vld [vmem:[%s2 + $0x10] sm:$0xf]
  %v192 = vld [vmem:[%s2 + $0x14] sm:$0xf]
  %v193 = vld [vmem:[%s2 + $0x18] sm:$0xf]
  %v194 = vld [vmem:[%s2 + $0x1c] sm:$0xf]
  %v195 = vld [vmem:[%s2 + $0x20] sm:$0xf]
  %v196 = vld [vmem:[%s2 + $0x24] sm:$0xf]
  %v197 = vld [vmem:[%s2 + $0x28] sm:$0xf]
  %v198 = vld [vmem:[%s2 + $0x2c] sm:$0xf]
  %v199 = vld [vmem:[%s2 + $0x30] sm:$0xf]
  %v200 = vld [vmem:[%s2 + $0x34] sm:$0xf]
  %v201 = vld [vmem:[%s2 + $0x38] sm:$0xf]
  %v202 = vld [vmem:[%s2 + $0x3c] sm:$0xf]
  %v203 = vld [vmem:[%s2 + $0x40] sm:$0xf]
  %v204 = vld [vmem:[%s2 + $0x44] sm:$0xf]
  %v205 = vld [vmem:[%s2 + $0x48] sm:$0xf]
  %v206 = vld [vmem:[%s2 + $0x4c] sm:$0xf]
  %v207 = vld [vmem:[%s2 + $0x50] sm:$0xf]
  %v208 = vld [vmem:[%s2 + $0x54] sm:$0xf]
  %v209 = vld [vmem:[%s2 + $0x58] sm:$0xf]
  %v210 = vld [vmem:[%s2 + $0x5c] sm:$0xf]
  %211 = vrot.lane.b32.xlu0 %v40, 100
  %v212 = vpop.permute.xlu0 %211
  %213 = vrot.lane.b32.xlu0 %v41, 100
  %v214 = vpop.permute.xlu0 %213
  %vm215 = vcmask 818176
  %v216 = vsel %vm215, %v212, %v214
  %v219 = vsel %vm131, %v214, 0
  %221 = vmatprep.subr.bf16.mxu0 %v98
  %222 = vmatpush1.bf16.msra.mxu0 %v97
  %223 = vmatprep.subr.bf16.mxu0 %v100
  %224 = vmatpush1.bf16.msra.mxu0 %v99
  %225 = vmatprep.subr.bf16.mxu0 %v102
  %226 = vmatpush1.bf16.msra.mxu0 %v101
  %227 = vmatprep.subr.bf16.mxu0 %v104
  %228 = vmatpush1.bf16.msra.mxu0 %v103
  %229 = vmatprep.subr.bf16.mxu0 %v106
  %230 = vmatpush1.bf16.msra.mxu0 %v105
  %231 = vmatprep.subr.bf16.mxu0 %v108
  %232 = vmatpush1.bf16.msra.mxu0 %v107
  %233 = vmatprep.subr.bf16.mxu0 %v110
  %234 = vmatpush1.bf16.msra.mxu0 %v109
  %235 = vmatprep.subr.bf16.mxu0 %v112
  %236 = vmatpush1.bf16.msra.mxu0 %v111
  %237 = vmatprep.subr.bf16.mxu0 %v140
  %238 = vmatpush1.bf16.msra.mxu0 %v137
  %239 = vmatprep.subr.bf16.mxu0 0
  %240 = vmatpush1.bf16.msra.mxu0 0
  %241 = vmatprep.subr.bf16.mxu0 0
  %242 = vmatpush1.bf16.msra.mxu0 0
  %243 = vmatprep.subr.bf16.mxu0 0
  %244 = vmatpush1.bf16.msra.mxu0 0
  %245 = vmatprep.subr.bf16.mxu0 0
  %246 = vmatpush1.bf16.msra.mxu0 0
  %247 = vmatprep.subr.bf16.mxu0 0
  %248 = vmatpush1.bf16.msra.mxu0 0
  %249 = vmatprep.subr.bf16.mxu0 0
  %250 = vmatpush1.bf16.msra.mxu0 0
  %251 = vmatprep.subr.bf16.mxu0 0
  %252 = vmatpush1.bf16.msra.mxu0 0
  %253 = vmatprep.mubr.bf16.mxu0 %v219
  %254 = vmatmul.mubr.bf16.gmra.mrb[0].mxu0 %v216
  %v255 = vpop.f32.mrb[0].mxu0
  %v256 = vadd.f32 0.0, %v255
  %v257 = vpop.f32.mrb[0].mxu0
  %v258 = vadd.f32 0.0, %v257
  %v259 = vpop.f32.mrb[0].mxu0
  %v260 = vpop.f32.mrb[0].mxu0
  %261 = vdwg.mxu0
  %v262 = vmax.f32 %v256, 0.0
  %v263 = vmax.f32 %v258, 0.0
  %v264 = vpack.c.bf16 %v262, %v262
  %v265 = vpack.c.bf16 %v263, %v263
  %s266 = scalar_lea.vmem %s2, 96
  %v267 = vld [vmem:[%s266] sm:$0xf]
  %v268 = vld [vmem:[%s266 + $0x4] sm:$0xf]
  %v269 = vld [vmem:[%s266 + $0x8] sm:$0xf]
  %v270 = vld [vmem:[%s266 + $0xc] sm:$0xf]
  %v271 = vld [vmem:[%s266 + $0x10] sm:$0xf]
  %v272 = vld [vmem:[%s266 + $0x14] sm:$0xf]
  %v273 = vld [vmem:[%s266 + $0x18] sm:$0xf]
  %v274 = vld [vmem:[%s266 + $0x1c] sm:$0xf]
  %v275 = vld [vmem:[%s266 + $0x20] sm:$0xf]
  %v276 = vld [vmem:[%s266 + $0x24] sm:$0xf]
  %v277 = vld [vmem:[%s266 + $0x28] sm:$0xf]
  %v278 = vld [vmem:[%s266 + $0x2c] sm:$0xf]
  %v279 = vld [vmem:[%s266 + $0x30] sm:$0xf]
  %v280 = vld [vmem:[%s266 + $0x34] sm:$0xf]
  %v281 = vld [vmem:[%s266 + $0x38] sm:$0xf]
  %v282 = vld [vmem:[%s266 + $0x3c] sm:$0xf]
  %v283 = vld [vmem:[%s266 + $0x40] sm:$0xf]
  %v284 = vld [vmem:[%s266 + $0x44] sm:$0xf]
  %v285 = vld [vmem:[%s266 + $0x48] sm:$0xf]
  %v286 = vld [vmem:[%s266 + $0x4c] sm:$0xf]
  %v287 = vld [vmem:[%s266 + $0x50] sm:$0xf]
  %v288 = vld [vmem:[%s266 + $0x54] sm:$0xf]
  %v289 = vld [vmem:[%s266 + $0x58] sm:$0xf]
  %v290 = vld [vmem:[%s266 + $0x5c] sm:$0xf]
  %v315 = vunpack.c.l.b16 %v267
  %v316 = vunpack.c.l.b16 %v268
  %v317 = vunpack.c.l.b16 %v269
  %v318 = vunpack.c.l.b16 %v270
  %v319 = vunpack.c.l.b16 %v271
  %v320 = vunpack.c.l.b16 %v272
  %v321 = vunpack.c.l.b16 %v273
  %v322 = vunpack.c.l.b16 %v274
  %v323 = vunpack.c.l.b16 %v275
  %v324 = vunpack.c.l.b16 %v276
  %v325 = vunpack.c.l.b16 %v277
  %v326 = vunpack.c.l.b16 %v278
  %v327 = vunpack.c.l.b16 %v279
  %v328 = vunpack.c.l.b16 %v280
  %v329 = vunpack.c.l.b16 %v281
  %v330 = vunpack.c.l.b16 %v282
  %v331 = vunpack.c.l.b16 %v283
  %v332 = vunpack.c.l.b16 %v284
  %v333 = vunpack.c.l.b16 %v285
  %v334 = vunpack.c.l.b16 %v286
  %v335 = vunpack.c.l.b16 %v287
  %v336 = vunpack.c.l.b16 %v288
  %v337 = vunpack.c.l.b16 %v289
  %v338 = vunpack.c.l.b16 %v290
  %v339 = vpack.c.b16 %v316, %v315
  %v340 = vpack.c.b16 %v318, %v317
  %v341 = vpack.c.b16 %v320, %v319
  %v342 = vpack.c.b16 %v322, %v321
  %v343 = vpack.c.b16 %v324, %v323
  %v344 = vpack.c.b16 %v326, %v325
  %v345 = vpack.c.b16 %v328, %v327
  %v346 = vpack.c.b16 %v330, %v329
  %v347 = vpack.c.b16 %v332, %v331
  %v348 = vpack.c.b16 %v334, %v333
  %v349 = vpack.c.b16 %v336, %v335
  %v350 = vpack.c.b16 %v338, %v337
  %vm363 = vcmask 523264
  %v365 = vsel %vm363, %v265, 0
  %367 = vmatprep.subr.bf16.mxu0 0
  %368 = vmatpush1.bf16.msra.mxu0 %v339
  %369 = vmatprep.subr.bf16.mxu0 0
  %370 = vmatpush1.bf16.msra.mxu0 %v340
  %371 = vmatprep.subr.bf16.mxu0 0
  %372 = vmatpush1.bf16.msra.mxu0 %v341
  %373 = vmatprep.subr.bf16.mxu0 0
  %374 = vmatpush1.bf16.msra.mxu0 %v342
  %375 = vmatprep.subr.bf16.mxu0 0
  %376 = vmatpush1.bf16.msra.mxu0 %v343
  %377 = vmatprep.subr.bf16.mxu0 0
  %378 = vmatpush1.bf16.msra.mxu0 %v344
  %379 = vmatprep.subr.bf16.mxu0 0
  %380 = vmatpush1.bf16.msra.mxu0 %v345
  %381 = vmatprep.subr.bf16.mxu0 0
  %382 = vmatpush1.bf16.msra.mxu0 %v346
  %383 = vmatprep.subr.bf16.mxu0 0
  %384 = vmatpush1.bf16.msra.mxu0 %v347
  %385 = vmatprep.subr.bf16.mxu0 0
  %386 = vmatpush1.bf16.msra.mxu0 %v348
  %387 = vmatprep.subr.bf16.mxu0 0
  %388 = vmatpush1.bf16.msra.mxu0 %v349
  %389 = vmatprep.subr.bf16.mxu0 0
  %390 = vmatpush1.bf16.msra.mxu0 %v350
  %391 = vmatprep.subr.bf16.mxu0 0
  %392 = vmatpush1.bf16.msra.mxu0 0
  %393 = vmatprep.subr.bf16.mxu0 0
  %394 = vmatpush1.bf16.msra.mxu0 0
  %395 = vmatprep.subr.bf16.mxu0 0
  %396 = vmatpush1.bf16.msra.mxu0 0
  %397 = vmatprep.subr.bf16.mxu0 0
  %398 = vmatpush1.bf16.msra.mxu0 0
  %399 = vmatprep.mubr.bf16.mxu0 %v365
  %400 = vmatmul.mubr.bf16.gmra.mrb[0].mxu0 %v264
  %v401 = vpop.f32.mrb[0].mxu0
  %v402 = vadd.f32 0.0, %v401
  %v403 = vpop.f32.mrb[0].mxu0
  %v404 = vpop.f32.mrb[0].mxu0
  %v405 = vpop.f32.mrb[0].mxu0
  %406 = vdwg.mxu0
  %v431 = vunpack.c.l.b16 %v187
  %v432 = vunpack.c.l.b16 %v188
  %v433 = vunpack.c.l.b16 %v189
  %v434 = vunpack.c.l.b16 %v190
  %v435 = vunpack.c.l.b16 %v191
  %v436 = vunpack.c.l.b16 %v192
  %v437 = vunpack.c.l.b16 %v193
  %v438 = vunpack.c.l.b16 %v194
  %v439 = vunpack.c.l.b16 %v195
  %v440 = vunpack.c.l.b16 %v196
  %v441 = vunpack.c.l.b16 %v197
  %v442 = vunpack.c.l.b16 %v198
  %v443 = vunpack.c.l.b16 %v199
  %v444 = vunpack.c.l.b16 %v200
  %v445 = vunpack.c.l.b16 %v201
  %v446 = vunpack.c.l.b16 %v202
  %v447 = vunpack.c.l.b16 %v203
  %v448 = vunpack.c.l.b16 %v204
  %v449 = vunpack.c.l.b16 %v205
  %v450 = vunpack.c.l.b16 %v206
  %v451 = vunpack.c.l.b16 %v207
  %v452 = vunpack.c.l.b16 %v208
  %v453 = vunpack.c.l.b16 %v209
  %v454 = vunpack.c.l.b16 %v210
  %v455 = vpack.c.b16 %v432, %v431
  %v456 = vpack.c.b16 %v434, %v433
  %v457 = vpack.c.b16 %v436, %v435
  %v458 = vpack.c.b16 %v438, %v437
  %v459 = vpack.c.b16 %v440, %v439
  %v460 = vpack.c.b16 %v442, %v441
  %v461 = vpack.c.b16 %v444, %v443
  %v462 = vpack.c.b16 %v446, %v445
  %v463 = vpack.c.b16 %v448, %v447
  %v464 = vpack.c.b16 %v450, %v449
  %v465 = vpack.c.b16 %v452, %v451
  %v466 = vpack.c.b16 %v454, %v453
  %v480 = vsel %vm363, %v186, 0
  %482 = vmatprep.subr.bf16.mxu0 0
  %483 = vmatpush1.bf16.msra.mxu0 %v455
  %484 = vmatprep.subr.bf16.mxu0 0
  %485 = vmatpush1.bf16.msra.mxu0 %v456
  %486 = vmatprep.subr.bf16.mxu0 0
  %487 = vmatpush1.bf16.msra.mxu0 %v457
  %488 = vmatprep.subr.bf16.mxu0 0
  %489 = vmatpush1.bf16.msra.mxu0 %v458
  %490 = vmatprep.subr.bf16.mxu0 0
  %491 = vmatpush1.bf16.msra.mxu0 %v459
  %492 = vmatprep.subr.bf16.mxu0 0
  %493 = vmatpush1.bf16.msra.mxu0 %v460
  %494 = vmatprep.subr.bf16.mxu0 0
  %495 = vmatpush1.bf16.msra.mxu0 %v461
  %496 = vmatprep.subr.bf16.mxu0 0
  %497 = vmatpush1.bf16.msra.mxu0 %v462
  %498 = vmatprep.subr.bf16.mxu0 0
  %499 = vmatpush1.bf16.msra.mxu0 %v463
  %500 = vmatprep.subr.bf16.mxu0 0
  %501 = vmatpush1.bf16.msra.mxu0 %v464
  %502 = vmatprep.subr.bf16.mxu0 0
  %503 = vmatpush1.bf16.msra.mxu0 %v465
  %504 = vmatprep.subr.bf16.mxu0 0
  %505 = vmatpush1.bf16.msra.mxu0 %v466
  %506 = vmatprep.subr.bf16.mxu0 0
  %507 = vmatpush1.bf16.msra.mxu0 0
  %508 = vmatprep.subr.bf16.mxu0 0
  %509 = vmatpush1.bf16.msra.mxu0 0
  %510 = vmatprep.subr.bf16.mxu0 0
  %511 = vmatpush1.bf16.msra.mxu0 0
  %512 = vmatprep.subr.bf16.mxu0 0
  %513 = vmatpush1.bf16.msra.mxu0 0
  %514 = vmatprep.mubr.bf16.mxu0 %v480
  %515 = vmatmul.mubr.bf16.gmra.mrb[0].mxu0 %v185
  %v516 = vpop.f32.mrb[0].mxu0
  %v517 = vadd.f32 %v402, %v516
  %v518 = vpop.f32.mrb[0].mxu0
  %v519 = vpop.f32.mrb[0].mxu0
  %v520 = vpop.f32.mrb[0].mxu0
  %521 = vdwg.mxu0
  %522 = vrot.lane.b32.xlu0 %v40, 72
  %v523 = vpop.permute.xlu0 %522
  %524 = vrot.lane.b32.xlu0 %v41, 72
  %v525 = vpop.permute.xlu0 %524
  %vm526 = vcmask 588800
  %v527 = vsel %vm526, %v523, %v525
  %v530 = vsel %vm131, %v525, 0
  %532 = vmatprep.subr.bf16.mxu0 %v98
  %533 = vmatpush1.bf16.msra.mxu0 %v97
  %534 = vmatprep.subr.bf16.mxu0 %v100
  %535 = vmatpush1.bf16.msra.mxu0 %v99
  %536 = vmatprep.subr.bf16.mxu0 %v102
  %537 = vmatpush1.bf16.msra.mxu0 %v101
  %538 = vmatprep.subr.bf16.mxu0 %v104
  %539 = vmatpush1.bf16.msra.mxu0 %v103
  %540 = vmatprep.subr.bf16.mxu0 %v106
  %541 = vmatpush1.bf16.msra.mxu0 %v105
  %542 = vmatprep.subr.bf16.mxu0 %v108
  %543 = vmatpush1.bf16.msra.mxu0 %v107
  %544 = vmatprep.subr.bf16.mxu0 %v110
  %545 = vmatpush1.bf16.msra.mxu0 %v109
  %546 = vmatprep.subr.bf16.mxu0 %v112
  %547 = vmatpush1.bf16.msra.mxu0 %v111
  %548 = vmatprep.subr.bf16.mxu0 %v140
  %549 = vmatpush1.bf16.msra.mxu0 %v137
  %550 = vmatprep.subr.bf16.mxu0 0
  %551 = vmatpush1.bf16.msra.mxu0 0
  %552 = vmatprep.subr.bf16.mxu0 0
  %553 = vmatpush1.bf16.msra.mxu0 0
  %554 = vmatprep.subr.bf16.mxu0 0
  %555 = vmatpush1.bf16.msra.mxu0 0
  %556 = vmatprep.subr.bf16.mxu0 0
  %557 = vmatpush1.bf16.msra.mxu0 0
  %558 = vmatprep.subr.bf16.mxu0 0
  %559 = vmatpush1.bf16.msra.mxu0 0
  %560 = vmatprep.subr.bf16.mxu0 0
  %561 = vmatpush1.bf16.msra.mxu0 0
  %562 = vmatprep.subr.bf16.mxu0 0
  %563 = vmatpush1.bf16.msra.mxu0 0
  %564 = vmatprep.mubr.bf16.mxu0 %v530
  %565 = vmatmul.mubr.bf16.gmra.mrb[0].mxu0 %v527
  %v566 = vpop.f32.mrb[0].mxu0
  %v567 = vadd.f32 0.0, %v566
  %v568 = vpop.f32.mrb[0].mxu0
  %v569 = vadd.f32 0.0, %v568
  %v570 = vpop.f32.mrb[0].mxu0
  %v571 = vpop.f32.mrb[0].mxu0
  %572 = vdwg.mxu0
  %v573 = vmax.f32 %v567, 0.0
  %v574 = vmax.f32 %v569, 0.0
  %v575 = vpack.c.bf16 %v573, %v573
  %v576 = vpack.c.bf16 %v574, %v574
  %s577 = scalar_lea.vmem %s2, 192
  %v578 = vld [vmem:[%s577] sm:$0xf]
  %v579 = vld [vmem:[%s577 + $0x4] sm:$0xf]
  %v580 = vld [vmem:[%s577 + $0x8] sm:$0xf]
  %v581 = vld [vmem:[%s577 + $0xc] sm:$0xf]
  %v582 = vld [vmem:[%s577 + $0x10] sm:$0xf]
  %v583 = vld [vmem:[%s577 + $0x14] sm:$0xf]
  %v584 = vld [vmem:[%s577 + $0x18] sm:$0xf]
  %v585 = vld [vmem:[%s577 + $0x1c] sm:$0xf]
  %v586 = vld [vmem:[%s577 + $0x20] sm:$0xf]
  %v587 = vld [vmem:[%s577 + $0x24] sm:$0xf]
  %v588 = vld [vmem:[%s577 + $0x28] sm:$0xf]
  %v589 = vld [vmem:[%s577 + $0x2c] sm:$0xf]
  %v590 = vld [vmem:[%s577 + $0x30] sm:$0xf]
  %v591 = vld [vmem:[%s577 + $0x34] sm:$0xf]
  %v592 = vld [vmem:[%s577 + $0x38] sm:$0xf]
  %v593 = vld [vmem:[%s577 + $0x3c] sm:$0xf]
  %v594 = vld [vmem:[%s577 + $0x40] sm:$0xf]
  %v595 = vld [vmem:[%s577 + $0x44] sm:$0xf]
  %v596 = vld [vmem:[%s577 + $0x48] sm:$0xf]
  %v597 = vld [vmem:[%s577 + $0x4c] sm:$0xf]
  %v598 = vld [vmem:[%s577 + $0x50] sm:$0xf]
  %v599 = vld [vmem:[%s577 + $0x54] sm:$0xf]
  %v600 = vld [vmem:[%s577 + $0x58] sm:$0xf]
  %v601 = vld [vmem:[%s577 + $0x5c] sm:$0xf]
  %v626 = vunpack.c.l.b16 %v578
  %v627 = vunpack.c.l.b16 %v579
  %v628 = vunpack.c.l.b16 %v580
  %v629 = vunpack.c.l.b16 %v581
  %v630 = vunpack.c.l.b16 %v582
  %v631 = vunpack.c.l.b16 %v583
  %v632 = vunpack.c.l.b16 %v584
  %v633 = vunpack.c.l.b16 %v585
  %v634 = vunpack.c.l.b16 %v586
  %v635 = vunpack.c.l.b16 %v587
  %v636 = vunpack.c.l.b16 %v588
  %v637 = vunpack.c.l.b16 %v589
  %v638 = vunpack.c.l.b16 %v590
  %v639 = vunpack.c.l.b16 %v591
  %v640 = vunpack.c.l.b16 %v592
  %v641 = vunpack.c.l.b16 %v593
  %v642 = vunpack.c.l.b16 %v594
  %v643 = vunpack.c.l.b16 %v595
  %v644 = vunpack.c.l.b16 %v596
  %v645 = vunpack.c.l.b16 %v597
  %v646 = vunpack.c.l.b16 %v598
  %v647 = vunpack.c.l.b16 %v599
  %v648 = vunpack.c.l.b16 %v600
  %v649 = vunpack.c.l.b16 %v601
  %v650 = vpack.c.b16 %v627, %v626
  %v651 = vpack.c.b16 %v629, %v628
  %v652 = vpack.c.b16 %v631, %v630
  %v653 = vpack.c.b16 %v633, %v632
  %v654 = vpack.c.b16 %v635, %v634
  %v655 = vpack.c.b16 %v637, %v636
  %v656 = vpack.c.b16 %v639, %v638
  %v657 = vpack.c.b16 %v641, %v640
  %v658 = vpack.c.b16 %v643, %v642
  %v659 = vpack.c.b16 %v645, %v644
  %v660 = vpack.c.b16 %v647, %v646
  %v661 = vpack.c.b16 %v649, %v648
  %v675 = vsel %vm363, %v576, 0
  %677 = vmatprep.subr.bf16.mxu0 0
  %678 = vmatpush1.bf16.msra.mxu0 %v650
  %679 = vmatprep.subr.bf16.mxu0 0
  %680 = vmatpush1.bf16.msra.mxu0 %v651
  %681 = vmatprep.subr.bf16.mxu0 0
  %682 = vmatpush1.bf16.msra.mxu0 %v652
  %683 = vmatprep.subr.bf16.mxu0 0
  %684 = vmatpush1.bf16.msra.mxu0 %v653
  %685 = vmatprep.subr.bf16.mxu0 0
  %686 = vmatpush1.bf16.msra.mxu0 %v654
  %687 = vmatprep.subr.bf16.mxu0 0
  %688 = vmatpush1.bf16.msra.mxu0 %v655
  %689 = vmatprep.subr.bf16.mxu0 0
  %690 = vmatpush1.bf16.msra.mxu0 %v656
  %691 = vmatprep.subr.bf16.mxu0 0
  %692 = vmatpush1.bf16.msra.mxu0 %v657
  %693 = vmatprep.subr.bf16.mxu0 0
  %694 = vmatpush1.bf16.msra.mxu0 %v658
  %695 = vmatprep.subr.bf16.mxu0 0
  %696 = vmatpush1.bf16.msra.mxu0 %v659
  %697 = vmatprep.subr.bf16.mxu0 0
  %698 = vmatpush1.bf16.msra.mxu0 %v660
  %699 = vmatprep.subr.bf16.mxu0 0
  %700 = vmatpush1.bf16.msra.mxu0 %v661
  %701 = vmatprep.subr.bf16.mxu0 0
  %702 = vmatpush1.bf16.msra.mxu0 0
  %703 = vmatprep.subr.bf16.mxu0 0
  %704 = vmatpush1.bf16.msra.mxu0 0
  %705 = vmatprep.subr.bf16.mxu0 0
  %706 = vmatpush1.bf16.msra.mxu0 0
  %707 = vmatprep.subr.bf16.mxu0 0
  %708 = vmatpush1.bf16.msra.mxu0 0
  %709 = vmatprep.mubr.bf16.mxu0 %v675
  %710 = vmatmul.mubr.bf16.gmra.mrb[0].mxu0 %v575
  %v711 = vpop.f32.mrb[0].mxu0
  %v712 = vadd.f32 0.0, %v711
  %v713 = vpop.f32.mrb[0].mxu0
  %v714 = vpop.f32.mrb[0].mxu0
  %v715 = vpop.f32.mrb[0].mxu0
  %716 = vdwg.mxu0
  %v717 = vadd.f32 %v517, %v712
  %718 = vrot.lane.b32.xlu0 %v40, 44
  %v719 = vpop.permute.xlu0 %718
  %720 = vrot.lane.b32.xlu0 %v41, 44
  %v721 = vpop.permute.xlu0 %720
  %vm722 = vcmask 359424
  %v723 = vsel %vm722, %v719, %v721
  %v726 = vsel %vm131, %v721, 0
  %728 = vmatprep.subr.bf16.mxu0 %v98
  %729 = vmatpush1.bf16.msra.mxu0 %v97
  %730 = vmatprep.subr.bf16.mxu0 %v100
  %731 = vmatpush1.bf16.msra.mxu0 %v99
  %732 = vmatprep.subr.bf16.mxu0 %v102
  %733 = vmatpush1.bf16.msra.mxu0 %v101
  %734 = vmatprep.subr.bf16.mxu0 %v104
  %735 = vmatpush1.bf16.msra.mxu0 %v103
  %736 = vmatprep.subr.bf16.mxu0 %v106
  %737 = vmatpush1.bf16.msra.mxu0 %v105
  %738 = vmatprep.subr.bf16.mxu0 %v108
  %739 = vmatpush1.bf16.msra.mxu0 %v107
  %740 = vmatprep.subr.bf16.mxu0 %v110
  %741 = vmatpush1.bf16.msra.mxu0 %v109
  %742 = vmatprep.subr.bf16.mxu0 %v112
  %743 = vmatpush1.bf16.msra.mxu0 %v111
  %744 = vmatprep.subr.bf16.mxu0 %v140
  %745 = vmatpush1.bf16.msra.mxu0 %v137
  %746 = vmatprep.subr.bf16.mxu0 0
  %747 = vmatpush1.bf16.msra.mxu0 0
  %748 = vmatprep.subr.bf16.mxu0 0
  %749 = vmatpush1.bf16.msra.mxu0 0
  %750 = vmatprep.subr.bf16.mxu0 0
  %751 = vmatpush1.bf16.msra.mxu0 0
  %752 = vmatprep.subr.bf16.mxu0 0
  %753 = vmatpush1.bf16.msra.mxu0 0
  %754 = vmatprep.subr.bf16.mxu0 0
  %755 = vmatpush1.bf16.msra.mxu0 0
  %756 = vmatprep.subr.bf16.mxu0 0
  %757 = vmatpush1.bf16.msra.mxu0 0
  %758 = vmatprep.subr.bf16.mxu0 0
  %759 = vmatpush1.bf16.msra.mxu0 0
  %760 = vmatprep.mubr.bf16.mxu0 %v726
  %761 = vmatmul.mubr.bf16.gmra.mrb[0].mxu0 %v723
  %v762 = vpop.f32.mrb[0].mxu0
  %v763 = vadd.f32 0.0, %v762
  %v764 = vpop.f32.mrb[0].mxu0
  %v765 = vadd.f32 0.0, %v764
  %v766 = vpop.f32.mrb[0].mxu0
  %v767 = vpop.f32.mrb[0].mxu0
  %768 = vdwg.mxu0
  %v769 = vmax.f32 %v763, 0.0
  %v770 = vmax.f32 %v765, 0.0
  %v771 = vpack.c.bf16 %v769, %v769
  %v772 = vpack.c.bf16 %v770, %v770
  %s773 = scalar_lea.vmem %s2, 288
  %v774 = vld [vmem:[%s773] sm:$0xf]
  %v775 = vld [vmem:[%s773 + $0x4] sm:$0xf]
  %v776 = vld [vmem:[%s773 + $0x8] sm:$0xf]
  %v777 = vld [vmem:[%s773 + $0xc] sm:$0xf]
  %v778 = vld [vmem:[%s773 + $0x10] sm:$0xf]
  %v779 = vld [vmem:[%s773 + $0x14] sm:$0xf]
  %v780 = vld [vmem:[%s773 + $0x18] sm:$0xf]
  %v781 = vld [vmem:[%s773 + $0x1c] sm:$0xf]
  %v782 = vld [vmem:[%s773 + $0x20] sm:$0xf]
  %v783 = vld [vmem:[%s773 + $0x24] sm:$0xf]
  %v784 = vld [vmem:[%s773 + $0x28] sm:$0xf]
  %v785 = vld [vmem:[%s773 + $0x2c] sm:$0xf]
  %v786 = vld [vmem:[%s773 + $0x30] sm:$0xf]
  %v787 = vld [vmem:[%s773 + $0x34] sm:$0xf]
  %v788 = vld [vmem:[%s773 + $0x38] sm:$0xf]
  %v789 = vld [vmem:[%s773 + $0x3c] sm:$0xf]
  %v790 = vld [vmem:[%s773 + $0x40] sm:$0xf]
  %v791 = vld [vmem:[%s773 + $0x44] sm:$0xf]
  %v792 = vld [vmem:[%s773 + $0x48] sm:$0xf]
  %v793 = vld [vmem:[%s773 + $0x4c] sm:$0xf]
  %v794 = vld [vmem:[%s773 + $0x50] sm:$0xf]
  %v795 = vld [vmem:[%s773 + $0x54] sm:$0xf]
  %v796 = vld [vmem:[%s773 + $0x58] sm:$0xf]
  %v797 = vld [vmem:[%s773 + $0x5c] sm:$0xf]
  %v822 = vunpack.c.l.b16 %v774
  %v823 = vunpack.c.l.b16 %v775
  %v824 = vunpack.c.l.b16 %v776
  %v825 = vunpack.c.l.b16 %v777
  %v826 = vunpack.c.l.b16 %v778
  %v827 = vunpack.c.l.b16 %v779
  %v828 = vunpack.c.l.b16 %v780
  %v829 = vunpack.c.l.b16 %v781
  %v830 = vunpack.c.l.b16 %v782
  %v831 = vunpack.c.l.b16 %v783
  %v832 = vunpack.c.l.b16 %v784
  %v833 = vunpack.c.l.b16 %v785
  %v834 = vunpack.c.l.b16 %v786
  %v835 = vunpack.c.l.b16 %v787
  %v836 = vunpack.c.l.b16 %v788
  %v837 = vunpack.c.l.b16 %v789
  %v838 = vunpack.c.l.b16 %v790
  %v839 = vunpack.c.l.b16 %v791
  %v840 = vunpack.c.l.b16 %v792
  %v841 = vunpack.c.l.b16 %v793
  %v842 = vunpack.c.l.b16 %v794
  %v843 = vunpack.c.l.b16 %v795
  %v844 = vunpack.c.l.b16 %v796
  %v845 = vunpack.c.l.b16 %v797
  %v846 = vpack.c.b16 %v823, %v822
  %v847 = vpack.c.b16 %v825, %v824
  %v848 = vpack.c.b16 %v827, %v826
  %v849 = vpack.c.b16 %v829, %v828
  %v850 = vpack.c.b16 %v831, %v830
  %v851 = vpack.c.b16 %v833, %v832
  %v852 = vpack.c.b16 %v835, %v834
  %v853 = vpack.c.b16 %v837, %v836
  %v854 = vpack.c.b16 %v839, %v838
  %v855 = vpack.c.b16 %v841, %v840
  %v856 = vpack.c.b16 %v843, %v842
  %v857 = vpack.c.b16 %v845, %v844
  %v871 = vsel %vm363, %v772, 0
  %873 = vmatprep.subr.bf16.mxu0 0
  %874 = vmatpush1.bf16.msra.mxu0 %v846
  %875 = vmatprep.subr.bf16.mxu0 0
  %876 = vmatpush1.bf16.msra.mxu0 %v847
  %877 = vmatprep.subr.bf16.mxu0 0
  %878 = vmatpush1.bf16.msra.mxu0 %v848
  %879 = vmatprep.subr.bf16.mxu0 0
  %880 = vmatpush1.bf16.msra.mxu0 %v849
  %881 = vmatprep.subr.bf16.mxu0 0
  %882 = vmatpush1.bf16.msra.mxu0 %v850
  %883 = vmatprep.subr.bf16.mxu0 0
  %884 = vmatpush1.bf16.msra.mxu0 %v851
  %885 = vmatprep.subr.bf16.mxu0 0
  %886 = vmatpush1.bf16.msra.mxu0 %v852
  %887 = vmatprep.subr.bf16.mxu0 0
  %888 = vmatpush1.bf16.msra.mxu0 %v853
  %889 = vmatprep.subr.bf16.mxu0 0
  %890 = vmatpush1.bf16.msra.mxu0 %v854
  %891 = vmatprep.subr.bf16.mxu0 0
  %892 = vmatpush1.bf16.msra.mxu0 %v855
  %893 = vmatprep.subr.bf16.mxu0 0
  %894 = vmatpush1.bf16.msra.mxu0 %v856
  %895 = vmatprep.subr.bf16.mxu0 0
  %896 = vmatpush1.bf16.msra.mxu0 %v857
  %897 = vmatprep.subr.bf16.mxu0 0
  %898 = vmatpush1.bf16.msra.mxu0 0
  %899 = vmatprep.subr.bf16.mxu0 0
  %900 = vmatpush1.bf16.msra.mxu0 0
  %901 = vmatprep.subr.bf16.mxu0 0
  %902 = vmatpush1.bf16.msra.mxu0 0
  %903 = vmatprep.subr.bf16.mxu0 0
  %904 = vmatpush1.bf16.msra.mxu0 0
  %905 = vmatprep.mubr.bf16.mxu0 %v871
  %906 = vmatmul.mubr.bf16.gmra.mrb[0].mxu0 %v771
  %v907 = vpop.f32.mrb[0].mxu0
  %v908 = vadd.f32 0.0, %v907
  %v909 = vpop.f32.mrb[0].mxu0
  %v910 = vpop.f32.mrb[0].mxu0
  %v911 = vpop.f32.mrb[0].mxu0
  %912 = vdwg.mxu0
  %v913 = vadd.f32 %v717, %v908
  %914 = vrot.lane.b32.xlu0 %v40, 16
  %v915 = vpop.permute.xlu0 %914
  %916 = vrot.lane.b32.xlu0 %v41, 16
  %v917 = vpop.permute.xlu0 %916
  %vm918 = vcmask 130048
  %v919 = vsel %vm918, %v915, %v917
  %v922 = vsel %vm131, %v917, 0
  %924 = vmatprep.subr.bf16.mxu0 %v98
  %925 = vmatpush1.bf16.msra.mxu0 %v97
  %926 = vmatprep.subr.bf16.mxu0 %v100
  %927 = vmatpush1.bf16.msra.mxu0 %v99
  %928 = vmatprep.subr.bf16.mxu0 %v102
  %929 = vmatpush1.bf16.msra.mxu0 %v101
  %930 = vmatprep.subr.bf16.mxu0 %v104
  %931 = vmatpush1.bf16.msra.mxu0 %v103
  %932 = vmatprep.subr.bf16.mxu0 %v106
  %933 = vmatpush1.bf16.msra.mxu0 %v105
  %934 = vmatprep.subr.bf16.mxu0 %v108
  %935 = vmatpush1.bf16.msra.mxu0 %v107
  %936 = vmatprep.subr.bf16.mxu0 %v110
  %937 = vmatpush1.bf16.msra.mxu0 %v109
  %938 = vmatprep.subr.bf16.mxu0 %v112
  %939 = vmatpush1.bf16.msra.mxu0 %v111
  %940 = vmatprep.subr.bf16.mxu0 %v140
  %941 = vmatpush1.bf16.msra.mxu0 %v137
  %942 = vmatprep.subr.bf16.mxu0 0
  %943 = vmatpush1.bf16.msra.mxu0 0
  %944 = vmatprep.subr.bf16.mxu0 0
  %945 = vmatpush1.bf16.msra.mxu0 0
  %946 = vmatprep.subr.bf16.mxu0 0
  %947 = vmatpush1.bf16.msra.mxu0 0
  %948 = vmatprep.subr.bf16.mxu0 0
  %949 = vmatpush1.bf16.msra.mxu0 0
  %950 = vmatprep.subr.bf16.mxu0 0
  %951 = vmatpush1.bf16.msra.mxu0 0
  %952 = vmatprep.subr.bf16.mxu0 0
  %953 = vmatpush1.bf16.msra.mxu0 0
  %954 = vmatprep.subr.bf16.mxu0 0
  %955 = vmatpush1.bf16.msra.mxu0 0
  %956 = vmatprep.mubr.bf16.mxu0 %v922
  %957 = vmatmul.mubr.bf16.gmra.mrb[0].mxu0 %v919
  %v958 = vpop.f32.mrb[0].mxu0
  %v959 = vadd.f32 0.0, %v958
  %v960 = vpop.f32.mrb[0].mxu0
  %v961 = vadd.f32 0.0, %v960
  %v962 = vpop.f32.mrb[0].mxu0
  %v963 = vpop.f32.mrb[0].mxu0
  %964 = vdwg.mxu0
  %v965 = vmax.f32 %v959, 0.0
  %v966 = vmax.f32 %v961, 0.0
  %v967 = vpack.c.bf16 %v965, %v965
  %v968 = vpack.c.bf16 %v966, %v966
  %s969 = scalar_lea.vmem %s2, 384
  %v970 = vld [vmem:[%s969] sm:$0xf]
  %v971 = vld [vmem:[%s969 + $0x4] sm:$0xf]
  %v972 = vld [vmem:[%s969 + $0x8] sm:$0xf]
  %v973 = vld [vmem:[%s969 + $0xc] sm:$0xf]
  %v974 = vld [vmem:[%s969 + $0x10] sm:$0xf]
  %v975 = vld [vmem:[%s969 + $0x14] sm:$0xf]
  %v976 = vld [vmem:[%s969 + $0x18] sm:$0xf]
  %v977 = vld [vmem:[%s969 + $0x1c] sm:$0xf]
  %v978 = vld [vmem:[%s969 + $0x20] sm:$0xf]
  %v979 = vld [vmem:[%s969 + $0x24] sm:$0xf]
  %v980 = vld [vmem:[%s969 + $0x28] sm:$0xf]
  %v981 = vld [vmem:[%s969 + $0x2c] sm:$0xf]
  %v982 = vld [vmem:[%s969 + $0x30] sm:$0xf]
  %v983 = vld [vmem:[%s969 + $0x34] sm:$0xf]
  %v984 = vld [vmem:[%s969 + $0x38] sm:$0xf]
  %v985 = vld [vmem:[%s969 + $0x3c] sm:$0xf]
  %v986 = vld [vmem:[%s969 + $0x40] sm:$0xf]
  %v987 = vld [vmem:[%s969 + $0x44] sm:$0xf]
  %v988 = vld [vmem:[%s969 + $0x48] sm:$0xf]
  %v989 = vld [vmem:[%s969 + $0x4c] sm:$0xf]
  %v990 = vld [vmem:[%s969 + $0x50] sm:$0xf]
  %v991 = vld [vmem:[%s969 + $0x54] sm:$0xf]
  %v992 = vld [vmem:[%s969 + $0x58] sm:$0xf]
  %v993 = vld [vmem:[%s969 + $0x5c] sm:$0xf]
  %v1018 = vunpack.c.l.b16 %v970
  %v1019 = vunpack.c.l.b16 %v971
  %v1020 = vunpack.c.l.b16 %v972
  %v1021 = vunpack.c.l.b16 %v973
  %v1022 = vunpack.c.l.b16 %v974
  %v1023 = vunpack.c.l.b16 %v975
  %v1024 = vunpack.c.l.b16 %v976
  %v1025 = vunpack.c.l.b16 %v977
  %v1026 = vunpack.c.l.b16 %v978
  %v1027 = vunpack.c.l.b16 %v979
  %v1028 = vunpack.c.l.b16 %v980
  %v1029 = vunpack.c.l.b16 %v981
  %v1030 = vunpack.c.l.b16 %v982
  %v1031 = vunpack.c.l.b16 %v983
  %v1032 = vunpack.c.l.b16 %v984
  %v1033 = vunpack.c.l.b16 %v985
  %v1034 = vunpack.c.l.b16 %v986
  %v1035 = vunpack.c.l.b16 %v987
  %v1036 = vunpack.c.l.b16 %v988
  %v1037 = vunpack.c.l.b16 %v989
  %v1038 = vunpack.c.l.b16 %v990
  %v1039 = vunpack.c.l.b16 %v991
  %v1040 = vunpack.c.l.b16 %v992
  %v1041 = vunpack.c.l.b16 %v993
  %v1042 = vpack.c.b16 %v1019, %v1018
  %v1043 = vpack.c.b16 %v1021, %v1020
  %v1044 = vpack.c.b16 %v1023, %v1022
  %v1045 = vpack.c.b16 %v1025, %v1024
  %v1046 = vpack.c.b16 %v1027, %v1026
  %v1047 = vpack.c.b16 %v1029, %v1028
  %v1048 = vpack.c.b16 %v1031, %v1030
  %v1049 = vpack.c.b16 %v1033, %v1032
  %v1050 = vpack.c.b16 %v1035, %v1034
  %v1051 = vpack.c.b16 %v1037, %v1036
  %v1052 = vpack.c.b16 %v1039, %v1038
  %v1053 = vpack.c.b16 %v1041, %v1040
  %v1067 = vsel %vm363, %v968, 0
  %1069 = vmatprep.subr.bf16.mxu0 0
  %1070 = vmatpush1.bf16.msra.mxu0 %v1042
  %1071 = vmatprep.subr.bf16.mxu0 0
  %1072 = vmatpush1.bf16.msra.mxu0 %v1043
  %1073 = vmatprep.subr.bf16.mxu0 0
  %1074 = vmatpush1.bf16.msra.mxu0 %v1044
  %1075 = vmatprep.subr.bf16.mxu0 0
  %1076 = vmatpush1.bf16.msra.mxu0 %v1045
  %1077 = vmatprep.subr.bf16.mxu0 0
  %1078 = vmatpush1.bf16.msra.mxu0 %v1046
  %1079 = vmatprep.subr.bf16.mxu0 0
  %1080 = vmatpush1.bf16.msra.mxu0 %v1047
  %1081 = vmatprep.subr.bf16.mxu0 0
  %1082 = vmatpush1.bf16.msra.mxu0 %v1048
  %1083 = vmatprep.subr.bf16.mxu0 0
  %1084 = vmatpush1.bf16.msra.mxu0 %v1049
  %1085 = vmatprep.subr.bf16.mxu0 0
  %1086 = vmatpush1.bf16.msra.mxu0 %v1050
  %1087 = vmatprep.subr.bf16.mxu0 0
  %1088 = vmatpush1.bf16.msra.mxu0 %v1051
  %1089 = vmatprep.subr.bf16.mxu0 0
  %1090 = vmatpush1.bf16.msra.mxu0 %v1052
  %1091 = vmatprep.subr.bf16.mxu0 0
  %1092 = vmatpush1.bf16.msra.mxu0 %v1053
  %1093 = vmatprep.subr.bf16.mxu0 0
  %1094 = vmatpush1.bf16.msra.mxu0 0
  %1095 = vmatprep.subr.bf16.mxu0 0
  %1096 = vmatpush1.bf16.msra.mxu0 0
  %1097 = vmatprep.subr.bf16.mxu0 0
  %1098 = vmatpush1.bf16.msra.mxu0 0
  %1099 = vmatprep.subr.bf16.mxu0 0
  %1100 = vmatpush1.bf16.msra.mxu0 0
  %1101 = vmatprep.mubr.bf16.mxu0 %v1067
  %1102 = vmatmul.mubr.bf16.gmra.mrb[0].mxu0 %v967
  %v1103 = vpop.f32.mrb[0].mxu0
  %v1104 = vadd.f32 0.0, %v1103
  %v1105 = vpop.f32.mrb[0].mxu0
  %v1106 = vpop.f32.mrb[0].mxu0
  %v1107 = vpop.f32.mrb[0].mxu0
  %1108 = vdwg.mxu0
  %v1109 = vadd.f32 %v913, %v1104
  %v1110 = vld [vmem:[%s0 + $0x4] sm:$0xff]
  %v1112 = vunpack.c.l.b16 %v1110
  %v1113 = vunpack.c.h.b16 %v1110
  %v1114 = vpack.c.b16 %v1112, %v1112
  %v1115 = vpack.c.b16 %v1113, %v1113
  %1116 = vrot.lane.b32.xlu0 %v1114, 116
  %v1117 = vpop.permute.xlu0 %1116
  %1118 = vrot.lane.b32.xlu0 %v1115, 116
  %v1119 = vpop.permute.xlu0 %1118
  %vm1120 = vcmask 949248
  %v1121 = vsel %vm1120, %v1117, %v1119
  %v1124 = vsel %vm131, %v1119, 0
  %1126 = vmatprep.subr.bf16.mxu0 %v98
  %1127 = vmatpush1.bf16.msra.mxu0 %v97
  %1128 = vmatprep.subr.bf16.mxu0 %v100
  %1129 = vmatpush1.bf16.msra.mxu0 %v99
  %1130 = vmatprep.subr.bf16.mxu0 %v102
  %1131 = vmatpush1.bf16.msra.mxu0 %v101
  %1132 = vmatprep.subr.bf16.mxu0 %v104
  %1133 = vmatpush1.bf16.msra.mxu0 %v103
  %1134 = vmatprep.subr.bf16.mxu0 %v106
  %1135 = vmatpush1.bf16.msra.mxu0 %v105
  %1136 = vmatprep.subr.bf16.mxu0 %v108
  %1137 = vmatpush1.bf16.msra.mxu0 %v107
  %1138 = vmatprep.subr.bf16.mxu0 %v110
  %1139 = vmatpush1.bf16.msra.mxu0 %v109
  %1140 = vmatprep.subr.bf16.mxu0 %v112
  %1141 = vmatpush1.bf16.msra.mxu0 %v111
  %1142 = vmatprep.subr.bf16.mxu0 %v140
  %1143 = vmatpush1.bf16.msra.mxu0 %v137
  %1144 = vmatprep.subr.bf16.mxu0 0
  %1145 = vmatpush1.bf16.msra.mxu0 0
  %1146 = vmatprep.subr.bf16.mxu0 0
  %1147 = vmatpush1.bf16.msra.mxu0 0
  %1148 = vmatprep.subr.bf16.mxu0 0
  %1149 = vmatpush1.bf16.msra.mxu0 0
  %1150 = vmatprep.subr.bf16.mxu0 0
  %1151 = vmatpush1.bf16.msra.mxu0 0
  %1152 = vmatprep.subr.bf16.mxu0 0
  %1153 = vmatpush1.bf16.msra.mxu0 0
  %1154 = vmatprep.subr.bf16.mxu0 0
  %1155 = vmatpush1.bf16.msra.mxu0 0
  %1156 = vmatprep.subr.bf16.mxu0 0
  %1157 = vmatpush1.bf16.msra.mxu0 0
  %1158 = vmatprep.mubr.bf16.mxu0 %v1124
  %1159 = vmatmul.mubr.bf16.gmra.mrb[0].mxu0 %v1121
  %v1160 = vpop.f32.mrb[0].mxu0
  %v1161 = vadd.f32 0.0, %v1160
  %v1162 = vpop.f32.mrb[0].mxu0
  %v1163 = vadd.f32 0.0, %v1162
  %v1164 = vpop.f32.mrb[0].mxu0
  %v1165 = vpop.f32.mrb[0].mxu0
  %1166 = vdwg.mxu0
  %v1167 = vmax.f32 %v1161, 0.0
  %v1168 = vmax.f32 %v1163, 0.0
  %v1169 = vpack.c.bf16 %v1167, %v1167
  %v1170 = vpack.c.bf16 %v1168, %v1168
  %s1171 = scalar_lea.vmem %s2, 480
  %v1172 = vld [vmem:[%s1171] sm:$0xf]
  %v1173 = vld [vmem:[%s1171 + $0x4] sm:$0xf]
  %v1174 = vld [vmem:[%s1171 + $0x8] sm:$0xf]
  %v1175 = vld [vmem:[%s1171 + $0xc] sm:$0xf]
  %v1176 = vld [vmem:[%s1171 + $0x10] sm:$0xf]
  %v1177 = vld [vmem:[%s1171 + $0x14] sm:$0xf]
  %v1178 = vld [vmem:[%s1171 + $0x18] sm:$0xf]
  %v1179 = vld [vmem:[%s1171 + $0x1c] sm:$0xf]
  %v1180 = vld [vmem:[%s1171 + $0x20] sm:$0xf]
  %v1181 = vld [vmem:[%s1171 + $0x24] sm:$0xf]
  %v1182 = vld [vmem:[%s1171 + $0x28] sm:$0xf]
  %v1183 = vld [vmem:[%s1171 + $0x2c] sm:$0xf]
  %v1184 = vld [vmem:[%s1171 + $0x30] sm:$0xf]
  %v1185 = vld [vmem:[%s1171 + $0x34] sm:$0xf]
  %v1186 = vld [vmem:[%s1171 + $0x38] sm:$0xf]
  %v1187 = vld [vmem:[%s1171 + $0x3c] sm:$0xf]
  %v1188 = vld [vmem:[%s1171 + $0x40] sm:$0xf]
  %v1189 = vld [vmem:[%s1171 + $0x44] sm:$0xf]
  %v1190 = vld [vmem:[%s1171 + $0x48] sm:$0xf]
  %v1191 = vld [vmem:[%s1171 + $0x4c] sm:$0xf]
  %v1192 = vld [vmem:[%s1171 + $0x50] sm:$0xf]
  %v1193 = vld [vmem:[%s1171 + $0x54] sm:$0xf]
  %v1194 = vld [vmem:[%s1171 + $0x58] sm:$0xf]
  %v1195 = vld [vmem:[%s1171 + $0x5c] sm:$0xf]
  %v1220 = vunpack.c.l.b16 %v1172
  %v1221 = vunpack.c.l.b16 %v1173
  %v1222 = vunpack.c.l.b16 %v1174
  %v1223 = vunpack.c.l.b16 %v1175
  %v1224 = vunpack.c.l.b16 %v1176
  %v1225 = vunpack.c.l.b16 %v1177
  %v1226 = vunpack.c.l.b16 %v1178
  %v1227 = vunpack.c.l.b16 %v1179
  %v1228 = vunpack.c.l.b16 %v1180
  %v1229 = vunpack.c.l.b16 %v1181
  %v1230 = vunpack.c.l.b16 %v1182
  %v1231 = vunpack.c.l.b16 %v1183
  %v1232 = vunpack.c.l.b16 %v1184
  %v1233 = vunpack.c.l.b16 %v1185
  %v1234 = vunpack.c.l.b16 %v1186
  %v1235 = vunpack.c.l.b16 %v1187
  %v1236 = vunpack.c.l.b16 %v1188
  %v1237 = vunpack.c.l.b16 %v1189
  %v1238 = vunpack.c.l.b16 %v1190
  %v1239 = vunpack.c.l.b16 %v1191
  %v1240 = vunpack.c.l.b16 %v1192
  %v1241 = vunpack.c.l.b16 %v1193
  %v1242 = vunpack.c.l.b16 %v1194
  %v1243 = vunpack.c.l.b16 %v1195
  %v1244 = vpack.c.b16 %v1221, %v1220
  %v1245 = vpack.c.b16 %v1223, %v1222
  %v1246 = vpack.c.b16 %v1225, %v1224
  %v1247 = vpack.c.b16 %v1227, %v1226
  %v1248 = vpack.c.b16 %v1229, %v1228
  %v1249 = vpack.c.b16 %v1231, %v1230
  %v1250 = vpack.c.b16 %v1233, %v1232
  %v1251 = vpack.c.b16 %v1235, %v1234
  %v1252 = vpack.c.b16 %v1237, %v1236
  %v1253 = vpack.c.b16 %v1239, %v1238
  %v1254 = vpack.c.b16 %v1241, %v1240
  %v1255 = vpack.c.b16 %v1243, %v1242
  %v1269 = vsel %vm363, %v1170, 0
  %1271 = vmatprep.subr.bf16.mxu0 0
  %1272 = vmatpush1.bf16.msra.mxu0 %v1244
  %1273 = vmatprep.subr.bf16.mxu0 0
  %1274 = vmatpush1.bf16.msra.mxu0 %v1245
  %1275 = vmatprep.subr.bf16.mxu0 0
  %1276 = vmatpush1.bf16.msra.mxu0 %v1246
  %1277 = vmatprep.subr.bf16.mxu0 0
  %1278 = vmatpush1.bf16.msra.mxu0 %v1247
  %1279 = vmatprep.subr.bf16.mxu0 0
  %1280 = vmatpush1.bf16.msra.mxu0 %v1248
  %1281 = vmatprep.subr.bf16.mxu0 0
  %1282 = vmatpush1.bf16.msra.mxu0 %v1249
  %1283 = vmatprep.subr.bf16.mxu0 0
  %1284 = vmatpush1.bf16.msra.mxu0 %v1250
  %1285 = vmatprep.subr.bf16.mxu0 0
  %1286 = vmatpush1.bf16.msra.mxu0 %v1251
  %1287 = vmatprep.subr.bf16.mxu0 0
  %1288 = vmatpush1.bf16.msra.mxu0 %v1252
  %1289 = vmatprep.subr.bf16.mxu0 0
  %1290 = vmatpush1.bf16.msra.mxu0 %v1253
  %1291 = vmatprep.subr.bf16.mxu0 0
  %1292 = vmatpush1.bf16.msra.mxu0 %v1254
  %1293 = vmatprep.subr.bf16.mxu0 0
  %1294 = vmatpush1.bf16.msra.mxu0 %v1255
  %1295 = vmatprep.subr.bf16.mxu0 0
  %1296 = vmatpush1.bf16.msra.mxu0 0
  %1297 = vmatprep.subr.bf16.mxu0 0
  %1298 = vmatpush1.bf16.msra.mxu0 0
  %1299 = vmatprep.subr.bf16.mxu0 0
  %1300 = vmatpush1.bf16.msra.mxu0 0
  %1301 = vmatprep.subr.bf16.mxu0 0
  %1302 = vmatpush1.bf16.msra.mxu0 0
  %1303 = vmatprep.mubr.bf16.mxu0 %v1269
  %1304 = vmatmul.mubr.bf16.gmra.mrb[0].mxu0 %v1169
  %v1305 = vpop.f32.mrb[0].mxu0
  %v1306 = vadd.f32 0.0, %v1305
  %v1307 = vpop.f32.mrb[0].mxu0
  %v1308 = vpop.f32.mrb[0].mxu0
  %v1309 = vpop.f32.mrb[0].mxu0
  %1310 = vdwg.mxu0
  %v1311 = vadd.f32 %v1109, %v1306
  %1312 = vrot.lane.b32.xlu0 %v1114, 88
  %v1313 = vpop.permute.xlu0 %1312
  %1314 = vrot.lane.b32.xlu0 %v1115, 88
  %v1315 = vpop.permute.xlu0 %1314
  %vm1316 = vcmask 719872
  %v1317 = vsel %vm1316, %v1313, %v1315
  %v1320 = vsel %vm131, %v1315, 0
  %1322 = vmatprep.subr.bf16.mxu0 %v98
  %1323 = vmatpush1.bf16.msra.mxu0 %v97
  %1324 = vmatprep.subr.bf16.mxu0 %v100
  %1325 = vmatpush1.bf16.msra.mxu0 %v99
  %1326 = vmatprep.subr.bf16.mxu0 %v102
  %1327 = vmatpush1.bf16.msra.mxu0 %v101
  %1328 = vmatprep.subr.bf16.mxu0 %v104
  %1329 = vmatpush1.bf16.msra.mxu0 %v103
  %1330 = vmatprep.subr.bf16.mxu0 %v106
  %1331 = vmatpush1.bf16.msra.mxu0 %v105
  %1332 = vmatprep.subr.bf16.mxu0 %v108
  %1333 = vmatpush1.bf16.msra.mxu0 %v107
  %1334 = vmatprep.subr.bf16.mxu0 %v110
  %1335 = vmatpush1.bf16.msra.mxu0 %v109
  %1336 = vmatprep.subr.bf16.mxu0 %v112
  %1337 = vmatpush1.bf16.msra.mxu0 %v111
  %1338 = vmatprep.subr.bf16.mxu0 %v140
  %1339 = vmatpush1.bf16.msra.mxu0 %v137
  %1340 = vmatprep.subr.bf16.mxu0 0
  %1341 = vmatpush1.bf16.msra.mxu0 0
  %1342 = vmatprep.subr.bf16.mxu0 0
  %1343 = vmatpush1.bf16.msra.mxu0 0
  %1344 = vmatprep.subr.bf16.mxu0 0
  %1345 = vmatpush1.bf16.msra.mxu0 0
  %1346 = vmatprep.subr.bf16.mxu0 0
  %1347 = vmatpush1.bf16.msra.mxu0 0
  %1348 = vmatprep.subr.bf16.mxu0 0
  %1349 = vmatpush1.bf16.msra.mxu0 0
  %1350 = vmatprep.subr.bf16.mxu0 0
  %1351 = vmatpush1.bf16.msra.mxu0 0
  %1352 = vmatprep.subr.bf16.mxu0 0
  %1353 = vmatpush1.bf16.msra.mxu0 0
  %1354 = vmatprep.mubr.bf16.mxu0 %v1320
  %1355 = vmatmul.mubr.bf16.gmra.mrb[0].mxu0 %v1317
  %v1356 = vpop.f32.mrb[0].mxu0
  %v1357 = vadd.f32 0.0, %v1356
  %v1358 = vpop.f32.mrb[0].mxu0
  %v1359 = vadd.f32 0.0, %v1358
  %v1360 = vpop.f32.mrb[0].mxu0
  %v1361 = vpop.f32.mrb[0].mxu0
  %1362 = vdwg.mxu0
  %v1363 = vmax.f32 %v1357, 0.0
  %v1364 = vmax.f32 %v1359, 0.0
  %v1365 = vpack.c.bf16 %v1363, %v1363
  %v1366 = vpack.c.bf16 %v1364, %v1364
  %s1367 = scalar_lea.vmem %s2, 576
  %v1368 = vld [vmem:[%s1367] sm:$0xf]
  %v1369 = vld [vmem:[%s1367 + $0x4] sm:$0xf]
  %v1370 = vld [vmem:[%s1367 + $0x8] sm:$0xf]
  %v1371 = vld [vmem:[%s1367 + $0xc] sm:$0xf]
  %v1372 = vld [vmem:[%s1367 + $0x10] sm:$0xf]
  %v1373 = vld [vmem:[%s1367 + $0x14] sm:$0xf]
  %v1374 = vld [vmem:[%s1367 + $0x18] sm:$0xf]
  %v1375 = vld [vmem:[%s1367 + $0x1c] sm:$0xf]
  %v1376 = vld [vmem:[%s1367 + $0x20] sm:$0xf]
  %v1377 = vld [vmem:[%s1367 + $0x24] sm:$0xf]
  %v1378 = vld [vmem:[%s1367 + $0x28] sm:$0xf]
  %v1379 = vld [vmem:[%s1367 + $0x2c] sm:$0xf]
  %v1380 = vld [vmem:[%s1367 + $0x30] sm:$0xf]
  %v1381 = vld [vmem:[%s1367 + $0x34] sm:$0xf]
  %v1382 = vld [vmem:[%s1367 + $0x38] sm:$0xf]
  %v1383 = vld [vmem:[%s1367 + $0x3c] sm:$0xf]
  %v1384 = vld [vmem:[%s1367 + $0x40] sm:$0xf]
  %v1385 = vld [vmem:[%s1367 + $0x44] sm:$0xf]
  %v1386 = vld [vmem:[%s1367 + $0x48] sm:$0xf]
  %v1387 = vld [vmem:[%s1367 + $0x4c] sm:$0xf]
  %v1388 = vld [vmem:[%s1367 + $0x50] sm:$0xf]
  %v1389 = vld [vmem:[%s1367 + $0x54] sm:$0xf]
  %v1390 = vld [vmem:[%s1367 + $0x58] sm:$0xf]
  %v1391 = vld [vmem:[%s1367 + $0x5c] sm:$0xf]
  %v1416 = vunpack.c.l.b16 %v1368
  %v1417 = vunpack.c.l.b16 %v1369
  %v1418 = vunpack.c.l.b16 %v1370
  %v1419 = vunpack.c.l.b16 %v1371
  %v1420 = vunpack.c.l.b16 %v1372
  %v1421 = vunpack.c.l.b16 %v1373
  %v1422 = vunpack.c.l.b16 %v1374
  %v1423 = vunpack.c.l.b16 %v1375
  %v1424 = vunpack.c.l.b16 %v1376
  %v1425 = vunpack.c.l.b16 %v1377
  %v1426 = vunpack.c.l.b16 %v1378
  %v1427 = vunpack.c.l.b16 %v1379
  %v1428 = vunpack.c.l.b16 %v1380
  %v1429 = vunpack.c.l.b16 %v1381
  %v1430 = vunpack.c.l.b16 %v1382
  %v1431 = vunpack.c.l.b16 %v1383
  %v1432 = vunpack.c.l.b16 %v1384
  %v1433 = vunpack.c.l.b16 %v1385
  %v1434 = vunpack.c.l.b16 %v1386
  %v1435 = vunpack.c.l.b16 %v1387
  %v1436 = vunpack.c.l.b16 %v1388
  %v1437 = vunpack.c.l.b16 %v1389
  %v1438 = vunpack.c.l.b16 %v1390
  %v1439 = vunpack.c.l.b16 %v1391
  %v1440 = vpack.c.b16 %v1417, %v1416
  %v1441 = vpack.c.b16 %v1419, %v1418
  %v1442 = vpack.c.b16 %v1421, %v1420
  %v1443 = vpack.c.b16 %v1423, %v1422
  %v1444 = vpack.c.b16 %v1425, %v1424
  %v1445 = vpack.c.b16 %v1427, %v1426
  %v1446 = vpack.c.b16 %v1429, %v1428
  %v1447 = vpack.c.b16 %v1431, %v1430
  %v1448 = vpack.c.b16 %v1433, %v1432
  %v1449 = vpack.c.b16 %v1435, %v1434
  %v1450 = vpack.c.b16 %v1437, %v1436
  %v1451 = vpack.c.b16 %v1439, %v1438
  %v1465 = vsel %vm363, %v1366, 0
  %1467 = vmatprep.subr.bf16.mxu0 0
  %1468 = vmatpush1.bf16.msra.mxu0 %v1440
  %1469 = vmatprep.subr.bf16.mxu0 0
  %1470 = vmatpush1.bf16.msra.mxu0 %v1441
  %1471 = vmatprep.subr.bf16.mxu0 0
  %1472 = vmatpush1.bf16.msra.mxu0 %v1442
  %1473 = vmatprep.subr.bf16.mxu0 0
  %1474 = vmatpush1.bf16.msra.mxu0 %v1443
  %1475 = vmatprep.subr.bf16.mxu0 0
  %1476 = vmatpush1.bf16.msra.mxu0 %v1444
  %1477 = vmatprep.subr.bf16.mxu0 0
  %1478 = vmatpush1.bf16.msra.mxu0 %v1445
  %1479 = vmatprep.subr.bf16.mxu0 0
  %1480 = vmatpush1.bf16.msra.mxu0 %v1446
  %1481 = vmatprep.subr.bf16.mxu0 0
  %1482 = vmatpush1.bf16.msra.mxu0 %v1447
  %1483 = vmatprep.subr.bf16.mxu0 0
  %1484 = vmatpush1.bf16.msra.mxu0 %v1448
  %1485 = vmatprep.subr.bf16.mxu0 0
  %1486 = vmatpush1.bf16.msra.mxu0 %v1449
  %1487 = vmatprep.subr.bf16.mxu0 0
  %1488 = vmatpush1.bf16.msra.mxu0 %v1450
  %1489 = vmatprep.subr.bf16.mxu0 0
  %1490 = vmatpush1.bf16.msra.mxu0 %v1451
  %1491 = vmatprep.subr.bf16.mxu0 0
  %1492 = vmatpush1.bf16.msra.mxu0 0
  %1493 = vmatprep.subr.bf16.mxu0 0
  %1494 = vmatpush1.bf16.msra.mxu0 0
  %1495 = vmatprep.subr.bf16.mxu0 0
  %1496 = vmatpush1.bf16.msra.mxu0 0
  %1497 = vmatprep.subr.bf16.mxu0 0
  %1498 = vmatpush1.bf16.msra.mxu0 0
  %1499 = vmatprep.mubr.bf16.mxu0 %v1465
  %1500 = vmatmul.mubr.bf16.gmra.mrb[0].mxu0 %v1365
  %v1501 = vpop.f32.mrb[0].mxu0
  %v1502 = vadd.f32 0.0, %v1501
  %v1503 = vpop.f32.mrb[0].mxu0
  %v1504 = vpop.f32.mrb[0].mxu0
  %v1505 = vpop.f32.mrb[0].mxu0
  %1506 = vdwg.mxu0
  %v1507 = vadd.f32 %v1311, %v1502
  %1508 = vrot.lane.b32.xlu0 %v1114, 60
  %v1509 = vpop.permute.xlu0 %1508
  %1510 = vrot.lane.b32.xlu0 %v1115, 60
  %v1511 = vpop.permute.xlu0 %1510
  %vm1512 = vcmask 490496
  %v1513 = vsel %vm1512, %v1509, %v1511
  %v1516 = vsel %vm131, %v1511, 0
  %1518 = vmatprep.subr.bf16.mxu0 %v98
  %1519 = vmatpush1.bf16.msra.mxu0 %v97
  %1520 = vmatprep.subr.bf16.mxu0 %v100
  %1521 = vmatpush1.bf16.msra.mxu0 %v99
  %1522 = vmatprep.subr.bf16.mxu0 %v102
  %1523 = vmatpush1.bf16.msra.mxu0 %v101
  %1524 = vmatprep.subr.bf16.mxu0 %v104
  %1525 = vmatpush1.bf16.msra.mxu0 %v103
  %1526 = vmatprep.subr.bf16.mxu0 %v106
  %1527 = vmatpush1.bf16.msra.mxu0 %v105
  %1528 = vmatprep.subr.bf16.mxu0 %v108
  %1529 = vmatpush1.bf16.msra.mxu0 %v107
  %1530 = vmatprep.subr.bf16.mxu0 %v110
  %1531 = vmatpush1.bf16.msra.mxu0 %v109
  %1532 = vmatprep.subr.bf16.mxu0 %v112
  %1533 = vmatpush1.bf16.msra.mxu0 %v111
  %1534 = vmatprep.subr.bf16.mxu0 %v140
  %1535 = vmatpush1.bf16.msra.mxu0 %v137
  %1536 = vmatprep.subr.bf16.mxu0 0
  %1537 = vmatpush1.bf16.msra.mxu0 0
  %1538 = vmatprep.subr.bf16.mxu0 0
  %1539 = vmatpush1.bf16.msra.mxu0 0
  %1540 = vmatprep.subr.bf16.mxu0 0
  %1541 = vmatpush1.bf16.msra.mxu0 0
  %1542 = vmatprep.subr.bf16.mxu0 0
  %1543 = vmatpush1.bf16.msra.mxu0 0
  %1544 = vmatprep.subr.bf16.mxu0 0
  %1545 = vmatpush1.bf16.msra.mxu0 0
  %1546 = vmatprep.subr.bf16.mxu0 0
  %1547 = vmatpush1.bf16.msra.mxu0 0
  %1548 = vmatprep.subr.bf16.mxu0 0
  %1549 = vmatpush1.bf16.msra.mxu0 0
  %1550 = vmatprep.mubr.bf16.mxu0 %v1516
  %1551 = vmatmul.mubr.bf16.gmra.mrb[0].mxu0 %v1513
  %v1552 = vpop.f32.mrb[0].mxu0
  %v1553 = vadd.f32 0.0, %v1552
  %v1554 = vpop.f32.mrb[0].mxu0
  %v1555 = vadd.f32 0.0, %v1554
  %v1556 = vpop.f32.mrb[0].mxu0
  %v1557 = vpop.f32.mrb[0].mxu0
  %1558 = vdwg.mxu0
  %v1559 = vmax.f32 %v1553, 0.0
  %v1560 = vmax.f32 %v1555, 0.0
  %v1561 = vpack.c.bf16 %v1559, %v1559
  %v1562 = vpack.c.bf16 %v1560, %v1560
  %s1563 = scalar_lea.vmem %s2, 672
  %v1564 = vld [vmem:[%s1563] sm:$0xf]
  %v1565 = vld [vmem:[%s1563 + $0x4] sm:$0xf]
  %v1566 = vld [vmem:[%s1563 + $0x8] sm:$0xf]
  %v1567 = vld [vmem:[%s1563 + $0xc] sm:$0xf]
  %v1568 = vld [vmem:[%s1563 + $0x10] sm:$0xf]
  %v1569 = vld [vmem:[%s1563 + $0x14] sm:$0xf]
  %v1570 = vld [vmem:[%s1563 + $0x18] sm:$0xf]
  %v1571 = vld [vmem:[%s1563 + $0x1c] sm:$0xf]
  %v1572 = vld [vmem:[%s1563 + $0x20] sm:$0xf]
  %v1573 = vld [vmem:[%s1563 + $0x24] sm:$0xf]
  %v1574 = vld [vmem:[%s1563 + $0x28] sm:$0xf]
  %v1575 = vld [vmem:[%s1563 + $0x2c] sm:$0xf]
  %v1576 = vld [vmem:[%s1563 + $0x30] sm:$0xf]
  %v1577 = vld [vmem:[%s1563 + $0x34] sm:$0xf]
  %v1578 = vld [vmem:[%s1563 + $0x38] sm:$0xf]
  %v1579 = vld [vmem:[%s1563 + $0x3c] sm:$0xf]
  %v1580 = vld [vmem:[%s1563 + $0x40] sm:$0xf]
  %v1581 = vld [vmem:[%s1563 + $0x44] sm:$0xf]
  %v1582 = vld [vmem:[%s1563 + $0x48] sm:$0xf]
  %v1583 = vld [vmem:[%s1563 + $0x4c] sm:$0xf]
  %v1584 = vld [vmem:[%s1563 + $0x50] sm:$0xf]
  %v1585 = vld [vmem:[%s1563 + $0x54] sm:$0xf]
  %v1586 = vld [vmem:[%s1563 + $0x58] sm:$0xf]
  %v1587 = vld [vmem:[%s1563 + $0x5c] sm:$0xf]
  %v1612 = vunpack.c.l.b16 %v1564
  %v1613 = vunpack.c.l.b16 %v1565
  %v1614 = vunpack.c.l.b16 %v1566
  %v1615 = vunpack.c.l.b16 %v1567
  %v1616 = vunpack.c.l.b16 %v1568
  %v1617 = vunpack.c.l.b16 %v1569
  %v1618 = vunpack.c.l.b16 %v1570
  %v1619 = vunpack.c.l.b16 %v1571
  %v1620 = vunpack.c.l.b16 %v1572
  %v1621 = vunpack.c.l.b16 %v1573
  %v1622 = vunpack.c.l.b16 %v1574
  %v1623 = vunpack.c.l.b16 %v1575
  %v1624 = vunpack.c.l.b16 %v1576
  %v1625 = vunpack.c.l.b16 %v1577
  %v1626 = vunpack.c.l.b16 %v1578
  %v1627 = vunpack.c.l.b16 %v1579
  %v1628 = vunpack.c.l.b16 %v1580
  %v1629 = vunpack.c.l.b16 %v1581
  %v1630 = vunpack.c.l.b16 %v1582
  %v1631 = vunpack.c.l.b16 %v1583
  %v1632 = vunpack.c.l.b16 %v1584
  %v1633 = vunpack.c.l.b16 %v1585
  %v1634 = vunpack.c.l.b16 %v1586
  %v1635 = vunpack.c.l.b16 %v1587
  %v1636 = vpack.c.b16 %v1613, %v1612
  %v1637 = vpack.c.b16 %v1615, %v1614
  %v1638 = vpack.c.b16 %v1617, %v1616
  %v1639 = vpack.c.b16 %v1619, %v1618
  %v1640 = vpack.c.b16 %v1621, %v1620
  %v1641 = vpack.c.b16 %v1623, %v1622
  %v1642 = vpack.c.b16 %v1625, %v1624
  %v1643 = vpack.c.b16 %v1627, %v1626
  %v1644 = vpack.c.b16 %v1629, %v1628
  %v1645 = vpack.c.b16 %v1631, %v1630
  %v1646 = vpack.c.b16 %v1633, %v1632
  %v1647 = vpack.c.b16 %v1635, %v1634
  %v1661 = vsel %vm363, %v1562, 0
  %1663 = vmatprep.subr.bf16.mxu0 0
  %1664 = vmatpush1.bf16.msra.mxu0 %v1636
  %1665 = vmatprep.subr.bf16.mxu0 0
  %1666 = vmatpush1.bf16.msra.mxu0 %v1637
  %1667 = vmatprep.subr.bf16.mxu0 0
  %1668 = vmatpush1.bf16.msra.mxu0 %v1638
  %1669 = vmatprep.subr.bf16.mxu0 0
  %1670 = vmatpush1.bf16.msra.mxu0 %v1639
  %1671 = vmatprep.subr.bf16.mxu0 0
  %1672 = vmatpush1.bf16.msra.mxu0 %v1640
  %1673 = vmatprep.subr.bf16.mxu0 0
  %1674 = vmatpush1.bf16.msra.mxu0 %v1641
  %1675 = vmatprep.subr.bf16.mxu0 0
  %1676 = vmatpush1.bf16.msra.mxu0 %v1642
  %1677 = vmatprep.subr.bf16.mxu0 0
  %1678 = vmatpush1.bf16.msra.mxu0 %v1643
  %1679 = vmatprep.subr.bf16.mxu0 0
  %1680 = vmatpush1.bf16.msra.mxu0 %v1644
  %1681 = vmatprep.subr.bf16.mxu0 0
  %1682 = vmatpush1.bf16.msra.mxu0 %v1645
  %1683 = vmatprep.subr.bf16.mxu0 0
  %1684 = vmatpush1.bf16.msra.mxu0 %v1646
  %1685 = vmatprep.subr.bf16.mxu0 0
  %1686 = vmatpush1.bf16.msra.mxu0 %v1647
  %1687 = vmatprep.subr.bf16.mxu0 0
  %1688 = vmatpush1.bf16.msra.mxu0 0
  %1689 = vmatprep.subr.bf16.mxu0 0
  %1690 = vmatpush1.bf16.msra.mxu0 0
  %1691 = vmatprep.subr.bf16.mxu0 0
  %1692 = vmatpush1.bf16.msra.mxu0 0
  %1693 = vmatprep.subr.bf16.mxu0 0
  %1694 = vmatpush1.bf16.msra.mxu0 0
  %1695 = vmatprep.mubr.bf16.mxu0 %v1661
  %1696 = vmatmul.mubr.bf16.gmra.mrb[0].mxu0 %v1561
  %v1697 = vpop.f32.mrb[0].mxu0
  %v1698 = vadd.f32 0.0, %v1697
  %v1699 = vpop.f32.mrb[0].mxu0
  %v1700 = vpop.f32.mrb[0].mxu0
  %v1701 = vpop.f32.mrb[0].mxu0
  %1702 = vdwg.mxu0
  %v1703 = vadd.f32 %v1507, %v1698
  %1704 = vrot.lane.b32.xlu0 %v1114, 32
  %v1705 = vpop.permute.xlu0 %1704
  %1706 = vrot.lane.b32.xlu0 %v1115, 32
  %v1707 = vpop.permute.xlu0 %1706
  %vm1708 = vcmask 261120
  %v1709 = vsel %vm1708, %v1705, %v1707
  %v1712 = vsel %vm131, %v1707, 0
  %1714 = vmatprep.subr.bf16.mxu0 %v98
  %1715 = vmatpush1.bf16.msra.mxu0 %v97
  %1716 = vmatprep.subr.bf16.mxu0 %v100
  %1717 = vmatpush1.bf16.msra.mxu0 %v99
  %1718 = vmatprep.subr.bf16.mxu0 %v102
  %1719 = vmatpush1.bf16.msra.mxu0 %v101
  %1720 = vmatprep.subr.bf16.mxu0 %v104
  %1721 = vmatpush1.bf16.msra.mxu0 %v103
  %1722 = vmatprep.subr.bf16.mxu0 %v106
  %1723 = vmatpush1.bf16.msra.mxu0 %v105
  %1724 = vmatprep.subr.bf16.mxu0 %v108
  %1725 = vmatpush1.bf16.msra.mxu0 %v107
  %1726 = vmatprep.subr.bf16.mxu0 %v110
  %1727 = vmatpush1.bf16.msra.mxu0 %v109
  %1728 = vmatprep.subr.bf16.mxu0 %v112
  %1729 = vmatpush1.bf16.msra.mxu0 %v111
  %1730 = vmatprep.subr.bf16.mxu0 %v140
  %1731 = vmatpush1.bf16.msra.mxu0 %v137
  %1732 = vmatprep.subr.bf16.mxu0 0
  %1733 = vmatpush1.bf16.msra.mxu0 0
  %1734 = vmatprep.subr.bf16.mxu0 0
  %1735 = vmatpush1.bf16.msra.mxu0 0
  %1736 = vmatprep.subr.bf16.mxu0 0
  %1737 = vmatpush1.bf16.msra.mxu0 0
  %1738 = vmatprep.subr.bf16.mxu0 0
  %1739 = vmatpush1.bf16.msra.mxu0 0
  %1740 = vmatprep.subr.bf16.mxu0 0
  %1741 = vmatpush1.bf16.msra.mxu0 0
  %1742 = vmatprep.subr.bf16.mxu0 0
  %1743 = vmatpush1.bf16.msra.mxu0 0
  %1744 = vmatprep.subr.bf16.mxu0 0
  %1745 = vmatpush1.bf16.msra.mxu0 0
  %1746 = vmatprep.mubr.bf16.mxu0 %v1712
  %1747 = vmatmul.mubr.bf16.gmra.mrb[0].mxu0 %v1709
  %v1748 = vpop.f32.mrb[0].mxu0
  %v1749 = vadd.f32 0.0, %v1748
  %v1750 = vpop.f32.mrb[0].mxu0
  %v1751 = vadd.f32 0.0, %v1750
  %v1752 = vpop.f32.mrb[0].mxu0
  %v1753 = vpop.f32.mrb[0].mxu0
  %1754 = vdwg.mxu0
  %v1755 = vmax.f32 %v1749, 0.0
  %v1756 = vmax.f32 %v1751, 0.0
  %v1757 = vpack.c.bf16 %v1755, %v1755
  %v1758 = vpack.c.bf16 %v1756, %v1756
  %s1759 = scalar_lea.vmem %s2, 768
  %v1760 = vld [vmem:[%s1759] sm:$0xf]
  %v1761 = vld [vmem:[%s1759 + $0x4] sm:$0xf]
  %v1762 = vld [vmem:[%s1759 + $0x8] sm:$0xf]
  %v1763 = vld [vmem:[%s1759 + $0xc] sm:$0xf]
  %v1764 = vld [vmem:[%s1759 + $0x10] sm:$0xf]
  %v1765 = vld [vmem:[%s1759 + $0x14] sm:$0xf]
  %v1766 = vld [vmem:[%s1759 + $0x18] sm:$0xf]
  %v1767 = vld [vmem:[%s1759 + $0x1c] sm:$0xf]
  %v1768 = vld [vmem:[%s1759 + $0x20] sm:$0xf]
  %v1769 = vld [vmem:[%s1759 + $0x24] sm:$0xf]
  %v1770 = vld [vmem:[%s1759 + $0x28] sm:$0xf]
  %v1771 = vld [vmem:[%s1759 + $0x2c] sm:$0xf]
  %v1772 = vld [vmem:[%s1759 + $0x30] sm:$0xf]
  %v1773 = vld [vmem:[%s1759 + $0x34] sm:$0xf]
  %v1774 = vld [vmem:[%s1759 + $0x38] sm:$0xf]
  %v1775 = vld [vmem:[%s1759 + $0x3c] sm:$0xf]
  %v1776 = vld [vmem:[%s1759 + $0x40] sm:$0xf]
  %v1777 = vld [vmem:[%s1759 + $0x44] sm:$0xf]
  %v1778 = vld [vmem:[%s1759 + $0x48] sm:$0xf]
  %v1779 = vld [vmem:[%s1759 + $0x4c] sm:$0xf]
  %v1780 = vld [vmem:[%s1759 + $0x50] sm:$0xf]
  %v1781 = vld [vmem:[%s1759 + $0x54] sm:$0xf]
  %v1782 = vld [vmem:[%s1759 + $0x58] sm:$0xf]
  %v1783 = vld [vmem:[%s1759 + $0x5c] sm:$0xf]
  %v1808 = vunpack.c.l.b16 %v1760
  %v1809 = vunpack.c.l.b16 %v1761
  %v1810 = vunpack.c.l.b16 %v1762
  %v1811 = vunpack.c.l.b16 %v1763
  %v1812 = vunpack.c.l.b16 %v1764
  %v1813 = vunpack.c.l.b16 %v1765
  %v1814 = vunpack.c.l.b16 %v1766
  %v1815 = vunpack.c.l.b16 %v1767
  %v1816 = vunpack.c.l.b16 %v1768
  %v1817 = vunpack.c.l.b16 %v1769
  %v1818 = vunpack.c.l.b16 %v1770
  %v1819 = vunpack.c.l.b16 %v1771
  %v1820 = vunpack.c.l.b16 %v1772
  %v1821 = vunpack.c.l.b16 %v1773
  %v1822 = vunpack.c.l.b16 %v1774
  %v1823 = vunpack.c.l.b16 %v1775
  %v1824 = vunpack.c.l.b16 %v1776
  %v1825 = vunpack.c.l.b16 %v1777
  %v1826 = vunpack.c.l.b16 %v1778
  %v1827 = vunpack.c.l.b16 %v1779
  %v1828 = vunpack.c.l.b16 %v1780
  %v1829 = vunpack.c.l.b16 %v1781
  %v1830 = vunpack.c.l.b16 %v1782
  %v1831 = vunpack.c.l.b16 %v1783
  %v1832 = vpack.c.b16 %v1809, %v1808
  %v1833 = vpack.c.b16 %v1811, %v1810
  %v1834 = vpack.c.b16 %v1813, %v1812
  %v1835 = vpack.c.b16 %v1815, %v1814
  %v1836 = vpack.c.b16 %v1817, %v1816
  %v1837 = vpack.c.b16 %v1819, %v1818
  %v1838 = vpack.c.b16 %v1821, %v1820
  %v1839 = vpack.c.b16 %v1823, %v1822
  %v1840 = vpack.c.b16 %v1825, %v1824
  %v1841 = vpack.c.b16 %v1827, %v1826
  %v1842 = vpack.c.b16 %v1829, %v1828
  %v1843 = vpack.c.b16 %v1831, %v1830
  %v1857 = vsel %vm363, %v1758, 0
  %1859 = vmatprep.subr.bf16.mxu0 0
  %1860 = vmatpush1.bf16.msra.mxu0 %v1832
  %1861 = vmatprep.subr.bf16.mxu0 0
  %1862 = vmatpush1.bf16.msra.mxu0 %v1833
  %1863 = vmatprep.subr.bf16.mxu0 0
  %1864 = vmatpush1.bf16.msra.mxu0 %v1834
  %1865 = vmatprep.subr.bf16.mxu0 0
  %1866 = vmatpush1.bf16.msra.mxu0 %v1835
  %1867 = vmatprep.subr.bf16.mxu0 0
  %1868 = vmatpush1.bf16.msra.mxu0 %v1836
  %1869 = vmatprep.subr.bf16.mxu0 0
  %1870 = vmatpush1.bf16.msra.mxu0 %v1837
  %1871 = vmatprep.subr.bf16.mxu0 0
  %1872 = vmatpush1.bf16.msra.mxu0 %v1838
  %1873 = vmatprep.subr.bf16.mxu0 0
  %1874 = vmatpush1.bf16.msra.mxu0 %v1839
  %1875 = vmatprep.subr.bf16.mxu0 0
  %1876 = vmatpush1.bf16.msra.mxu0 %v1840
  %1877 = vmatprep.subr.bf16.mxu0 0
  %1878 = vmatpush1.bf16.msra.mxu0 %v1841
  %1879 = vmatprep.subr.bf16.mxu0 0
  %1880 = vmatpush1.bf16.msra.mxu0 %v1842
  %1881 = vmatprep.subr.bf16.mxu0 0
  %1882 = vmatpush1.bf16.msra.mxu0 %v1843
  %1883 = vmatprep.subr.bf16.mxu0 0
  %1884 = vmatpush1.bf16.msra.mxu0 0
  %1885 = vmatprep.subr.bf16.mxu0 0
  %1886 = vmatpush1.bf16.msra.mxu0 0
  %1887 = vmatprep.subr.bf16.mxu0 0
  %1888 = vmatpush1.bf16.msra.mxu0 0
  %1889 = vmatprep.subr.bf16.mxu0 0
  %1890 = vmatpush1.bf16.msra.mxu0 0
  %1891 = vmatprep.mubr.bf16.mxu0 %v1857
  %1892 = vmatmul.mubr.bf16.gmra.mrb[0].mxu0 %v1757
  %v1893 = vpop.f32.mrb[0].mxu0
  %v1894 = vadd.f32 0.0, %v1893
  %v1895 = vpop.f32.mrb[0].mxu0
  %v1896 = vpop.f32.mrb[0].mxu0
  %v1897 = vpop.f32.mrb[0].mxu0
  %1898 = vdwg.mxu0
  %v1899 = vadd.f32 %v1703, %v1894
  %v1900 = vld [vmem:[%s0 + $0x4] sm:$0xff]
  %v1901 = vld [vmem:[%s0 + $0xc] sm:$0xf]
  %v1904 = vunpack.c.l.b16 %v1900
  %v1905 = vunpack.c.h.b16 %v1900
  %v1906 = vunpack.c.l.b16 %v1901
  %v1907 = vpack.c.b16 %v1904, %v1904
  %v1908 = vpack.c.b16 %v1905, %v1905
  %v1909 = vpack.c.b16 %v1906, %v1906
  %1910 = vrot.lane.b32.xlu0 %v1907, 4
  %v1911 = vpop.permute.xlu0 %1910
  %1912 = vrot.lane.b32.xlu0 %v1908, 4
  %v1913 = vpop.permute.xlu0 %1912
  %1914 = vrot.lane.b32.xlu0 %v1909, 4
  %v1915 = vpop.permute.xlu0 %1914
  %vm1916 = vcmask 31744
  %v1917 = vsel %vm1916, %v1911, %v1913
  %v1918 = vsel %vm1916, %v1913, %v1915
  %v1921 = vsel %vm131, %v1918, 0
  %1923 = vmatprep.subr.bf16.mxu0 %v98
  %1924 = vmatpush1.bf16.msra.mxu0 %v97
  %1925 = vmatprep.subr.bf16.mxu0 %v100
  %1926 = vmatpush1.bf16.msra.mxu0 %v99
  %1927 = vmatprep.subr.bf16.mxu0 %v102
  %1928 = vmatpush1.bf16.msra.mxu0 %v101
  %1929 = vmatprep.subr.bf16.mxu0 %v104
  %1930 = vmatpush1.bf16.msra.mxu0 %v103
  %1931 = vmatprep.subr.bf16.mxu0 %v106
  %1932 = vmatpush1.bf16.msra.mxu0 %v105
  %1933 = vmatprep.subr.bf16.mxu0 %v108
  %1934 = vmatpush1.bf16.msra.mxu0 %v107
  %1935 = vmatprep.subr.bf16.mxu0 %v110
  %1936 = vmatpush1.bf16.msra.mxu0 %v109
  %1937 = vmatprep.subr.bf16.mxu0 %v112
  %1938 = vmatpush1.bf16.msra.mxu0 %v111
  %1939 = vmatprep.subr.bf16.mxu0 %v140
  %1940 = vmatpush1.bf16.msra.mxu0 %v137
  %1941 = vmatprep.subr.bf16.mxu0 0
  %1942 = vmatpush1.bf16.msra.mxu0 0
  %1943 = vmatprep.subr.bf16.mxu0 0
  %1944 = vmatpush1.bf16.msra.mxu0 0
  %1945 = vmatprep.subr.bf16.mxu0 0
  %1946 = vmatpush1.bf16.msra.mxu0 0
  %1947 = vmatprep.subr.bf16.mxu0 0
  %1948 = vmatpush1.bf16.msra.mxu0 0
  %1949 = vmatprep.subr.bf16.mxu0 0
  %1950 = vmatpush1.bf16.msra.mxu0 0
  %1951 = vmatprep.subr.bf16.mxu0 0
  %1952 = vmatpush1.bf16.msra.mxu0 0
  %1953 = vmatprep.subr.bf16.mxu0 0
  %1954 = vmatpush1.bf16.msra.mxu0 0
  %1955 = vmatprep.mubr.bf16.mxu0 %v1921
  %1956 = vmatmul.mubr.bf16.gmra.mrb[0].mxu0 %v1917
  %v1957 = vpop.f32.mrb[0].mxu0
  %v1958 = vadd.f32 0.0, %v1957
  %v1959 = vpop.f32.mrb[0].mxu0
  %v1960 = vadd.f32 0.0, %v1959
  %v1961 = vpop.f32.mrb[0].mxu0
  %v1962 = vpop.f32.mrb[0].mxu0
  %1963 = vdwg.mxu0
  %v1964 = vmax.f32 %v1958, 0.0
  %v1965 = vmax.f32 %v1960, 0.0
  %v1966 = vpack.c.bf16 %v1964, %v1964
  %v1967 = vpack.c.bf16 %v1965, %v1965
  %s1968 = scalar_lea.vmem %s2, 864
  %v1969 = vld [vmem:[%s1968] sm:$0xf]
  %v1970 = vld [vmem:[%s1968 + $0x4] sm:$0xf]
  %v1971 = vld [vmem:[%s1968 + $0x8] sm:$0xf]
  %v1972 = vld [vmem:[%s1968 + $0xc] sm:$0xf]
  %v1973 = vld [vmem:[%s1968 + $0x10] sm:$0xf]
  %v1974 = vld [vmem:[%s1968 + $0x14] sm:$0xf]
  %v1975 = vld [vmem:[%s1968 + $0x18] sm:$0xf]
  %v1976 = vld [vmem:[%s1968 + $0x1c] sm:$0xf]
  %v1977 = vld [vmem:[%s1968 + $0x20] sm:$0xf]
  %v1978 = vld [vmem:[%s1968 + $0x24] sm:$0xf]
  %v1979 = vld [vmem:[%s1968 + $0x28] sm:$0xf]
  %v1980 = vld [vmem:[%s1968 + $0x2c] sm:$0xf]
  %v1981 = vld [vmem:[%s1968 + $0x30] sm:$0xf]
  %v1982 = vld [vmem:[%s1968 + $0x34] sm:$0xf]
  %v1983 = vld [vmem:[%s1968 + $0x38] sm:$0xf]
  %v1984 = vld [vmem:[%s1968 + $0x3c] sm:$0xf]
  %v1985 = vld [vmem:[%s1968 + $0x40] sm:$0xf]
  %v1986 = vld [vmem:[%s1968 + $0x44] sm:$0xf]
  %v1987 = vld [vmem:[%s1968 + $0x48] sm:$0xf]
  %v1988 = vld [vmem:[%s1968 + $0x4c] sm:$0xf]
  %v1989 = vld [vmem:[%s1968 + $0x50] sm:$0xf]
  %v1990 = vld [vmem:[%s1968 + $0x54] sm:$0xf]
  %v1991 = vld [vmem:[%s1968 + $0x58] sm:$0xf]
  %v1992 = vld [vmem:[%s1968 + $0x5c] sm:$0xf]
  %v2017 = vunpack.c.l.b16 %v1969
  %v2018 = vunpack.c.l.b16 %v1970
  %v2019 = vunpack.c.l.b16 %v1971
  %v2020 = vunpack.c.l.b16 %v1972
  %v2021 = vunpack.c.l.b16 %v1973
  %v2022 = vunpack.c.l.b16 %v1974
  %v2023 = vunpack.c.l.b16 %v1975
  %v2024 = vunpack.c.l.b16 %v1976
  %v2025 = vunpack.c.l.b16 %v1977
  %v2026 = vunpack.c.l.b16 %v1978
  %v2027 = vunpack.c.l.b16 %v1979
  %v2028 = vunpack.c.l.b16 %v1980
  %v2029 = vunpack.c.l.b16 %v1981
  %v2030 = vunpack.c.l.b16 %v1982
  %v2031 = vunpack.c.l.b16 %v1983
  %v2032 = vunpack.c.l.b16 %v1984
  %v2033 = vunpack.c.l.b16 %v1985
  %v2034 = vunpack.c.l.b16 %v1986
  %v2035 = vunpack.c.l.b16 %v1987
  %v2036 = vunpack.c.l.b16 %v1988
  %v2037 = vunpack.c.l.b16 %v1989
  %v2038 = vunpack.c.l.b16 %v1990
  %v2039 = vunpack.c.l.b16 %v1991
  %v2040 = vunpack.c.l.b16 %v1992
  %v2041 = vpack.c.b16 %v2018, %v2017
  %v2042 = vpack.c.b16 %v2020, %v2019
  %v2043 = vpack.c.b16 %v2022, %v2021
  %v2044 = vpack.c.b16 %v2024, %v2023
  %v2045 = vpack.c.b16 %v2026, %v2025
  %v2046 = vpack.c.b16 %v2028, %v2027
  %v2047 = vpack.c.b16 %v2030, %v2029
  %v2048 = vpack.c.b16 %v2032, %v2031
  %v2049 = vpack.c.b16 %v2034, %v2033
  %v2050 = vpack.c.b16 %v2036, %v2035
  %v2051 = vpack.c.b16 %v2038, %v2037
  %v2052 = vpack.c.b16 %v2040, %v2039
  %v2066 = vsel %vm363, %v1967, 0
  %2068 = vmatprep.subr.bf16.mxu0 0
  %2069 = vmatpush1.bf16.msra.mxu0 %v2041
  %2070 = vmatprep.subr.bf16.mxu0 0
  %2071 = vmatpush1.bf16.msra.mxu0 %v2042
  %2072 = vmatprep.subr.bf16.mxu0 0
  %2073 = vmatpush1.bf16.msra.mxu0 %v2043
  %2074 = vmatprep.subr.bf16.mxu0 0
  %2075 = vmatpush1.bf16.msra.mxu0 %v2044
  %2076 = vmatprep.subr.bf16.mxu0 0
  %2077 = vmatpush1.bf16.msra.mxu0 %v2045
  %2078 = vmatprep.subr.bf16.mxu0 0
  %2079 = vmatpush1.bf16.msra.mxu0 %v2046
  %2080 = vmatprep.subr.bf16.mxu0 0
  %2081 = vmatpush1.bf16.msra.mxu0 %v2047
  %2082 = vmatprep.subr.bf16.mxu0 0
  %2083 = vmatpush1.bf16.msra.mxu0 %v2048
  %2084 = vmatprep.subr.bf16.mxu0 0
  %2085 = vmatpush1.bf16.msra.mxu0 %v2049
  %2086 = vmatprep.subr.bf16.mxu0 0
  %2087 = vmatpush1.bf16.msra.mxu0 %v2050
  %2088 = vmatprep.subr.bf16.mxu0 0
  %2089 = vmatpush1.bf16.msra.mxu0 %v2051
  %2090 = vmatprep.subr.bf16.mxu0 0
  %2091 = vmatpush1.bf16.msra.mxu0 %v2052
  %2092 = vmatprep.subr.bf16.mxu0 0
  %2093 = vmatpush1.bf16.msra.mxu0 0
  %2094 = vmatprep.subr.bf16.mxu0 0
  %2095 = vmatpush1.bf16.msra.mxu0 0
  %2096 = vmatprep.subr.bf16.mxu0 0
  %2097 = vmatpush1.bf16.msra.mxu0 0
  %2098 = vmatprep.subr.bf16.mxu0 0
  %2099 = vmatpush1.bf16.msra.mxu0 0
  %2100 = vmatprep.mubr.bf16.mxu0 %v2066
  %2101 = vmatmul.mubr.bf16.gmra.mrb[0].mxu0 %v1966
  %v2102 = vpop.f32.mrb[0].mxu0
  %v2103 = vadd.f32 0.0, %v2102
  %v2104 = vpop.f32.mrb[0].mxu0
  %v2105 = vpop.f32.mrb[0].mxu0
  %v2106 = vpop.f32.mrb[0].mxu0
  %2107 = vdwg.mxu0
  %v2108 = vadd.f32 %v1899, %v2103
  %v2109 = vld [vmem:[%s0 + $0x8] sm:$0xff]
  %v2111 = vunpack.c.l.b16 %v2109
  %v2112 = vunpack.c.h.b16 %v2109
  %v2113 = vpack.c.b16 %v2111, %v2111
  %v2114 = vpack.c.b16 %v2112, %v2112
  %2115 = vrot.lane.b32.xlu0 %v2113, 104
  %v2116 = vpop.permute.xlu0 %2115
  %2117 = vrot.lane.b32.xlu0 %v2114, 104
  %v2118 = vpop.permute.xlu0 %2117
  %vm2119 = vcmask 850944
  %v2120 = vsel %vm2119, %v2116, %v2118
  %v2123 = vsel %vm131, %v2118, 0
  %2125 = vmatprep.subr.bf16.mxu0 %v98
  %2126 = vmatpush1.bf16.msra.mxu0 %v97
  %2127 = vmatprep.subr.bf16.mxu0 %v100
  %2128 = vmatpush1.bf16.msra.mxu0 %v99
  %2129 = vmatprep.subr.bf16.mxu0 %v102
  %2130 = vmatpush1.bf16.msra.mxu0 %v101
  %2131 = vmatprep.subr.bf16.mxu0 %v104
  %2132 = vmatpush1.bf16.msra.mxu0 %v103
  %2133 = vmatprep.subr.bf16.mxu0 %v106
  %2134 = vmatpush1.bf16.msra.mxu0 %v105
  %2135 = vmatprep.subr.bf16.mxu0 %v108
  %2136 = vmatpush1.bf16.msra.mxu0 %v107
  %2137 = vmatprep.subr.bf16.mxu0 %v110
  %2138 = vmatpush1.bf16.msra.mxu0 %v109
  %2139 = vmatprep.subr.bf16.mxu0 %v112
  %2140 = vmatpush1.bf16.msra.mxu0 %v111
  %2141 = vmatprep.subr.bf16.mxu0 %v140
  %2142 = vmatpush1.bf16.msra.mxu0 %v137
  %2143 = vmatprep.subr.bf16.mxu0 0
  %2144 = vmatpush1.bf16.msra.mxu0 0
  %2145 = vmatprep.subr.bf16.mxu0 0
  %2146 = vmatpush1.bf16.msra.mxu0 0
  %2147 = vmatprep.subr.bf16.mxu0 0
  %2148 = vmatpush1.bf16.msra.mxu0 0
  %2149 = vmatprep.subr.bf16.mxu0 0
  %2150 = vmatpush1.bf16.msra.mxu0 0
  %2151 = vmatprep.subr.bf16.mxu0 0
  %2152 = vmatpush1.bf16.msra.mxu0 0
  %2153 = vmatprep.subr.bf16.mxu0 0
  %2154 = vmatpush1.bf16.msra.mxu0 0
  %2155 = vmatprep.subr.bf16.mxu0 0
  %2156 = vmatpush1.bf16.msra.mxu0 0
  %2157 = vmatprep.mubr.bf16.mxu0 %v2123
  %2158 = vmatmul.mubr.bf16.gmra.mrb[0].mxu0 %v2120
  %v2159 = vpop.f32.mrb[0].mxu0
  %v2160 = vadd.f32 0.0, %v2159
  %v2161 = vpop.f32.mrb[0].mxu0
  %v2162 = vadd.f32 0.0, %v2161
  %v2163 = vpop.f32.mrb[0].mxu0
  %v2164 = vpop.f32.mrb[0].mxu0
  %2165 = vdwg.mxu0
  %v2166 = vmax.f32 %v2160, 0.0
  %v2167 = vmax.f32 %v2162, 0.0
  %v2168 = vpack.c.bf16 %v2166, %v2166
  %v2169 = vpack.c.bf16 %v2167, %v2167
  %s2170 = scalar_lea.vmem %s2, 960
  %v2171 = vld [vmem:[%s2170] sm:$0xf]
  %v2172 = vld [vmem:[%s2170 + $0x4] sm:$0xf]
  %v2173 = vld [vmem:[%s2170 + $0x8] sm:$0xf]
  %v2174 = vld [vmem:[%s2170 + $0xc] sm:$0xf]
  %v2175 = vld [vmem:[%s2170 + $0x10] sm:$0xf]
  %v2176 = vld [vmem:[%s2170 + $0x14] sm:$0xf]
  %v2177 = vld [vmem:[%s2170 + $0x18] sm:$0xf]
  %v2178 = vld [vmem:[%s2170 + $0x1c] sm:$0xf]
  %v2179 = vld [vmem:[%s2170 + $0x20] sm:$0xf]
  %v2180 = vld [vmem:[%s2170 + $0x24] sm:$0xf]
  %v2181 = vld [vmem:[%s2170 + $0x28] sm:$0xf]
  %v2182 = vld [vmem:[%s2170 + $0x2c] sm:$0xf]
  %v2183 = vld [vmem:[%s2170 + $0x30] sm:$0xf]
  %v2184 = vld [vmem:[%s2170 + $0x34] sm:$0xf]
  %v2185 = vld [vmem:[%s2170 + $0x38] sm:$0xf]
  %v2186 = vld [vmem:[%s2170 + $0x3c] sm:$0xf]
  %v2187 = vld [vmem:[%s2170 + $0x40] sm:$0xf]
  %v2188 = vld [vmem:[%s2170 + $0x44] sm:$0xf]
  %v2189 = vld [vmem:[%s2170 + $0x48] sm:$0xf]
  %v2190 = vld [vmem:[%s2170 + $0x4c] sm:$0xf]
  %v2191 = vld [vmem:[%s2170 + $0x50] sm:$0xf]
  %v2192 = vld [vmem:[%s2170 + $0x54] sm:$0xf]
  %v2193 = vld [vmem:[%s2170 + $0x58] sm:$0xf]
  %v2194 = vld [vmem:[%s2170 + $0x5c] sm:$0xf]
  %v2219 = vunpack.c.l.b16 %v2171
  %v2220 = vunpack.c.l.b16 %v2172
  %v2221 = vunpack.c.l.b16 %v2173
  %v2222 = vunpack.c.l.b16 %v2174
  %v2223 = vunpack.c.l.b16 %v2175
  %v2224 = vunpack.c.l.b16 %v2176
  %v2225 = vunpack.c.l.b16 %v2177
  %v2226 = vunpack.c.l.b16 %v2178
  %v2227 = vunpack.c.l.b16 %v2179
  %v2228 = vunpack.c.l.b16 %v2180
  %v2229 = vunpack.c.l.b16 %v2181
  %v2230 = vunpack.c.l.b16 %v2182
  %v2231 = vunpack.c.l.b16 %v2183
  %v2232 = vunpack.c.l.b16 %v2184
  %v2233 = vunpack.c.l.b16 %v2185
  %v2234 = vunpack.c.l.b16 %v2186
  %v2235 = vunpack.c.l.b16 %v2187
  %v2236 = vunpack.c.l.b16 %v2188
  %v2237 = vunpack.c.l.b16 %v2189
  %v2238 = vunpack.c.l.b16 %v2190
  %v2239 = vunpack.c.l.b16 %v2191
  %v2240 = vunpack.c.l.b16 %v2192
  %v2241 = vunpack.c.l.b16 %v2193
  %v2242 = vunpack.c.l.b16 %v2194
  %v2243 = vpack.c.b16 %v2220, %v2219
  %v2244 = vpack.c.b16 %v2222, %v2221
  %v2245 = vpack.c.b16 %v2224, %v2223
  %v2246 = vpack.c.b16 %v2226, %v2225
  %v2247 = vpack.c.b16 %v2228, %v2227
  %v2248 = vpack.c.b16 %v2230, %v2229
  %v2249 = vpack.c.b16 %v2232, %v2231
  %v2250 = vpack.c.b16 %v2234, %v2233
  %v2251 = vpack.c.b16 %v2236, %v2235
  %v2252 = vpack.c.b16 %v2238, %v2237
  %v2253 = vpack.c.b16 %v2240, %v2239
  %v2254 = vpack.c.b16 %v2242, %v2241
  %v2268 = vsel %vm363, %v2169, 0
  %2270 = vmatprep.subr.bf16.mxu0 0
  %2271 = vmatpush1.bf16.msra.mxu0 %v2243
  %2272 = vmatprep.subr.bf16.mxu0 0
  %2273 = vmatpush1.bf16.msra.mxu0 %v2244
  %2274 = vmatprep.subr.bf16.mxu0 0
  %2275 = vmatpush1.bf16.msra.mxu0 %v2245
  %2276 = vmatprep.subr.bf16.mxu0 0
  %2277 = vmatpush1.bf16.msra.mxu0 %v2246
  %2278 = vmatprep.subr.bf16.mxu0 0
  %2279 = vmatpush1.bf16.msra.mxu0 %v2247
  %2280 = vmatprep.subr.bf16.mxu0 0
  %2281 = vmatpush1.bf16.msra.mxu0 %v2248
  %2282 = vmatprep.subr.bf16.mxu0 0
  %2283 = vmatpush1.bf16.msra.mxu0 %v2249
  %2284 = vmatprep.subr.bf16.mxu0 0
  %2285 = vmatpush1.bf16.msra.mxu0 %v2250
  %2286 = vmatprep.subr.bf16.mxu0 0
  %2287 = vmatpush1.bf16.msra.mxu0 %v2251
  %2288 = vmatprep.subr.bf16.mxu0 0
  %2289 = vmatpush1.bf16.msra.mxu0 %v2252
  %2290 = vmatprep.subr.bf16.mxu0 0
  %2291 = vmatpush1.bf16.msra.mxu0 %v2253
  %2292 = vmatprep.subr.bf16.mxu0 0
  %2293 = vmatpush1.bf16.msra.mxu0 %v2254
  %2294 = vmatprep.subr.bf16.mxu0 0
  %2295 = vmatpush1.bf16.msra.mxu0 0
  %2296 = vmatprep.subr.bf16.mxu0 0
  %2297 = vmatpush1.bf16.msra.mxu0 0
  %2298 = vmatprep.subr.bf16.mxu0 0
  %2299 = vmatpush1.bf16.msra.mxu0 0
  %2300 = vmatprep.subr.bf16.mxu0 0
  %2301 = vmatpush1.bf16.msra.mxu0 0
  %2302 = vmatprep.mubr.bf16.mxu0 %v2268
  %2303 = vmatmul.mubr.bf16.gmra.mrb[0].mxu0 %v2168
  %v2304 = vpop.f32.mrb[0].mxu0
  %v2305 = vadd.f32 0.0, %v2304
  %v2306 = vpop.f32.mrb[0].mxu0
  %v2307 = vpop.f32.mrb[0].mxu0
  %v2308 = vpop.f32.mrb[0].mxu0
  %2309 = vdwg.mxu0
  %v2310 = vadd.f32 %v2108, %v2305
  %2311 = vrot.lane.b32.xlu0 %v2113, 76
  %v2312 = vpop.permute.xlu0 %2311
  %2313 = vrot.lane.b32.xlu0 %v2114, 76
  %v2314 = vpop.permute.xlu0 %2313
  %vm2315 = vcmask 621568
  %v2316 = vsel %vm2315, %v2312, %v2314
  %v2319 = vsel %vm131, %v2314, 0
  %2321 = vmatprep.subr.bf16.mxu0 %v98
  %2322 = vmatpush1.bf16.msra.mxu0 %v97
  %2323 = vmatprep.subr.bf16.mxu0 %v100
  %2324 = vmatpush1.bf16.msra.mxu0 %v99
  %2325 = vmatprep.subr.bf16.mxu0 %v102
  %2326 = vmatpush1.bf16.msra.mxu0 %v101
  %2327 = vmatprep.subr.bf16.mxu0 %v104
  %2328 = vmatpush1.bf16.msra.mxu0 %v103
  %2329 = vmatprep.subr.bf16.mxu0 %v106
  %2330 = vmatpush1.bf16.msra.mxu0 %v105
  %2331 = vmatprep.subr.bf16.mxu0 %v108
  %2332 = vmatpush1.bf16.msra.mxu0 %v107
  %2333 = vmatprep.subr.bf16.mxu0 %v110
  %2334 = vmatpush1.bf16.msra.mxu0 %v109
  %2335 = vmatprep.subr.bf16.mxu0 %v112
  %2336 = vmatpush1.bf16.msra.mxu0 %v111
  %2337 = vmatprep.subr.bf16.mxu0 %v140
  %2338 = vmatpush1.bf16.msra.mxu0 %v137
  %2339 = vmatprep.subr.bf16.mxu0 0
  %2340 = vmatpush1.bf16.msra.mxu0 0
  %2341 = vmatprep.subr.bf16.mxu0 0
  %2342 = vmatpush1.bf16.msra.mxu0 0
  %2343 = vmatprep.subr.bf16.mxu0 0
  %2344 = vmatpush1.bf16.msra.mxu0 0
  %2345 = vmatprep.subr.bf16.mxu0 0
  %2346 = vmatpush1.bf16.msra.mxu0 0
  %2347 = vmatprep.subr.bf16.mxu0 0
  %2348 = vmatpush1.bf16.msra.mxu0 0
  %2349 = vmatprep.subr.bf16.mxu0 0
  %2350 = vmatpush1.bf16.msra.mxu0 0
  %2351 = vmatprep.subr.bf16.mxu0 0
  %2352 = vmatpush1.bf16.msra.mxu0 0
  %2353 = vmatprep.mubr.bf16.mxu0 %v2319
  %2354 = vmatmul.mubr.bf16.gmra.mrb[0].mxu0 %v2316
  %v2355 = vpop.f32.mrb[0].mxu0
  %v2356 = vadd.f32 0.0, %v2355
  %v2357 = vpop.f32.mrb[0].mxu0
  %v2358 = vadd.f32 0.0, %v2357
  %v2359 = vpop.f32.mrb[0].mxu0
  %v2360 = vpop.f32.mrb[0].mxu0
  %2361 = vdwg.mxu0
  %v2362 = vmax.f32 %v2356, 0.0
  %v2363 = vmax.f32 %v2358, 0.0
  %v2364 = vpack.c.bf16 %v2362, %v2362
  %v2365 = vpack.c.bf16 %v2363, %v2363
  %s2366 = scalar_lea.vmem %s2, 1056
  %v2367 = vld [vmem:[%s2366] sm:$0xf]
  %v2368 = vld [vmem:[%s2366 + $0x4] sm:$0xf]
  %v2369 = vld [vmem:[%s2366 + $0x8] sm:$0xf]
  %v2370 = vld [vmem:[%s2366 + $0xc] sm:$0xf]
  %v2371 = vld [vmem:[%s2366 + $0x10] sm:$0xf]
  %v2372 = vld [vmem:[%s2366 + $0x14] sm:$0xf]
  %v2373 = vld [vmem:[%s2366 + $0x18] sm:$0xf]
  %v2374 = vld [vmem:[%s2366 + $0x1c] sm:$0xf]
  %v2375 = vld [vmem:[%s2366 + $0x20] sm:$0xf]
  %v2376 = vld [vmem:[%s2366 + $0x24] sm:$0xf]
  %v2377 = vld [vmem:[%s2366 + $0x28] sm:$0xf]
  %v2378 = vld [vmem:[%s2366 + $0x2c] sm:$0xf]
  %v2379 = vld [vmem:[%s2366 + $0x30] sm:$0xf]
  %v2380 = vld [vmem:[%s2366 + $0x34] sm:$0xf]
  %v2381 = vld [vmem:[%s2366 + $0x38] sm:$0xf]
  %v2382 = vld [vmem:[%s2366 + $0x3c] sm:$0xf]
  %v2383 = vld [vmem:[%s2366 + $0x40] sm:$0xf]
  %v2384 = vld [vmem:[%s2366 + $0x44] sm:$0xf]
  %v2385 = vld [vmem:[%s2366 + $0x48] sm:$0xf]
  %v2386 = vld [vmem:[%s2366 + $0x4c] sm:$0xf]
  %v2387 = vld [vmem:[%s2366 + $0x50] sm:$0xf]
  %v2388 = vld [vmem:[%s2366 + $0x54] sm:$0xf]
  %v2389 = vld [vmem:[%s2366 + $0x58] sm:$0xf]
  %v2390 = vld [vmem:[%s2366 + $0x5c] sm:$0xf]
  %v2415 = vunpack.c.l.b16 %v2367
  %v2416 = vunpack.c.l.b16 %v2368
  %v2417 = vunpack.c.l.b16 %v2369
  %v2418 = vunpack.c.l.b16 %v2370
  %v2419 = vunpack.c.l.b16 %v2371
  %v2420 = vunpack.c.l.b16 %v2372
  %v2421 = vunpack.c.l.b16 %v2373
  %v2422 = vunpack.c.l.b16 %v2374
  %v2423 = vunpack.c.l.b16 %v2375
  %v2424 = vunpack.c.l.b16 %v2376
  %v2425 = vunpack.c.l.b16 %v2377
  %v2426 = vunpack.c.l.b16 %v2378
  %v2427 = vunpack.c.l.b16 %v2379
  %v2428 = vunpack.c.l.b16 %v2380
  %v2429 = vunpack.c.l.b16 %v2381
  %v2430 = vunpack.c.l.b16 %v2382
  %v2431 = vunpack.c.l.b16 %v2383
  %v2432 = vunpack.c.l.b16 %v2384
  %v2433 = vunpack.c.l.b16 %v2385
  %v2434 = vunpack.c.l.b16 %v2386
  %v2435 = vunpack.c.l.b16 %v2387
  %v2436 = vunpack.c.l.b16 %v2388
  %v2437 = vunpack.c.l.b16 %v2389
  %v2438 = vunpack.c.l.b16 %v2390
  %v2439 = vpack.c.b16 %v2416, %v2415
  %v2440 = vpack.c.b16 %v2418, %v2417
  %v2441 = vpack.c.b16 %v2420, %v2419
  %v2442 = vpack.c.b16 %v2422, %v2421
  %v2443 = vpack.c.b16 %v2424, %v2423
  %v2444 = vpack.c.b16 %v2426, %v2425
  %v2445 = vpack.c.b16 %v2428, %v2427
  %v2446 = vpack.c.b16 %v2430, %v2429
  %v2447 = vpack.c.b16 %v2432, %v2431
  %v2448 = vpack.c.b16 %v2434, %v2433
  %v2449 = vpack.c.b16 %v2436, %v2435
  %v2450 = vpack.c.b16 %v2438, %v2437
  %v2464 = vsel %vm363, %v2365, 0
  %2466 = vmatprep.subr.bf16.mxu0 0
  %2467 = vmatpush1.bf16.msra.mxu0 %v2439
  %2468 = vmatprep.subr.bf16.mxu0 0
  %2469 = vmatpush1.bf16.msra.mxu0 %v2440
  %2470 = vmatprep.subr.bf16.mxu0 0
  %2471 = vmatpush1.bf16.msra.mxu0 %v2441
  %2472 = vmatprep.subr.bf16.mxu0 0
  %2473 = vmatpush1.bf16.msra.mxu0 %v2442
  %2474 = vmatprep.subr.bf16.mxu0 0
  %2475 = vmatpush1.bf16.msra.mxu0 %v2443
  %2476 = vmatprep.subr.bf16.mxu0 0
  %2477 = vmatpush1.bf16.msra.mxu0 %v2444
  %2478 = vmatprep.subr.bf16.mxu0 0
  %2479 = vmatpush1.bf16.msra.mxu0 %v2445
  %2480 = vmatprep.subr.bf16.mxu0 0
  %2481 = vmatpush1.bf16.msra.mxu0 %v2446
  %2482 = vmatprep.subr.bf16.mxu0 0
  %2483 = vmatpush1.bf16.msra.mxu0 %v2447
  %2484 = vmatprep.subr.bf16.mxu0 0
  %2485 = vmatpush1.bf16.msra.mxu0 %v2448
  %2486 = vmatprep.subr.bf16.mxu0 0
  %2487 = vmatpush1.bf16.msra.mxu0 %v2449
  %2488 = vmatprep.subr.bf16.mxu0 0
  %2489 = vmatpush1.bf16.msra.mxu0 %v2450
  %2490 = vmatprep.subr.bf16.mxu0 0
  %2491 = vmatpush1.bf16.msra.mxu0 0
  %2492 = vmatprep.subr.bf16.mxu0 0
  %2493 = vmatpush1.bf16.msra.mxu0 0
  %2494 = vmatprep.subr.bf16.mxu0 0
  %2495 = vmatpush1.bf16.msra.mxu0 0
  %2496 = vmatprep.subr.bf16.mxu0 0
  %2497 = vmatpush1.bf16.msra.mxu0 0
  %2498 = vmatprep.mubr.bf16.mxu0 %v2464
  %2499 = vmatmul.mubr.bf16.gmra.mrb[0].mxu0 %v2364
  %v2500 = vpop.f32.mrb[0].mxu0
  %v2501 = vadd.f32 0.0, %v2500
  %v2502 = vpop.f32.mrb[0].mxu0
  %v2503 = vpop.f32.mrb[0].mxu0
  %v2504 = vpop.f32.mrb[0].mxu0
  %2505 = vdwg.mxu0
  %v2506 = vadd.f32 %v2310, %v2501
  %2507 = vrot.lane.b32.xlu0 %v2113, 48
  %v2508 = vpop.permute.xlu0 %2507
  %2509 = vrot.lane.b32.xlu0 %v2114, 48
  %v2510 = vpop.permute.xlu0 %2509
  %vm2511 = vcmask 392192
  %v2512 = vsel %vm2511, %v2508, %v2510
  %v2515 = vsel %vm131, %v2510, 0
  %2517 = vmatprep.subr.bf16.mxu0 %v98
  %2518 = vmatpush1.bf16.msra.mxu0 %v97
  %2519 = vmatprep.subr.bf16.mxu0 %v100
  %2520 = vmatpush1.bf16.msra.mxu0 %v99
  %2521 = vmatprep.subr.bf16.mxu0 %v102
  %2522 = vmatpush1.bf16.msra.mxu0 %v101
  %2523 = vmatprep.subr.bf16.mxu0 %v104
  %2524 = vmatpush1.bf16.msra.mxu0 %v103
  %2525 = vmatprep.subr.bf16.mxu0 %v106
  %2526 = vmatpush1.bf16.msra.mxu0 %v105
  %2527 = vmatprep.subr.bf16.mxu0 %v108
  %2528 = vmatpush1.bf16.msra.mxu0 %v107
  %2529 = vmatprep.subr.bf16.mxu0 %v110
  %2530 = vmatpush1.bf16.msra.mxu0 %v109
  %2531 = vmatprep.subr.bf16.mxu0 %v112
  %2532 = vmatpush1.bf16.msra.mxu0 %v111
  %2533 = vmatprep.subr.bf16.mxu0 %v140
  %2534 = vmatpush1.bf16.msra.mxu0 %v137
  %2535 = vmatprep.subr.bf16.mxu0 0
  %2536 = vmatpush1.bf16.msra.mxu0 0
  %2537 = vmatprep.subr.bf16.mxu0 0
  %2538 = vmatpush1.bf16.msra.mxu0 0
  %2539 = vmatprep.subr.bf16.mxu0 0
  %2540 = vmatpush1.bf16.msra.mxu0 0
  %2541 = vmatprep.subr.bf16.mxu0 0
  %2542 = vmatpush1.bf16.msra.mxu0 0
  %2543 = vmatprep.subr.bf16.mxu0 0
  %2544 = vmatpush1.bf16.msra.mxu0 0
  %2545 = vmatprep.subr.bf16.mxu0 0
  %2546 = vmatpush1.bf16.msra.mxu0 0
  %2547 = vmatprep.subr.bf16.mxu0 0
  %2548 = vmatpush1.bf16.msra.mxu0 0
  %2549 = vmatprep.mubr.bf16.mxu0 %v2515
  %2550 = vmatmul.mubr.bf16.gmra.mrb[0].mxu0 %v2512
  %v2551 = vpop.f32.mrb[0].mxu0
  %v2552 = vadd.f32 0.0, %v2551
  %v2553 = vpop.f32.mrb[0].mxu0
  %v2554 = vadd.f32 0.0, %v2553
  %v2555 = vpop.f32.mrb[0].mxu0
  %v2556 = vpop.f32.mrb[0].mxu0
  %2557 = vdwg.mxu0
  %v2558 = vmax.f32 %v2552, 0.0
  %v2559 = vmax.f32 %v2554, 0.0
  %v2560 = vpack.c.bf16 %v2558, %v2558
  %v2561 = vpack.c.bf16 %v2559, %v2559
  %s2562 = scalar_lea.vmem %s2, 1152
  %v2563 = vld [vmem:[%s2562] sm:$0xf]
  %v2564 = vld [vmem:[%s2562 + $0x4] sm:$0xf]
  %v2565 = vld [vmem:[%s2562 + $0x8] sm:$0xf]
  %v2566 = vld [vmem:[%s2562 + $0xc] sm:$0xf]
  %v2567 = vld [vmem:[%s2562 + $0x10] sm:$0xf]
  %v2568 = vld [vmem:[%s2562 + $0x14] sm:$0xf]
  %v2569 = vld [vmem:[%s2562 + $0x18] sm:$0xf]
  %v2570 = vld [vmem:[%s2562 + $0x1c] sm:$0xf]
  %v2571 = vld [vmem:[%s2562 + $0x20] sm:$0xf]
  %v2572 = vld [vmem:[%s2562 + $0x24] sm:$0xf]
  %v2573 = vld [vmem:[%s2562 + $0x28] sm:$0xf]
  %v2574 = vld [vmem:[%s2562 + $0x2c] sm:$0xf]
  %v2575 = vld [vmem:[%s2562 + $0x30] sm:$0xf]
  %v2576 = vld [vmem:[%s2562 + $0x34] sm:$0xf]
  %v2577 = vld [vmem:[%s2562 + $0x38] sm:$0xf]
  %v2578 = vld [vmem:[%s2562 + $0x3c] sm:$0xf]
  %v2579 = vld [vmem:[%s2562 + $0x40] sm:$0xf]
  %v2580 = vld [vmem:[%s2562 + $0x44] sm:$0xf]
  %v2581 = vld [vmem:[%s2562 + $0x48] sm:$0xf]
  %v2582 = vld [vmem:[%s2562 + $0x4c] sm:$0xf]
  %v2583 = vld [vmem:[%s2562 + $0x50] sm:$0xf]
  %v2584 = vld [vmem:[%s2562 + $0x54] sm:$0xf]
  %v2585 = vld [vmem:[%s2562 + $0x58] sm:$0xf]
  %v2586 = vld [vmem:[%s2562 + $0x5c] sm:$0xf]
  %v2611 = vunpack.c.l.b16 %v2563
  %v2612 = vunpack.c.l.b16 %v2564
  %v2613 = vunpack.c.l.b16 %v2565
  %v2614 = vunpack.c.l.b16 %v2566
  %v2615 = vunpack.c.l.b16 %v2567
  %v2616 = vunpack.c.l.b16 %v2568
  %v2617 = vunpack.c.l.b16 %v2569
  %v2618 = vunpack.c.l.b16 %v2570
  %v2619 = vunpack.c.l.b16 %v2571
  %v2620 = vunpack.c.l.b16 %v2572
  %v2621 = vunpack.c.l.b16 %v2573
  %v2622 = vunpack.c.l.b16 %v2574
  %v2623 = vunpack.c.l.b16 %v2575
  %v2624 = vunpack.c.l.b16 %v2576
  %v2625 = vunpack.c.l.b16 %v2577
  %v2626 = vunpack.c.l.b16 %v2578
  %v2627 = vunpack.c.l.b16 %v2579
  %v2628 = vunpack.c.l.b16 %v2580
  %v2629 = vunpack.c.l.b16 %v2581
  %v2630 = vunpack.c.l.b16 %v2582
  %v2631 = vunpack.c.l.b16 %v2583
  %v2632 = vunpack.c.l.b16 %v2584
  %v2633 = vunpack.c.l.b16 %v2585
  %v2634 = vunpack.c.l.b16 %v2586
  %v2635 = vpack.c.b16 %v2612, %v2611
  %v2636 = vpack.c.b16 %v2614, %v2613
  %v2637 = vpack.c.b16 %v2616, %v2615
  %v2638 = vpack.c.b16 %v2618, %v2617
  %v2639 = vpack.c.b16 %v2620, %v2619
  %v2640 = vpack.c.b16 %v2622, %v2621
  %v2641 = vpack.c.b16 %v2624, %v2623
  %v2642 = vpack.c.b16 %v2626, %v2625
  %v2643 = vpack.c.b16 %v2628, %v2627
  %v2644 = vpack.c.b16 %v2630, %v2629
  %v2645 = vpack.c.b16 %v2632, %v2631
  %v2646 = vpack.c.b16 %v2634, %v2633
  %v2660 = vsel %vm363, %v2561, 0
  %2662 = vmatprep.subr.bf16.mxu0 0
  %2663 = vmatpush1.bf16.msra.mxu0 %v2635
  %2664 = vmatprep.subr.bf16.mxu0 0
  %2665 = vmatpush1.bf16.msra.mxu0 %v2636
  %2666 = vmatprep.subr.bf16.mxu0 0
  %2667 = vmatpush1.bf16.msra.mxu0 %v2637
  %2668 = vmatprep.subr.bf16.mxu0 0
  %2669 = vmatpush1.bf16.msra.mxu0 %v2638
  %2670 = vmatprep.subr.bf16.mxu0 0
  %2671 = vmatpush1.bf16.msra.mxu0 %v2639
  %2672 = vmatprep.subr.bf16.mxu0 0
  %2673 = vmatpush1.bf16.msra.mxu0 %v2640
  %2674 = vmatprep.subr.bf16.mxu0 0
  %2675 = vmatpush1.bf16.msra.mxu0 %v2641
  %2676 = vmatprep.subr.bf16.mxu0 0
  %2677 = vmatpush1.bf16.msra.mxu0 %v2642
  %2678 = vmatprep.subr.bf16.mxu0 0
  %2679 = vmatpush1.bf16.msra.mxu0 %v2643
  %2680 = vmatprep.subr.bf16.mxu0 0
  %2681 = vmatpush1.bf16.msra.mxu0 %v2644
  %2682 = vmatprep.subr.bf16.mxu0 0
  %2683 = vmatpush1.bf16.msra.mxu0 %v2645
  %2684 = vmatprep.subr.bf16.mxu0 0
  %2685 = vmatpush1.bf16.msra.mxu0 %v2646
  %2686 = vmatprep.subr.bf16.mxu0 0
  %2687 = vmatpush1.bf16.msra.mxu0 0
  %2688 = vmatprep.subr.bf16.mxu0 0
  %2689 = vmatpush1.bf16.msra.mxu0 0
  %2690 = vmatprep.subr.bf16.mxu0 0
  %2691 = vmatpush1.bf16.msra.mxu0 0
  %2692 = vmatprep.subr.bf16.mxu0 0
  %2693 = vmatpush1.bf16.msra.mxu0 0
  %2694 = vmatprep.mubr.bf16.mxu0 %v2660
  %2695 = vmatmul.mubr.bf16.gmra.mrb[0].mxu0 %v2560
  %v2696 = vpop.f32.mrb[0].mxu0
  %v2697 = vadd.f32 0.0, %v2696
  %v2698 = vpop.f32.mrb[0].mxu0
  %v2699 = vpop.f32.mrb[0].mxu0
  %v2700 = vpop.f32.mrb[0].mxu0
  %2701 = vdwg.mxu0
  %v2702 = vadd.f32 %v2506, %v2697
  %2703 = vrot.lane.b32.xlu0 %v2113, 20
  %v2704 = vpop.permute.xlu0 %2703
  %2705 = vrot.lane.b32.xlu0 %v2114, 20
  %v2706 = vpop.permute.xlu0 %2705
  %vm2707 = vcmask 162816
  %v2708 = vsel %vm2707, %v2704, %v2706
  %v2711 = vsel %vm131, %v2706, 0
  %2713 = vmatprep.subr.bf16.mxu0 %v98
  %2714 = vmatpush1.bf16.msra.mxu0 %v97
  %2715 = vmatprep.subr.bf16.mxu0 %v100
  %2716 = vmatpush1.bf16.msra.mxu0 %v99
  %2717 = vmatprep.subr.bf16.mxu0 %v102
  %2718 = vmatpush1.bf16.msra.mxu0 %v101
  %2719 = vmatprep.subr.bf16.mxu0 %v104
  %2720 = vmatpush1.bf16.msra.mxu0 %v103
  %2721 = vmatprep.subr.bf16.mxu0 %v106
  %2722 = vmatpush1.bf16.msra.mxu0 %v105
  %2723 = vmatprep.subr.bf16.mxu0 %v108
  %2724 = vmatpush1.bf16.msra.mxu0 %v107
  %2725 = vmatprep.subr.bf16.mxu0 %v110
  %2726 = vmatpush1.bf16.msra.mxu0 %v109
  %2727 = vmatprep.subr.bf16.mxu0 %v112
  %2728 = vmatpush1.bf16.msra.mxu0 %v111
  %2729 = vmatprep.subr.bf16.mxu0 %v140
  %2730 = vmatpush1.bf16.msra.mxu0 %v137
  %2731 = vmatprep.subr.bf16.mxu0 0
  %2732 = vmatpush1.bf16.msra.mxu0 0
  %2733 = vmatprep.subr.bf16.mxu0 0
  %2734 = vmatpush1.bf16.msra.mxu0 0
  %2735 = vmatprep.subr.bf16.mxu0 0
  %2736 = vmatpush1.bf16.msra.mxu0 0
  %2737 = vmatprep.subr.bf16.mxu0 0
  %2738 = vmatpush1.bf16.msra.mxu0 0
  %2739 = vmatprep.subr.bf16.mxu0 0
  %2740 = vmatpush1.bf16.msra.mxu0 0
  %2741 = vmatprep.subr.bf16.mxu0 0
  %2742 = vmatpush1.bf16.msra.mxu0 0
  %2743 = vmatprep.subr.bf16.mxu0 0
  %2744 = vmatpush1.bf16.msra.mxu0 0
  %2745 = vmatprep.mubr.bf16.mxu0 %v2711
  %2746 = vmatmul.mubr.bf16.gmra.mrb[0].mxu0 %v2708
  %v2747 = vpop.f32.mrb[0].mxu0
  %v2748 = vadd.f32 0.0, %v2747
  %v2749 = vpop.f32.mrb[0].mxu0
  %v2750 = vadd.f32 0.0, %v2749
  %v2751 = vpop.f32.mrb[0].mxu0
  %v2752 = vpop.f32.mrb[0].mxu0
  %2753 = vdwg.mxu0
  %v2754 = vmax.f32 %v2748, 0.0
  %v2755 = vmax.f32 %v2750, 0.0
  %v2756 = vpack.c.bf16 %v2754, %v2754
  %v2757 = vpack.c.bf16 %v2755, %v2755
  %s2758 = scalar_lea.vmem %s2, 1248
  %v2759 = vld [vmem:[%s2758] sm:$0xf]
  %v2760 = vld [vmem:[%s2758 + $0x4] sm:$0xf]
  %v2761 = vld [vmem:[%s2758 + $0x8] sm:$0xf]
  %v2762 = vld [vmem:[%s2758 + $0xc] sm:$0xf]
  %v2763 = vld [vmem:[%s2758 + $0x10] sm:$0xf]
  %v2764 = vld [vmem:[%s2758 + $0x14] sm:$0xf]
  %v2765 = vld [vmem:[%s2758 + $0x18] sm:$0xf]
  %v2766 = vld [vmem:[%s2758 + $0x1c] sm:$0xf]
  %v2767 = vld [vmem:[%s2758 + $0x20] sm:$0xf]
  %v2768 = vld [vmem:[%s2758 + $0x24] sm:$0xf]
  %v2769 = vld [vmem:[%s2758 + $0x28] sm:$0xf]
  %v2770 = vld [vmem:[%s2758 + $0x2c] sm:$0xf]
  %v2771 = vld [vmem:[%s2758 + $0x30] sm:$0xf]
  %v2772 = vld [vmem:[%s2758 + $0x34] sm:$0xf]
  %v2773 = vld [vmem:[%s2758 + $0x38] sm:$0xf]
  %v2774 = vld [vmem:[%s2758 + $0x3c] sm:$0xf]
  %v2775 = vld [vmem:[%s2758 + $0x40] sm:$0xf]
  %v2776 = vld [vmem:[%s2758 + $0x44] sm:$0xf]
  %v2777 = vld [vmem:[%s2758 + $0x48] sm:$0xf]
  %v2778 = vld [vmem:[%s2758 + $0x4c] sm:$0xf]
  %v2779 = vld [vmem:[%s2758 + $0x50] sm:$0xf]
  %v2780 = vld [vmem:[%s2758 + $0x54] sm:$0xf]
  %v2781 = vld [vmem:[%s2758 + $0x58] sm:$0xf]
  %v2782 = vld [vmem:[%s2758 + $0x5c] sm:$0xf]
  %v2807 = vunpack.c.l.b16 %v2759
  %v2808 = vunpack.c.l.b16 %v2760
  %v2809 = vunpack.c.l.b16 %v2761
  %v2810 = vunpack.c.l.b16 %v2762
  %v2811 = vunpack.c.l.b16 %v2763
  %v2812 = vunpack.c.l.b16 %v2764
  %v2813 = vunpack.c.l.b16 %v2765
  %v2814 = vunpack.c.l.b16 %v2766
  %v2815 = vunpack.c.l.b16 %v2767
  %v2816 = vunpack.c.l.b16 %v2768
  %v2817 = vunpack.c.l.b16 %v2769
  %v2818 = vunpack.c.l.b16 %v2770
  %v2819 = vunpack.c.l.b16 %v2771
  %v2820 = vunpack.c.l.b16 %v2772
  %v2821 = vunpack.c.l.b16 %v2773
  %v2822 = vunpack.c.l.b16 %v2774
  %v2823 = vunpack.c.l.b16 %v2775
  %v2824 = vunpack.c.l.b16 %v2776
  %v2825 = vunpack.c.l.b16 %v2777
  %v2826 = vunpack.c.l.b16 %v2778
  %v2827 = vunpack.c.l.b16 %v2779
  %v2828 = vunpack.c.l.b16 %v2780
  %v2829 = vunpack.c.l.b16 %v2781
  %v2830 = vunpack.c.l.b16 %v2782
  %v2831 = vpack.c.b16 %v2808, %v2807
  %v2832 = vpack.c.b16 %v2810, %v2809
  %v2833 = vpack.c.b16 %v2812, %v2811
  %v2834 = vpack.c.b16 %v2814, %v2813
  %v2835 = vpack.c.b16 %v2816, %v2815
  %v2836 = vpack.c.b16 %v2818, %v2817
  %v2837 = vpack.c.b16 %v2820, %v2819
  %v2838 = vpack.c.b16 %v2822, %v2821
  %v2839 = vpack.c.b16 %v2824, %v2823
  %v2840 = vpack.c.b16 %v2826, %v2825
  %v2841 = vpack.c.b16 %v2828, %v2827
  %v2842 = vpack.c.b16 %v2830, %v2829
  %v2856 = vsel %vm363, %v2757, 0
  %2858 = vmatprep.subr.bf16.mxu0 0
  %2859 = vmatpush1.bf16.msra.mxu0 %v2831
  %2860 = vmatprep.subr.bf16.mxu0 0
  %2861 = vmatpush1.bf16.msra.mxu0 %v2832
  %2862 = vmatprep.subr.bf16.mxu0 0
  %2863 = vmatpush1.bf16.msra.mxu0 %v2833
  %2864 = vmatprep.subr.bf16.mxu0 0
  %2865 = vmatpush1.bf16.msra.mxu0 %v2834
  %2866 = vmatprep.subr.bf16.mxu0 0
  %2867 = vmatpush1.bf16.msra.mxu0 %v2835
  %2868 = vmatprep.subr.bf16.mxu0 0
  %2869 = vmatpush1.bf16.msra.mxu0 %v2836
  %2870 = vmatprep.subr.bf16.mxu0 0
  %2871 = vmatpush1.bf16.msra.mxu0 %v2837
  %2872 = vmatprep.subr.bf16.mxu0 0
  %2873 = vmatpush1.bf16.msra.mxu0 %v2838
  %2874 = vmatprep.subr.bf16.mxu0 0
  %2875 = vmatpush1.bf16.msra.mxu0 %v2839
  %2876 = vmatprep.subr.bf16.mxu0 0
  %2877 = vmatpush1.bf16.msra.mxu0 %v2840
  %2878 = vmatprep.subr.bf16.mxu0 0
  %2879 = vmatpush1.bf16.msra.mxu0 %v2841
  %2880 = vmatprep.subr.bf16.mxu0 0
  %2881 = vmatpush1.bf16.msra.mxu0 %v2842
  %2882 = vmatprep.subr.bf16.mxu0 0
  %2883 = vmatpush1.bf16.msra.mxu0 0
  %2884 = vmatprep.subr.bf16.mxu0 0
  %2885 = vmatpush1.bf16.msra.mxu0 0
  %2886 = vmatprep.subr.bf16.mxu0 0
  %2887 = vmatpush1.bf16.msra.mxu0 0
  %2888 = vmatprep.subr.bf16.mxu0 0
  %2889 = vmatpush1.bf16.msra.mxu0 0
  %2890 = vmatprep.mubr.bf16.mxu0 %v2856
  %2891 = vmatmul.mubr.bf16.gmra.mrb[0].mxu0 %v2756
  %v2892 = vpop.f32.mrb[0].mxu0
  %v2893 = vadd.f32 0.0, %v2892
  %v2894 = vpop.f32.mrb[0].mxu0
  %v2895 = vpop.f32.mrb[0].mxu0
  %v2896 = vpop.f32.mrb[0].mxu0
  %2897 = vdwg.mxu0
  %v2898 = vadd.f32 %v2702, %v2893
  %v2899 = vld [vmem:[%s0 + $0xc] sm:$0xff]
  %v2901 = vunpack.c.l.b16 %v2899
  %v2902 = vunpack.c.h.b16 %v2899
  %v2903 = vpack.c.b16 %v2901, %v2901
  %v2904 = vpack.c.b16 %v2902, %v2902
  %2905 = vrot.lane.b32.xlu0 %v2903, 120
  %v2906 = vpop.permute.xlu0 %2905
  %2907 = vrot.lane.b32.xlu0 %v2904, 120
  %v2908 = vpop.permute.xlu0 %2907
  %vm2909 = vcmask 982016
  %v2910 = vsel %vm2909, %v2906, %v2908
  %v2913 = vsel %vm131, %v2908, 0
  %2915 = vmatprep.subr.bf16.mxu0 %v98
  %2916 = vmatpush1.bf16.msra.mxu0 %v97
  %2917 = vmatprep.subr.bf16.mxu0 %v100
  %2918 = vmatpush1.bf16.msra.mxu0 %v99
  %2919 = vmatprep.subr.bf16.mxu0 %v102
  %2920 = vmatpush1.bf16.msra.mxu0 %v101
  %2921 = vmatprep.subr.bf16.mxu0 %v104
  %2922 = vmatpush1.bf16.msra.mxu0 %v103
  %2923 = vmatprep.subr.bf16.mxu0 %v106
  %2924 = vmatpush1.bf16.msra.mxu0 %v105
  %2925 = vmatprep.subr.bf16.mxu0 %v108
  %2926 = vmatpush1.bf16.msra.mxu0 %v107
  %2927 = vmatprep.subr.bf16.mxu0 %v110
  %2928 = vmatpush1.bf16.msra.mxu0 %v109
  %2929 = vmatprep.subr.bf16.mxu0 %v112
  %2930 = vmatpush1.bf16.msra.mxu0 %v111
  %2931 = vmatprep.subr.bf16.mxu0 %v140
  %2932 = vmatpush1.bf16.msra.mxu0 %v137
  %2933 = vmatprep.subr.bf16.mxu0 0
  %2934 = vmatpush1.bf16.msra.mxu0 0
  %2935 = vmatprep.subr.bf16.mxu0 0
  %2936 = vmatpush1.bf16.msra.mxu0 0
  %2937 = vmatprep.subr.bf16.mxu0 0
  %2938 = vmatpush1.bf16.msra.mxu0 0
  %2939 = vmatprep.subr.bf16.mxu0 0
  %2940 = vmatpush1.bf16.msra.mxu0 0
  %2941 = vmatprep.subr.bf16.mxu0 0
  %2942 = vmatpush1.bf16.msra.mxu0 0
  %2943 = vmatprep.subr.bf16.mxu0 0
  %2944 = vmatpush1.bf16.msra.mxu0 0
  %2945 = vmatprep.subr.bf16.mxu0 0
  %2946 = vmatpush1.bf16.msra.mxu0 0
  %2947 = vmatprep.mubr.bf16.mxu0 %v2913
  %2948 = vmatmul.mubr.bf16.gmra.mrb[0].mxu0 %v2910
  %v2949 = vpop.f32.mrb[0].mxu0
  %v2950 = vadd.f32 0.0, %v2949
  %v2951 = vpop.f32.mrb[0].mxu0
  %v2952 = vadd.f32 0.0, %v2951
  %v2953 = vpop.f32.mrb[0].mxu0
  %v2954 = vpop.f32.mrb[0].mxu0
  %2955 = vdwg.mxu0
  %v2956 = vmax.f32 %v2950, 0.0
  %v2957 = vmax.f32 %v2952, 0.0
  %v2958 = vpack.c.bf16 %v2956, %v2956
  %v2959 = vpack.c.bf16 %v2957, %v2957
  %s2960 = scalar_lea.vmem %s2, 1344
  %v2961 = vld [vmem:[%s2960] sm:$0xf]
  %v2962 = vld [vmem:[%s2960 + $0x4] sm:$0xf]
  %v2963 = vld [vmem:[%s2960 + $0x8] sm:$0xf]
  %v2964 = vld [vmem:[%s2960 + $0xc] sm:$0xf]
  %v2965 = vld [vmem:[%s2960 + $0x10] sm:$0xf]
  %v2966 = vld [vmem:[%s2960 + $0x14] sm:$0xf]
  %v2967 = vld [vmem:[%s2960 + $0x18] sm:$0xf]
  %v2968 = vld [vmem:[%s2960 + $0x1c] sm:$0xf]
  %v2969 = vld [vmem:[%s2960 + $0x20] sm:$0xf]
  %v2970 = vld [vmem:[%s2960 + $0x24] sm:$0xf]
  %v2971 = vld [vmem:[%s2960 + $0x28] sm:$0xf]
  %v2972 = vld [vmem:[%s2960 + $0x2c] sm:$0xf]
  %v2973 = vld [vmem:[%s2960 + $0x30] sm:$0xf]
  %v2974 = vld [vmem:[%s2960 + $0x34] sm:$0xf]
  %v2975 = vld [vmem:[%s2960 + $0x38] sm:$0xf]
  %v2976 = vld [vmem:[%s2960 + $0x3c] sm:$0xf]
  %v2977 = vld [vmem:[%s2960 + $0x40] sm:$0xf]
  %v2978 = vld [vmem:[%s2960 + $0x44] sm:$0xf]
  %v2979 = vld [vmem:[%s2960 + $0x48] sm:$0xf]
  %v2980 = vld [vmem:[%s2960 + $0x4c] sm:$0xf]
  %v2981 = vld [vmem:[%s2960 + $0x50] sm:$0xf]
  %v2982 = vld [vmem:[%s2960 + $0x54] sm:$0xf]
  %v2983 = vld [vmem:[%s2960 + $0x58] sm:$0xf]
  %v2984 = vld [vmem:[%s2960 + $0x5c] sm:$0xf]
  %v3009 = vunpack.c.l.b16 %v2961
  %v3010 = vunpack.c.l.b16 %v2962
  %v3011 = vunpack.c.l.b16 %v2963
  %v3012 = vunpack.c.l.b16 %v2964
  %v3013 = vunpack.c.l.b16 %v2965
  %v3014 = vunpack.c.l.b16 %v2966
  %v3015 = vunpack.c.l.b16 %v2967
  %v3016 = vunpack.c.l.b16 %v2968
  %v3017 = vunpack.c.l.b16 %v2969
  %v3018 = vunpack.c.l.b16 %v2970
  %v3019 = vunpack.c.l.b16 %v2971
  %v3020 = vunpack.c.l.b16 %v2972
  %v3021 = vunpack.c.l.b16 %v2973
  %v3022 = vunpack.c.l.b16 %v2974
  %v3023 = vunpack.c.l.b16 %v2975
  %v3024 = vunpack.c.l.b16 %v2976
  %v3025 = vunpack.c.l.b16 %v2977
  %v3026 = vunpack.c.l.b16 %v2978
  %v3027 = vunpack.c.l.b16 %v2979
  %v3028 = vunpack.c.l.b16 %v2980
  %v3029 = vunpack.c.l.b16 %v2981
  %v3030 = vunpack.c.l.b16 %v2982
  %v3031 = vunpack.c.l.b16 %v2983
  %v3032 = vunpack.c.l.b16 %v2984
  %v3033 = vpack.c.b16 %v3010, %v3009
  %v3034 = vpack.c.b16 %v3012, %v3011
  %v3035 = vpack.c.b16 %v3014, %v3013
  %v3036 = vpack.c.b16 %v3016, %v3015
  %v3037 = vpack.c.b16 %v3018, %v3017
  %v3038 = vpack.c.b16 %v3020, %v3019
  %v3039 = vpack.c.b16 %v3022, %v3021
  %v3040 = vpack.c.b16 %v3024, %v3023
  %v3041 = vpack.c.b16 %v3026, %v3025
  %v3042 = vpack.c.b16 %v3028, %v3027
  %v3043 = vpack.c.b16 %v3030, %v3029
  %v3044 = vpack.c.b16 %v3032, %v3031
  %v3058 = vsel %vm363, %v2959, 0
  %3060 = vmatprep.subr.bf16.mxu0 0
  %3061 = vmatpush1.bf16.msra.mxu0 %v3033
  %3062 = vmatprep.subr.bf16.mxu0 0
  %3063 = vmatpush1.bf16.msra.mxu0 %v3034
  %3064 = vmatprep.subr.bf16.mxu0 0
  %3065 = vmatpush1.bf16.msra.mxu0 %v3035
  %3066 = vmatprep.subr.bf16.mxu0 0
  %3067 = vmatpush1.bf16.msra.mxu0 %v3036
  %3068 = vmatprep.subr.bf16.mxu0 0
  %3069 = vmatpush1.bf16.msra.mxu0 %v3037
  %3070 = vmatprep.subr.bf16.mxu0 0
  %3071 = vmatpush1.bf16.msra.mxu0 %v3038
  %3072 = vmatprep.subr.bf16.mxu0 0
  %3073 = vmatpush1.bf16.msra.mxu0 %v3039
  %3074 = vmatprep.subr.bf16.mxu0 0
  %3075 = vmatpush1.bf16.msra.mxu0 %v3040
  %3076 = vmatprep.subr.bf16.mxu0 0
  %3077 = vmatpush1.bf16.msra.mxu0 %v3041
  %3078 = vmatprep.subr.bf16.mxu0 0
  %3079 = vmatpush1.bf16.msra.mxu0 %v3042
  %3080 = vmatprep.subr.bf16.mxu0 0
  %3081 = vmatpush1.bf16.msra.mxu0 %v3043
  %3082 = vmatprep.subr.bf16.mxu0 0
  %3083 = vmatpush1.bf16.msra.mxu0 %v3044
  %3084 = vmatprep.subr.bf16.mxu0 0
  %3085 = vmatpush1.bf16.msra.mxu0 0
  %3086 = vmatprep.subr.bf16.mxu0 0
  %3087 = vmatpush1.bf16.msra.mxu0 0
  %3088 = vmatprep.subr.bf16.mxu0 0
  %3089 = vmatpush1.bf16.msra.mxu0 0
  %3090 = vmatprep.subr.bf16.mxu0 0
  %3091 = vmatpush1.bf16.msra.mxu0 0
  %3092 = vmatprep.mubr.bf16.mxu0 %v3058
  %3093 = vmatmul.mubr.bf16.gmra.mrb[0].mxu0 %v2958
  %v3094 = vpop.f32.mrb[0].mxu0
  %v3095 = vadd.f32 0.0, %v3094
  %v3096 = vpop.f32.mrb[0].mxu0
  %v3097 = vpop.f32.mrb[0].mxu0
  %v3098 = vpop.f32.mrb[0].mxu0
  %3099 = vdwg.mxu0
  %v3100 = vadd.f32 %v2898, %v3095
  %3101 = vrot.lane.b32.xlu0 %v2903, 92
  %v3102 = vpop.permute.xlu0 %3101
  %3103 = vrot.lane.b32.xlu0 %v2904, 92
  %v3104 = vpop.permute.xlu0 %3103
  %vm3105 = vcmask 752640
  %v3106 = vsel %vm3105, %v3102, %v3104
  %v3109 = vsel %vm131, %v3104, 0
  %3111 = vmatprep.subr.bf16.mxu0 %v98
  %3112 = vmatpush1.bf16.msra.mxu0 %v97
  %3113 = vmatprep.subr.bf16.mxu0 %v100
  %3114 = vmatpush1.bf16.msra.mxu0 %v99
  %3115 = vmatprep.subr.bf16.mxu0 %v102
  %3116 = vmatpush1.bf16.msra.mxu0 %v101
  %3117 = vmatprep.subr.bf16.mxu0 %v104
  %3118 = vmatpush1.bf16.msra.mxu0 %v103
  %3119 = vmatprep.subr.bf16.mxu0 %v106
  %3120 = vmatpush1.bf16.msra.mxu0 %v105
  %3121 = vmatprep.subr.bf16.mxu0 %v108
  %3122 = vmatpush1.bf16.msra.mxu0 %v107
  %3123 = vmatprep.subr.bf16.mxu0 %v110
  %3124 = vmatpush1.bf16.msra.mxu0 %v109
  %3125 = vmatprep.subr.bf16.mxu0 %v112
  %3126 = vmatpush1.bf16.msra.mxu0 %v111
  %3127 = vmatprep.subr.bf16.mxu0 %v140
  %3128 = vmatpush1.bf16.msra.mxu0 %v137
  %3129 = vmatprep.subr.bf16.mxu0 0
  %3130 = vmatpush1.bf16.msra.mxu0 0
  %3131 = vmatprep.subr.bf16.mxu0 0
  %3132 = vmatpush1.bf16.msra.mxu0 0
  %3133 = vmatprep.subr.bf16.mxu0 0
  %3134 = vmatpush1.bf16.msra.mxu0 0
  %3135 = vmatprep.subr.bf16.mxu0 0
  %3136 = vmatpush1.bf16.msra.mxu0 0
  %3137 = vmatprep.subr.bf16.mxu0 0
  %3138 = vmatpush1.bf16.msra.mxu0 0
  %3139 = vmatprep.subr.bf16.mxu0 0
  %3140 = vmatpush1.bf16.msra.mxu0 0
  %3141 = vmatprep.subr.bf16.mxu0 0
  %3142 = vmatpush1.bf16.msra.mxu0 0
  %3143 = vmatprep.mubr.bf16.mxu0 %v3109
  %3144 = vmatmul.mubr.bf16.gmra.mrb[0].mxu0 %v3106
  %v3145 = vpop.f32.mrb[0].mxu0
  %v3146 = vadd.f32 0.0, %v3145
  %v3147 = vpop.f32.mrb[0].mxu0
  %v3148 = vadd.f32 0.0, %v3147
  %v3149 = vpop.f32.mrb[0].mxu0
  %v3150 = vpop.f32.mrb[0].mxu0
  %3151 = vdwg.mxu0
  %v3152 = vmax.f32 %v3146, 0.0
  %v3153 = vmax.f32 %v3148, 0.0
  %v3154 = vpack.c.bf16 %v3152, %v3152
  %v3155 = vpack.c.bf16 %v3153, %v3153
  %s3156 = scalar_lea.vmem %s2, 1440
  %v3157 = vld [vmem:[%s3156] sm:$0xf]
  %v3158 = vld [vmem:[%s3156 + $0x4] sm:$0xf]
  %v3159 = vld [vmem:[%s3156 + $0x8] sm:$0xf]
  %v3160 = vld [vmem:[%s3156 + $0xc] sm:$0xf]
  %v3161 = vld [vmem:[%s3156 + $0x10] sm:$0xf]
  %v3162 = vld [vmem:[%s3156 + $0x14] sm:$0xf]
  %v3163 = vld [vmem:[%s3156 + $0x18] sm:$0xf]
  %v3164 = vld [vmem:[%s3156 + $0x1c] sm:$0xf]
  %v3165 = vld [vmem:[%s3156 + $0x20] sm:$0xf]
  %v3166 = vld [vmem:[%s3156 + $0x24] sm:$0xf]
  %v3167 = vld [vmem:[%s3156 + $0x28] sm:$0xf]
  %v3168 = vld [vmem:[%s3156 + $0x2c] sm:$0xf]
  %v3169 = vld [vmem:[%s3156 + $0x30] sm:$0xf]
  %v3170 = vld [vmem:[%s3156 + $0x34] sm:$0xf]
  %v3171 = vld [vmem:[%s3156 + $0x38] sm:$0xf]
  %v3172 = vld [vmem:[%s3156 + $0x3c] sm:$0xf]
  %v3173 = vld [vmem:[%s3156 + $0x40] sm:$0xf]
  %v3174 = vld [vmem:[%s3156 + $0x44] sm:$0xf]
  %v3175 = vld [vmem:[%s3156 + $0x48] sm:$0xf]
  %v3176 = vld [vmem:[%s3156 + $0x4c] sm:$0xf]
  %v3177 = vld [vmem:[%s3156 + $0x50] sm:$0xf]
  %v3178 = vld [vmem:[%s3156 + $0x54] sm:$0xf]
  %v3179 = vld [vmem:[%s3156 + $0x58] sm:$0xf]
  %v3180 = vld [vmem:[%s3156 + $0x5c] sm:$0xf]
  %v3205 = vunpack.c.l.b16 %v3157
  %v3206 = vunpack.c.l.b16 %v3158
  %v3207 = vunpack.c.l.b16 %v3159
  %v3208 = vunpack.c.l.b16 %v3160
  %v3209 = vunpack.c.l.b16 %v3161
  %v3210 = vunpack.c.l.b16 %v3162
  %v3211 = vunpack.c.l.b16 %v3163
  %v3212 = vunpack.c.l.b16 %v3164
  %v3213 = vunpack.c.l.b16 %v3165
  %v3214 = vunpack.c.l.b16 %v3166
  %v3215 = vunpack.c.l.b16 %v3167
  %v3216 = vunpack.c.l.b16 %v3168
  %v3217 = vunpack.c.l.b16 %v3169
  %v3218 = vunpack.c.l.b16 %v3170
  %v3219 = vunpack.c.l.b16 %v3171
  %v3220 = vunpack.c.l.b16 %v3172
  %v3221 = vunpack.c.l.b16 %v3173
  %v3222 = vunpack.c.l.b16 %v3174
  %v3223 = vunpack.c.l.b16 %v3175
  %v3224 = vunpack.c.l.b16 %v3176
  %v3225 = vunpack.c.l.b16 %v3177
  %v3226 = vunpack.c.l.b16 %v3178
  %v3227 = vunpack.c.l.b16 %v3179
  %v3228 = vunpack.c.l.b16 %v3180
  %v3229 = vpack.c.b16 %v3206, %v3205
  %v3230 = vpack.c.b16 %v3208, %v3207
  %v3231 = vpack.c.b16 %v3210, %v3209
  %v3232 = vpack.c.b16 %v3212, %v3211
  %v3233 = vpack.c.b16 %v3214, %v3213
  %v3234 = vpack.c.b16 %v3216, %v3215
  %v3235 = vpack.c.b16 %v3218, %v3217
  %v3236 = vpack.c.b16 %v3220, %v3219
  %v3237 = vpack.c.b16 %v3222, %v3221
  %v3238 = vpack.c.b16 %v3224, %v3223
  %v3239 = vpack.c.b16 %v3226, %v3225
  %v3240 = vpack.c.b16 %v3228, %v3227
  %v3254 = vsel %vm363, %v3155, 0
  %3256 = vmatprep.subr.bf16.mxu0 0
  %3257 = vmatpush1.bf16.msra.mxu0 %v3229
  %3258 = vmatprep.subr.bf16.mxu0 0
  %3259 = vmatpush1.bf16.msra.mxu0 %v3230
  %3260 = vmatprep.subr.bf16.mxu0 0
  %3261 = vmatpush1.bf16.msra.mxu0 %v3231
  %3262 = vmatprep.subr.bf16.mxu0 0
  %3263 = vmatpush1.bf16.msra.mxu0 %v3232
  %3264 = vmatprep.subr.bf16.mxu0 0
  %3265 = vmatpush1.bf16.msra.mxu0 %v3233
  %3266 = vmatprep.subr.bf16.mxu0 0
  %3267 = vmatpush1.bf16.msra.mxu0 %v3234
  %3268 = vmatprep.subr.bf16.mxu0 0
  %3269 = vmatpush1.bf16.msra.mxu0 %v3235
  %3270 = vmatprep.subr.bf16.mxu0 0
  %3271 = vmatpush1.bf16.msra.mxu0 %v3236
  %3272 = vmatprep.subr.bf16.mxu0 0
  %3273 = vmatpush1.bf16.msra.mxu0 %v3237
  %3274 = vmatprep.subr.bf16.mxu0 0
  %3275 = vmatpush1.bf16.msra.mxu0 %v3238
  %3276 = vmatprep.subr.bf16.mxu0 0
  %3277 = vmatpush1.bf16.msra.mxu0 %v3239
  %3278 = vmatprep.subr.bf16.mxu0 0
  %3279 = vmatpush1.bf16.msra.mxu0 %v3240
  %3280 = vmatprep.subr.bf16.mxu0 0
  %3281 = vmatpush1.bf16.msra.mxu0 0
  %3282 = vmatprep.subr.bf16.mxu0 0
  %3283 = vmatpush1.bf16.msra.mxu0 0
  %3284 = vmatprep.subr.bf16.mxu0 0
  %3285 = vmatpush1.bf16.msra.mxu0 0
  %3286 = vmatprep.subr.bf16.mxu0 0
  %3287 = vmatpush1.bf16.msra.mxu0 0
  %3288 = vmatprep.mubr.bf16.mxu0 %v3254
  %3289 = vmatmul.mubr.bf16.gmra.mrb[0].mxu0 %v3154
  %v3290 = vpop.f32.mrb[0].mxu0
  %v3291 = vadd.f32 0.0, %v3290
  %v3292 = vpop.f32.mrb[0].mxu0
  %v3293 = vpop.f32.mrb[0].mxu0
  %v3294 = vpop.f32.mrb[0].mxu0
  %3295 = vdwg.mxu0
  %v3296 = vadd.f32 %v3100, %v3291
  %3297 = vrot.lane.b32.xlu0 %v2903, 64
  %v3298 = vpop.permute.xlu0 %3297
  %3299 = vrot.lane.b32.xlu0 %v2904, 64
  %v3300 = vpop.permute.xlu0 %3299
  %vm3301 = vcmask 523264
  %v3302 = vsel %vm3301, %v3298, %v3300
  %v3305 = vsel %vm131, %v3300, 0
  %3307 = vmatprep.subr.bf16.mxu0 %v98
  %3308 = vmatpush1.bf16.msra.mxu0 %v97
  %3309 = vmatprep.subr.bf16.mxu0 %v100
  %3310 = vmatpush1.bf16.msra.mxu0 %v99
  %3311 = vmatprep.subr.bf16.mxu0 %v102
  %3312 = vmatpush1.bf16.msra.mxu0 %v101
  %3313 = vmatprep.subr.bf16.mxu0 %v104
  %3314 = vmatpush1.bf16.msra.mxu0 %v103
  %3315 = vmatprep.subr.bf16.mxu0 %v106
  %3316 = vmatpush1.bf16.msra.mxu0 %v105
  %3317 = vmatprep.subr.bf16.mxu0 %v108
  %3318 = vmatpush1.bf16.msra.mxu0 %v107
  %3319 = vmatprep.subr.bf16.mxu0 %v110
  %3320 = vmatpush1.bf16.msra.mxu0 %v109
  %3321 = vmatprep.subr.bf16.mxu0 %v112
  %3322 = vmatpush1.bf16.msra.mxu0 %v111
  %3323 = vmatprep.subr.bf16.mxu0 %v140
  %3324 = vmatpush1.bf16.msra.mxu0 %v137
  %3325 = vmatprep.subr.bf16.mxu0 0
  %3326 = vmatpush1.bf16.msra.mxu0 0
  %3327 = vmatprep.subr.bf16.mxu0 0
  %3328 = vmatpush1.bf16.msra.mxu0 0
  %3329 = vmatprep.subr.bf16.mxu0 0
  %3330 = vmatpush1.bf16.msra.mxu0 0
  %3331 = vmatprep.subr.bf16.mxu0 0
  %3332 = vmatpush1.bf16.msra.mxu0 0
  %3333 = vmatprep.subr.bf16.mxu0 0
  %3334 = vmatpush1.bf16.msra.mxu0 0
  %3335 = vmatprep.subr.bf16.mxu0 0
  %3336 = vmatpush1.bf16.msra.mxu0 0
  %3337 = vmatprep.subr.bf16.mxu0 0
  %3338 = vmatpush1.bf16.msra.mxu0 0
  %3339 = vmatprep.mubr.bf16.mxu0 %v3305
  %3340 = vmatmul.mubr.bf16.gmra.mrb[0].mxu0 %v3302
  %v3341 = vpop.f32.mrb[0].mxu0
  %v3342 = vadd.f32 0.0, %v3341
  %v3343 = vpop.f32.mrb[0].mxu0
  %v3344 = vadd.f32 0.0, %v3343
  %v3345 = vpop.f32.mrb[0].mxu0
  %v3346 = vpop.f32.mrb[0].mxu0
  %3347 = vdwg.mxu0
  %v3348 = vmax.f32 %v3342, 0.0
  %v3349 = vmax.f32 %v3344, 0.0
  %v3350 = vpack.c.bf16 %v3348, %v3348
  %v3351 = vpack.c.bf16 %v3349, %v3349
  %s3352 = scalar_lea.vmem %s2, 1536
  %v3353 = vld [vmem:[%s3352] sm:$0xf]
  %v3354 = vld [vmem:[%s3352 + $0x4] sm:$0xf]
  %v3355 = vld [vmem:[%s3352 + $0x8] sm:$0xf]
  %v3356 = vld [vmem:[%s3352 + $0xc] sm:$0xf]
  %v3357 = vld [vmem:[%s3352 + $0x10] sm:$0xf]
  %v3358 = vld [vmem:[%s3352 + $0x14] sm:$0xf]
  %v3359 = vld [vmem:[%s3352 + $0x18] sm:$0xf]
  %v3360 = vld [vmem:[%s3352 + $0x1c] sm:$0xf]
  %v3361 = vld [vmem:[%s3352 + $0x20] sm:$0xf]
  %v3362 = vld [vmem:[%s3352 + $0x24] sm:$0xf]
  %v3363 = vld [vmem:[%s3352 + $0x28] sm:$0xf]
  %v3364 = vld [vmem:[%s3352 + $0x2c] sm:$0xf]
  %v3365 = vld [vmem:[%s3352 + $0x30] sm:$0xf]
  %v3366 = vld [vmem:[%s3352 + $0x34] sm:$0xf]
  %v3367 = vld [vmem:[%s3352 + $0x38] sm:$0xf]
  %v3368 = vld [vmem:[%s3352 + $0x3c] sm:$0xf]
  %v3369 = vld [vmem:[%s3352 + $0x40] sm:$0xf]
  %v3370 = vld [vmem:[%s3352 + $0x44] sm:$0xf]
  %v3371 = vld [vmem:[%s3352 + $0x48] sm:$0xf]
  %v3372 = vld [vmem:[%s3352 + $0x4c] sm:$0xf]
  %v3373 = vld [vmem:[%s3352 + $0x50] sm:$0xf]
  %v3374 = vld [vmem:[%s3352 + $0x54] sm:$0xf]
  %v3375 = vld [vmem:[%s3352 + $0x58] sm:$0xf]
  %v3376 = vld [vmem:[%s3352 + $0x5c] sm:$0xf]
  %v3401 = vunpack.c.l.b16 %v3353
  %v3402 = vunpack.c.l.b16 %v3354
  %v3403 = vunpack.c.l.b16 %v3355
  %v3404 = vunpack.c.l.b16 %v3356
  %v3405 = vunpack.c.l.b16 %v3357
  %v3406 = vunpack.c.l.b16 %v3358
  %v3407 = vunpack.c.l.b16 %v3359
  %v3408 = vunpack.c.l.b16 %v3360
  %v3409 = vunpack.c.l.b16 %v3361
  %v3410 = vunpack.c.l.b16 %v3362
  %v3411 = vunpack.c.l.b16 %v3363
  %v3412 = vunpack.c.l.b16 %v3364
  %v3413 = vunpack.c.l.b16 %v3365
  %v3414 = vunpack.c.l.b16 %v3366
  %v3415 = vunpack.c.l.b16 %v3367
  %v3416 = vunpack.c.l.b16 %v3368
  %v3417 = vunpack.c.l.b16 %v3369
  %v3418 = vunpack.c.l.b16 %v3370
  %v3419 = vunpack.c.l.b16 %v3371
  %v3420 = vunpack.c.l.b16 %v3372
  %v3421 = vunpack.c.l.b16 %v3373
  %v3422 = vunpack.c.l.b16 %v3374
  %v3423 = vunpack.c.l.b16 %v3375
  %v3424 = vunpack.c.l.b16 %v3376
  %v3425 = vpack.c.b16 %v3402, %v3401
  %v3426 = vpack.c.b16 %v3404, %v3403
  %v3427 = vpack.c.b16 %v3406, %v3405
  %v3428 = vpack.c.b16 %v3408, %v3407
  %v3429 = vpack.c.b16 %v3410, %v3409
  %v3430 = vpack.c.b16 %v3412, %v3411
  %v3431 = vpack.c.b16 %v3414, %v3413
  %v3432 = vpack.c.b16 %v3416, %v3415
  %v3433 = vpack.c.b16 %v3418, %v3417
  %v3434 = vpack.c.b16 %v3420, %v3419
  %v3435 = vpack.c.b16 %v3422, %v3421
  %v3436 = vpack.c.b16 %v3424, %v3423
  %v3450 = vsel %vm363, %v3351, 0
  %3452 = vmatprep.subr.bf16.mxu0 0
  %3453 = vmatpush1.bf16.msra.mxu0 %v3425
  %3454 = vmatprep.subr.bf16.mxu0 0
  %3455 = vmatpush1.bf16.msra.mxu0 %v3426
  %3456 = vmatprep.subr.bf16.mxu0 0
  %3457 = vmatpush1.bf16.msra.mxu0 %v3427
  %3458 = vmatprep.subr.bf16.mxu0 0
  %3459 = vmatpush1.bf16.msra.mxu0 %v3428
  %3460 = vmatprep.subr.bf16.mxu0 0
  %3461 = vmatpush1.bf16.msra.mxu0 %v3429
  %3462 = vmatprep.subr.bf16.mxu0 0
  %3463 = vmatpush1.bf16.msra.mxu0 %v3430
  %3464 = vmatprep.subr.bf16.mxu0 0
  %3465 = vmatpush1.bf16.msra.mxu0 %v3431
  %3466 = vmatprep.subr.bf16.mxu0 0
  %3467 = vmatpush1.bf16.msra.mxu0 %v3432
  %3468 = vmatprep.subr.bf16.mxu0 0
  %3469 = vmatpush1.bf16.msra.mxu0 %v3433
  %3470 = vmatprep.subr.bf16.mxu0 0
  %3471 = vmatpush1.bf16.msra.mxu0 %v3434
  %3472 = vmatprep.subr.bf16.mxu0 0
  %3473 = vmatpush1.bf16.msra.mxu0 %v3435
  %3474 = vmatprep.subr.bf16.mxu0 0
  %3475 = vmatpush1.bf16.msra.mxu0 %v3436
  %3476 = vmatprep.subr.bf16.mxu0 0
  %3477 = vmatpush1.bf16.msra.mxu0 0
  %3478 = vmatprep.subr.bf16.mxu0 0
  %3479 = vmatpush1.bf16.msra.mxu0 0
  %3480 = vmatprep.subr.bf16.mxu0 0
  %3481 = vmatpush1.bf16.msra.mxu0 0
  %3482 = vmatprep.subr.bf16.mxu0 0
  %3483 = vmatpush1.bf16.msra.mxu0 0
  %3484 = vmatprep.mubr.bf16.mxu0 %v3450
  %3485 = vmatmul.mubr.bf16.gmra.mrb[0].mxu0 %v3350
  %v3486 = vpop.f32.mrb[0].mxu0
  %v3487 = vadd.f32 0.0, %v3486
  %v3488 = vpop.f32.mrb[0].mxu0
  %v3489 = vpop.f32.mrb[0].mxu0
  %v3490 = vpop.f32.mrb[0].mxu0
  %3491 = vdwg.mxu0
  %v3492 = vadd.f32 %v3296, %v3487
  %3493 = vrot.lane.b32.xlu0 %v2903, 36
  %v3494 = vpop.permute.xlu0 %3493
  %3495 = vrot.lane.b32.xlu0 %v2904, 36
  %v3496 = vpop.permute.xlu0 %3495
  %vm3497 = vcmask 293888
  %v3498 = vsel %vm3497, %v3494, %v3496
  %v3501 = vsel %vm131, %v3496, 0
  %3503 = vmatprep.subr.bf16.mxu0 %v98
  %3504 = vmatpush1.bf16.msra.mxu0 %v97
  %3505 = vmatprep.subr.bf16.mxu0 %v100
  %3506 = vmatpush1.bf16.msra.mxu0 %v99
  %3507 = vmatprep.subr.bf16.mxu0 %v102
  %3508 = vmatpush1.bf16.msra.mxu0 %v101
  %3509 = vmatprep.subr.bf16.mxu0 %v104
  %3510 = vmatpush1.bf16.msra.mxu0 %v103
  %3511 = vmatprep.subr.bf16.mxu0 %v106
  %3512 = vmatpush1.bf16.msra.mxu0 %v105
  %3513 = vmatprep.subr.bf16.mxu0 %v108
  %3514 = vmatpush1.bf16.msra.mxu0 %v107
  %3515 = vmatprep.subr.bf16.mxu0 %v110
  %3516 = vmatpush1.bf16.msra.mxu0 %v109
  %3517 = vmatprep.subr.bf16.mxu0 %v112
  %3518 = vmatpush1.bf16.msra.mxu0 %v111
  %3519 = vmatprep.subr.bf16.mxu0 %v140
  %3520 = vmatpush1.bf16.msra.mxu0 %v137
  %3521 = vmatprep.subr.bf16.mxu0 0
  %3522 = vmatpush1.bf16.msra.mxu0 0
  %3523 = vmatprep.subr.bf16.mxu0 0
  %3524 = vmatpush1.bf16.msra.mxu0 0
  %3525 = vmatprep.subr.bf16.mxu0 0
  %3526 = vmatpush1.bf16.msra.mxu0 0
  %3527 = vmatprep.subr.bf16.mxu0 0
  %3528 = vmatpush1.bf16.msra.mxu0 0
  %3529 = vmatprep.subr.bf16.mxu0 0
  %3530 = vmatpush1.bf16.msra.mxu0 0
  %3531 = vmatprep.subr.bf16.mxu0 0
  %3532 = vmatpush1.bf16.msra.mxu0 0
  %3533 = vmatprep.subr.bf16.mxu0 0
  %3534 = vmatpush1.bf16.msra.mxu0 0
  %3535 = vmatprep.mubr.bf16.mxu0 %v3501
  %3536 = vmatmul.mubr.bf16.gmra.mrb[0].mxu0 %v3498
  %v3537 = vpop.f32.mrb[0].mxu0
  %v3538 = vadd.f32 0.0, %v3537
  %v3539 = vpop.f32.mrb[0].mxu0
  %v3540 = vadd.f32 0.0, %v3539
  %v3541 = vpop.f32.mrb[0].mxu0
  %v3542 = vpop.f32.mrb[0].mxu0
  %3543 = vdwg.mxu0
  %v3544 = vmax.f32 %v3538, 0.0
  %v3545 = vmax.f32 %v3540, 0.0
  %v3546 = vpack.c.bf16 %v3544, %v3544
  %v3547 = vpack.c.bf16 %v3545, %v3545
  %s3548 = scalar_lea.vmem %s2, 1632
  %v3549 = vld [vmem:[%s3548] sm:$0xf]
  %v3550 = vld [vmem:[%s3548 + $0x4] sm:$0xf]
  %v3551 = vld [vmem:[%s3548 + $0x8] sm:$0xf]
  %v3552 = vld [vmem:[%s3548 + $0xc] sm:$0xf]
  %v3553 = vld [vmem:[%s3548 + $0x10] sm:$0xf]
  %v3554 = vld [vmem:[%s3548 + $0x14] sm:$0xf]
  %v3555 = vld [vmem:[%s3548 + $0x18] sm:$0xf]
  %v3556 = vld [vmem:[%s3548 + $0x1c] sm:$0xf]
  %v3557 = vld [vmem:[%s3548 + $0x20] sm:$0xf]
  %v3558 = vld [vmem:[%s3548 + $0x24] sm:$0xf]
  %v3559 = vld [vmem:[%s3548 + $0x28] sm:$0xf]
  %v3560 = vld [vmem:[%s3548 + $0x2c] sm:$0xf]
  %v3561 = vld [vmem:[%s3548 + $0x30] sm:$0xf]
  %v3562 = vld [vmem:[%s3548 + $0x34] sm:$0xf]
  %v3563 = vld [vmem:[%s3548 + $0x38] sm:$0xf]
  %v3564 = vld [vmem:[%s3548 + $0x3c] sm:$0xf]
  %v3565 = vld [vmem:[%s3548 + $0x40] sm:$0xf]
  %v3566 = vld [vmem:[%s3548 + $0x44] sm:$0xf]
  %v3567 = vld [vmem:[%s3548 + $0x48] sm:$0xf]
  %v3568 = vld [vmem:[%s3548 + $0x4c] sm:$0xf]
  %v3569 = vld [vmem:[%s3548 + $0x50] sm:$0xf]
  %v3570 = vld [vmem:[%s3548 + $0x54] sm:$0xf]
  %v3571 = vld [vmem:[%s3548 + $0x58] sm:$0xf]
  %v3572 = vld [vmem:[%s3548 + $0x5c] sm:$0xf]
  %v3597 = vunpack.c.l.b16 %v3549
  %v3598 = vunpack.c.l.b16 %v3550
  %v3599 = vunpack.c.l.b16 %v3551
  %v3600 = vunpack.c.l.b16 %v3552
  %v3601 = vunpack.c.l.b16 %v3553
  %v3602 = vunpack.c.l.b16 %v3554
  %v3603 = vunpack.c.l.b16 %v3555
  %v3604 = vunpack.c.l.b16 %v3556
  %v3605 = vunpack.c.l.b16 %v3557
  %v3606 = vunpack.c.l.b16 %v3558
  %v3607 = vunpack.c.l.b16 %v3559
  %v3608 = vunpack.c.l.b16 %v3560
  %v3609 = vunpack.c.l.b16 %v3561
  %v3610 = vunpack.c.l.b16 %v3562
  %v3611 = vunpack.c.l.b16 %v3563
  %v3612 = vunpack.c.l.b16 %v3564
  %v3613 = vunpack.c.l.b16 %v3565
  %v3614 = vunpack.c.l.b16 %v3566
  %v3615 = vunpack.c.l.b16 %v3567
  %v3616 = vunpack.c.l.b16 %v3568
  %v3617 = vunpack.c.l.b16 %v3569
  %v3618 = vunpack.c.l.b16 %v3570
  %v3619 = vunpack.c.l.b16 %v3571
  %v3620 = vunpack.c.l.b16 %v3572
  %v3621 = vpack.c.b16 %v3598, %v3597
  %v3622 = vpack.c.b16 %v3600, %v3599
  %v3623 = vpack.c.b16 %v3602, %v3601
  %v3624 = vpack.c.b16 %v3604, %v3603
  %v3625 = vpack.c.b16 %v3606, %v3605
  %v3626 = vpack.c.b16 %v3608, %v3607
  %v3627 = vpack.c.b16 %v3610, %v3609
  %v3628 = vpack.c.b16 %v3612, %v3611
  %v3629 = vpack.c.b16 %v3614, %v3613
  %v3630 = vpack.c.b16 %v3616, %v3615
  %v3631 = vpack.c.b16 %v3618, %v3617
  %v3632 = vpack.c.b16 %v3620, %v3619
  %v3646 = vsel %vm363, %v3547, 0
  %3648 = vmatprep.subr.bf16.mxu0 0
  %3649 = vmatpush1.bf16.msra.mxu0 %v3621
  %3650 = vmatprep.subr.bf16.mxu0 0
  %3651 = vmatpush1.bf16.msra.mxu0 %v3622
  %3652 = vmatprep.subr.bf16.mxu0 0
  %3653 = vmatpush1.bf16.msra.mxu0 %v3623
  %3654 = vmatprep.subr.bf16.mxu0 0
  %3655 = vmatpush1.bf16.msra.mxu0 %v3624
  %3656 = vmatprep.subr.bf16.mxu0 0
  %3657 = vmatpush1.bf16.msra.mxu0 %v3625
  %3658 = vmatprep.subr.bf16.mxu0 0
  %3659 = vmatpush1.bf16.msra.mxu0 %v3626
  %3660 = vmatprep.subr.bf16.mxu0 0
  %3661 = vmatpush1.bf16.msra.mxu0 %v3627
  %3662 = vmatprep.subr.bf16.mxu0 0
  %3663 = vmatpush1.bf16.msra.mxu0 %v3628
  %3664 = vmatprep.subr.bf16.mxu0 0
  %3665 = vmatpush1.bf16.msra.mxu0 %v3629
  %3666 = vmatprep.subr.bf16.mxu0 0
  %3667 = vmatpush1.bf16.msra.mxu0 %v3630
  %3668 = vmatprep.subr.bf16.mxu0 0
  %3669 = vmatpush1.bf16.msra.mxu0 %v3631
  %3670 = vmatprep.subr.bf16.mxu0 0
  %3671 = vmatpush1.bf16.msra.mxu0 %v3632
  %3672 = vmatprep.subr.bf16.mxu0 0
  %3673 = vmatpush1.bf16.msra.mxu0 0
  %3674 = vmatprep.subr.bf16.mxu0 0
  %3675 = vmatpush1.bf16.msra.mxu0 0
  %3676 = vmatprep.subr.bf16.mxu0 0
  %3677 = vmatpush1.bf16.msra.mxu0 0
  %3678 = vmatprep.subr.bf16.mxu0 0
  %3679 = vmatpush1.bf16.msra.mxu0 0
  %3680 = vmatprep.mubr.bf16.mxu0 %v3646
  %3681 = vmatmul.mubr.bf16.gmra.mrb[0].mxu0 %v3546
  %v3682 = vpop.f32.mrb[0].mxu0
  %v3683 = vadd.f32 0.0, %v3682
  %v3684 = vpop.f32.mrb[0].mxu0
  %v3685 = vpop.f32.mrb[0].mxu0
  %v3686 = vpop.f32.mrb[0].mxu0
  %3687 = vdwg.mxu0
  %v3688 = vadd.f32 %v3492, %v3683
  %v3689 = vld [vmem:[%s0 + $0xc] sm:$0xff]
  %v3690 = vld [vmem:[%s0 + $0x14] sm:$0xf]
  %v3693 = vunpack.c.l.b16 %v3689
  %v3694 = vunpack.c.h.b16 %v3689
  %v3695 = vunpack.c.l.b16 %v3690
  %v3696 = vpack.c.b16 %v3693, %v3693
  %v3697 = vpack.c.b16 %v3694, %v3694
  %v3698 = vpack.c.b16 %v3695, %v3695
  %3699 = vrot.lane.b32.xlu0 %v3696, 8
  %v3700 = vpop.permute.xlu0 %3699
  %3701 = vrot.lane.b32.xlu0 %v3697, 8
  %v3702 = vpop.permute.xlu0 %3701
  %3703 = vrot.lane.b32.xlu0 %v3698, 8
  %v3704 = vpop.permute.xlu0 %3703
  %vm3705 = vcmask 64512
  %v3706 = vsel %vm3705, %v3700, %v3702
  %v3707 = vsel %vm3705, %v3702, %v3704
  %v3710 = vsel %vm131, %v3707, 0
  %3712 = vmatprep.subr.bf16.mxu0 %v98
  %3713 = vmatpush1.bf16.msra.mxu0 %v97
  %3714 = vmatprep.subr.bf16.mxu0 %v100
  %3715 = vmatpush1.bf16.msra.mxu0 %v99
  %3716 = vmatprep.subr.bf16.mxu0 %v102
  %3717 = vmatpush1.bf16.msra.mxu0 %v101
  %3718 = vmatprep.subr.bf16.mxu0 %v104
  %3719 = vmatpush1.bf16.msra.mxu0 %v103
  %3720 = vmatprep.subr.bf16.mxu0 %v106
  %3721 = vmatpush1.bf16.msra.mxu0 %v105
  %3722 = vmatprep.subr.bf16.mxu0 %v108
  %3723 = vmatpush1.bf16.msra.mxu0 %v107
  %3724 = vmatprep.subr.bf16.mxu0 %v110
  %3725 = vmatpush1.bf16.msra.mxu0 %v109
  %3726 = vmatprep.subr.bf16.mxu0 %v112
  %3727 = vmatpush1.bf16.msra.mxu0 %v111
  %3728 = vmatprep.subr.bf16.mxu0 %v140
  %3729 = vmatpush1.bf16.msra.mxu0 %v137
  %3730 = vmatprep.subr.bf16.mxu0 0
  %3731 = vmatpush1.bf16.msra.mxu0 0
  %3732 = vmatprep.subr.bf16.mxu0 0
  %3733 = vmatpush1.bf16.msra.mxu0 0
  %3734 = vmatprep.subr.bf16.mxu0 0
  %3735 = vmatpush1.bf16.msra.mxu0 0
  %3736 = vmatprep.subr.bf16.mxu0 0
  %3737 = vmatpush1.bf16.msra.mxu0 0
  %3738 = vmatprep.subr.bf16.mxu0 0
  %3739 = vmatpush1.bf16.msra.mxu0 0
  %3740 = vmatprep.subr.bf16.mxu0 0
  %3741 = vmatpush1.bf16.msra.mxu0 0
  %3742 = vmatprep.subr.bf16.mxu0 0
  %3743 = vmatpush1.bf16.msra.mxu0 0
  %3744 = vmatprep.mubr.bf16.mxu0 %v3710
  %3745 = vmatmul.mubr.bf16.gmra.mrb[0].mxu0 %v3706
  %v3746 = vpop.f32.mrb[0].mxu0
  %v3747 = vadd.f32 0.0, %v3746
  %v3748 = vpop.f32.mrb[0].mxu0
  %v3749 = vadd.f32 0.0, %v3748
  %v3750 = vpop.f32.mrb[0].mxu0
  %v3751 = vpop.f32.mrb[0].mxu0
  %3752 = vdwg.mxu0
  %v3753 = vmax.f32 %v3747, 0.0
  %v3754 = vmax.f32 %v3749, 0.0
  %v3755 = vpack.c.bf16 %v3753, %v3753
  %v3756 = vpack.c.bf16 %v3754, %v3754
  %s3757 = scalar_lea.vmem %s2, 1728
  %v3758 = vld [vmem:[%s3757] sm:$0xf]
  %v3759 = vld [vmem:[%s3757 + $0x4] sm:$0xf]
  %v3760 = vld [vmem:[%s3757 + $0x8] sm:$0xf]
  %v3761 = vld [vmem:[%s3757 + $0xc] sm:$0xf]
  %v3762 = vld [vmem:[%s3757 + $0x10] sm:$0xf]
  %v3763 = vld [vmem:[%s3757 + $0x14] sm:$0xf]
  %v3764 = vld [vmem:[%s3757 + $0x18] sm:$0xf]
  %v3765 = vld [vmem:[%s3757 + $0x1c] sm:$0xf]
  %v3766 = vld [vmem:[%s3757 + $0x20] sm:$0xf]
  %v3767 = vld [vmem:[%s3757 + $0x24] sm:$0xf]
  %v3768 = vld [vmem:[%s3757 + $0x28] sm:$0xf]
  %v3769 = vld [vmem:[%s3757 + $0x2c] sm:$0xf]
  %v3770 = vld [vmem:[%s3757 + $0x30] sm:$0xf]
  %v3771 = vld [vmem:[%s3757 + $0x34] sm:$0xf]
  %v3772 = vld [vmem:[%s3757 + $0x38] sm:$0xf]
  %v3773 = vld [vmem:[%s3757 + $0x3c] sm:$0xf]
  %v3774 = vld [vmem:[%s3757 + $0x40] sm:$0xf]
  %v3775 = vld [vmem:[%s3757 + $0x44] sm:$0xf]
  %v3776 = vld [vmem:[%s3757 + $0x48] sm:$0xf]
  %v3777 = vld [vmem:[%s3757 + $0x4c] sm:$0xf]
  %v3778 = vld [vmem:[%s3757 + $0x50] sm:$0xf]
  %v3779 = vld [vmem:[%s3757 + $0x54] sm:$0xf]
  %v3780 = vld [vmem:[%s3757 + $0x58] sm:$0xf]
  %v3781 = vld [vmem:[%s3757 + $0x5c] sm:$0xf]
  %v3806 = vunpack.c.l.b16 %v3758
  %v3807 = vunpack.c.l.b16 %v3759
  %v3808 = vunpack.c.l.b16 %v3760
  %v3809 = vunpack.c.l.b16 %v3761
  %v3810 = vunpack.c.l.b16 %v3762
  %v3811 = vunpack.c.l.b16 %v3763
  %v3812 = vunpack.c.l.b16 %v3764
  %v3813 = vunpack.c.l.b16 %v3765
  %v3814 = vunpack.c.l.b16 %v3766
  %v3815 = vunpack.c.l.b16 %v3767
  %v3816 = vunpack.c.l.b16 %v3768
  %v3817 = vunpack.c.l.b16 %v3769
  %v3818 = vunpack.c.l.b16 %v3770
  %v3819 = vunpack.c.l.b16 %v3771
  %v3820 = vunpack.c.l.b16 %v3772
  %v3821 = vunpack.c.l.b16 %v3773
  %v3822 = vunpack.c.l.b16 %v3774
  %v3823 = vunpack.c.l.b16 %v3775
  %v3824 = vunpack.c.l.b16 %v3776
  %v3825 = vunpack.c.l.b16 %v3777
  %v3826 = vunpack.c.l.b16 %v3778
  %v3827 = vunpack.c.l.b16 %v3779
  %v3828 = vunpack.c.l.b16 %v3780
  %v3829 = vunpack.c.l.b16 %v3781
  %v3830 = vpack.c.b16 %v3807, %v3806
  %v3831 = vpack.c.b16 %v3809, %v3808
  %v3832 = vpack.c.b16 %v3811, %v3810
  %v3833 = vpack.c.b16 %v3813, %v3812
  %v3834 = vpack.c.b16 %v3815, %v3814
  %v3835 = vpack.c.b16 %v3817, %v3816
  %v3836 = vpack.c.b16 %v3819, %v3818
  %v3837 = vpack.c.b16 %v3821, %v3820
  %v3838 = vpack.c.b16 %v3823, %v3822
  %v3839 = vpack.c.b16 %v3825, %v3824
  %v3840 = vpack.c.b16 %v3827, %v3826
  %v3841 = vpack.c.b16 %v3829, %v3828
  %v3855 = vsel %vm363, %v3756, 0
  %3857 = vmatprep.subr.bf16.mxu0 0
  %3858 = vmatpush1.bf16.msra.mxu0 %v3830
  %3859 = vmatprep.subr.bf16.mxu0 0
  %3860 = vmatpush1.bf16.msra.mxu0 %v3831
  %3861 = vmatprep.subr.bf16.mxu0 0
  %3862 = vmatpush1.bf16.msra.mxu0 %v3832
  %3863 = vmatprep.subr.bf16.mxu0 0
  %3864 = vmatpush1.bf16.msra.mxu0 %v3833
  %3865 = vmatprep.subr.bf16.mxu0 0
  %3866 = vmatpush1.bf16.msra.mxu0 %v3834
  %3867 = vmatprep.subr.bf16.mxu0 0
  %3868 = vmatpush1.bf16.msra.mxu0 %v3835
  %3869 = vmatprep.subr.bf16.mxu0 0
  %3870 = vmatpush1.bf16.msra.mxu0 %v3836
  %3871 = vmatprep.subr.bf16.mxu0 0
  %3872 = vmatpush1.bf16.msra.mxu0 %v3837
  %3873 = vmatprep.subr.bf16.mxu0 0
  %3874 = vmatpush1.bf16.msra.mxu0 %v3838
  %3875 = vmatprep.subr.bf16.mxu0 0
  %3876 = vmatpush1.bf16.msra.mxu0 %v3839
  %3877 = vmatprep.subr.bf16.mxu0 0
  %3878 = vmatpush1.bf16.msra.mxu0 %v3840
  %3879 = vmatprep.subr.bf16.mxu0 0
  %3880 = vmatpush1.bf16.msra.mxu0 %v3841
  %3881 = vmatprep.subr.bf16.mxu0 0
  %3882 = vmatpush1.bf16.msra.mxu0 0
  %3883 = vmatprep.subr.bf16.mxu0 0
  %3884 = vmatpush1.bf16.msra.mxu0 0
  %3885 = vmatprep.subr.bf16.mxu0 0
  %3886 = vmatpush1.bf16.msra.mxu0 0
  %3887 = vmatprep.subr.bf16.mxu0 0
  %3888 = vmatpush1.bf16.msra.mxu0 0
  %3889 = vmatprep.mubr.bf16.mxu0 %v3855
  %3890 = vmatmul.mubr.bf16.gmra.mrb[0].mxu0 %v3755
  %v3891 = vpop.f32.mrb[0].mxu0
  %v3892 = vadd.f32 0.0, %v3891
  %v3893 = vpop.f32.mrb[0].mxu0
  %v3894 = vpop.f32.mrb[0].mxu0
  %v3895 = vpop.f32.mrb[0].mxu0
  %3896 = vdwg.mxu0
  %v3897 = vadd.f32 %v3688, %v3892
  %v3898 = vld [vmem:[%s0 + $0x10] sm:$0xff]
  %v3900 = vunpack.c.l.b16 %v3898
  %v3901 = vunpack.c.h.b16 %v3898
  %v3902 = vpack.c.b16 %v3900, %v3900
  %v3903 = vpack.c.b16 %v3901, %v3901
  %3904 = vrot.lane.b32.xlu0 %v3902, 108
  %v3905 = vpop.permute.xlu0 %3904
  %3906 = vrot.lane.b32.xlu0 %v3903, 108
  %v3907 = vpop.permute.xlu0 %3906
  %vm3908 = vcmask 883712
  %v3909 = vsel %vm3908, %v3905, %v3907
  %v3912 = vsel %vm131, %v3907, 0
  %3914 = vmatprep.subr.bf16.mxu0 %v98
  %3915 = vmatpush1.bf16.msra.mxu0 %v97
  %3916 = vmatprep.subr.bf16.mxu0 %v100
  %3917 = vmatpush1.bf16.msra.mxu0 %v99
  %3918 = vmatprep.subr.bf16.mxu0 %v102
  %3919 = vmatpush1.bf16.msra.mxu0 %v101
  %3920 = vmatprep.subr.bf16.mxu0 %v104
  %3921 = vmatpush1.bf16.msra.mxu0 %v103
  %3922 = vmatprep.subr.bf16.mxu0 %v106
  %3923 = vmatpush1.bf16.msra.mxu0 %v105
  %3924 = vmatprep.subr.bf16.mxu0 %v108
  %3925 = vmatpush1.bf16.msra.mxu0 %v107
  %3926 = vmatprep.subr.bf16.mxu0 %v110
  %3927 = vmatpush1.bf16.msra.mxu0 %v109
  %3928 = vmatprep.subr.bf16.mxu0 %v112
  %3929 = vmatpush1.bf16.msra.mxu0 %v111
  %3930 = vmatprep.subr.bf16.mxu0 %v140
  %3931 = vmatpush1.bf16.msra.mxu0 %v137
  %3932 = vmatprep.subr.bf16.mxu0 0
  %3933 = vmatpush1.bf16.msra.mxu0 0
  %3934 = vmatprep.subr.bf16.mxu0 0
  %3935 = vmatpush1.bf16.msra.mxu0 0
  %3936 = vmatprep.subr.bf16.mxu0 0
  %3937 = vmatpush1.bf16.msra.mxu0 0
  %3938 = vmatprep.subr.bf16.mxu0 0
  %3939 = vmatpush1.bf16.msra.mxu0 0
  %3940 = vmatprep.subr.bf16.mxu0 0
  %3941 = vmatpush1.bf16.msra.mxu0 0
  %3942 = vmatprep.subr.bf16.mxu0 0
  %3943 = vmatpush1.bf16.msra.mxu0 0
  %3944 = vmatprep.subr.bf16.mxu0 0
  %3945 = vmatpush1.bf16.msra.mxu0 0
  %3946 = vmatprep.mubr.bf16.mxu0 %v3912
  %3947 = vmatmul.mubr.bf16.gmra.mrb[0].mxu0 %v3909
  %v3948 = vpop.f32.mrb[0].mxu0
  %v3949 = vadd.f32 0.0, %v3948
  %v3950 = vpop.f32.mrb[0].mxu0
  %v3951 = vadd.f32 0.0, %v3950
  %v3952 = vpop.f32.mrb[0].mxu0
  %v3953 = vpop.f32.mrb[0].mxu0
  %3954 = vdwg.mxu0
  %v3955 = vmax.f32 %v3949, 0.0
  %v3956 = vmax.f32 %v3951, 0.0
  %v3957 = vpack.c.bf16 %v3955, %v3955
  %v3958 = vpack.c.bf16 %v3956, %v3956
  %s3959 = scalar_lea.vmem %s2, 1824
  %v3960 = vld [vmem:[%s3959] sm:$0xf]
  %v3961 = vld [vmem:[%s3959 + $0x4] sm:$0xf]
  %v3962 = vld [vmem:[%s3959 + $0x8] sm:$0xf]
  %v3963 = vld [vmem:[%s3959 + $0xc] sm:$0xf]
  %v3964 = vld [vmem:[%s3959 + $0x10] sm:$0xf]
  %v3965 = vld [vmem:[%s3959 + $0x14] sm:$0xf]
  %v3966 = vld [vmem:[%s3959 + $0x18] sm:$0xf]
  %v3967 = vld [vmem:[%s3959 + $0x1c] sm:$0xf]
  %v3968 = vld [vmem:[%s3959 + $0x20] sm:$0xf]
  %v3969 = vld [vmem:[%s3959 + $0x24] sm:$0xf]
  %v3970 = vld [vmem:[%s3959 + $0x28] sm:$0xf]
  %v3971 = vld [vmem:[%s3959 + $0x2c] sm:$0xf]
  %v3972 = vld [vmem:[%s3959 + $0x30] sm:$0xf]
  %v3973 = vld [vmem:[%s3959 + $0x34] sm:$0xf]
  %v3974 = vld [vmem:[%s3959 + $0x38] sm:$0xf]
  %v3975 = vld [vmem:[%s3959 + $0x3c] sm:$0xf]
  %v3976 = vld [vmem:[%s3959 + $0x40] sm:$0xf]
  %v3977 = vld [vmem:[%s3959 + $0x44] sm:$0xf]
  %v3978 = vld [vmem:[%s3959 + $0x48] sm:$0xf]
  %v3979 = vld [vmem:[%s3959 + $0x4c] sm:$0xf]
  %v3980 = vld [vmem:[%s3959 + $0x50] sm:$0xf]
  %v3981 = vld [vmem:[%s3959 + $0x54] sm:$0xf]
  %v3982 = vld [vmem:[%s3959 + $0x58] sm:$0xf]
  %v3983 = vld [vmem:[%s3959 + $0x5c] sm:$0xf]
  %v4008 = vunpack.c.l.b16 %v3960
  %v4009 = vunpack.c.l.b16 %v3961
  %v4010 = vunpack.c.l.b16 %v3962
  %v4011 = vunpack.c.l.b16 %v3963
  %v4012 = vunpack.c.l.b16 %v3964
  %v4013 = vunpack.c.l.b16 %v3965
  %v4014 = vunpack.c.l.b16 %v3966
  %v4015 = vunpack.c.l.b16 %v3967
  %v4016 = vunpack.c.l.b16 %v3968
  %v4017 = vunpack.c.l.b16 %v3969
  %v4018 = vunpack.c.l.b16 %v3970
  %v4019 = vunpack.c.l.b16 %v3971
  %v4020 = vunpack.c.l.b16 %v3972
  %v4021 = vunpack.c.l.b16 %v3973
  %v4022 = vunpack.c.l.b16 %v3974
  %v4023 = vunpack.c.l.b16 %v3975
  %v4024 = vunpack.c.l.b16 %v3976
  %v4025 = vunpack.c.l.b16 %v3977
  %v4026 = vunpack.c.l.b16 %v3978
  %v4027 = vunpack.c.l.b16 %v3979
  %v4028 = vunpack.c.l.b16 %v3980
  %v4029 = vunpack.c.l.b16 %v3981
  %v4030 = vunpack.c.l.b16 %v3982
  %v4031 = vunpack.c.l.b16 %v3983
  %v4032 = vpack.c.b16 %v4009, %v4008
  %v4033 = vpack.c.b16 %v4011, %v4010
  %v4034 = vpack.c.b16 %v4013, %v4012
  %v4035 = vpack.c.b16 %v4015, %v4014
  %v4036 = vpack.c.b16 %v4017, %v4016
  %v4037 = vpack.c.b16 %v4019, %v4018
  %v4038 = vpack.c.b16 %v4021, %v4020
  %v4039 = vpack.c.b16 %v4023, %v4022
  %v4040 = vpack.c.b16 %v4025, %v4024
  %v4041 = vpack.c.b16 %v4027, %v4026
  %v4042 = vpack.c.b16 %v4029, %v4028
  %v4043 = vpack.c.b16 %v4031, %v4030
  %v4057 = vsel %vm363, %v3958, 0
  %4059 = vmatprep.subr.bf16.mxu0 0
  %4060 = vmatpush1.bf16.msra.mxu0 %v4032
  %4061 = vmatprep.subr.bf16.mxu0 0
  %4062 = vmatpush1.bf16.msra.mxu0 %v4033
  %4063 = vmatprep.subr.bf16.mxu0 0
  %4064 = vmatpush1.bf16.msra.mxu0 %v4034
  %4065 = vmatprep.subr.bf16.mxu0 0
  %4066 = vmatpush1.bf16.msra.mxu0 %v4035
  %4067 = vmatprep.subr.bf16.mxu0 0
  %4068 = vmatpush1.bf16.msra.mxu0 %v4036
  %4069 = vmatprep.subr.bf16.mxu0 0
  %4070 = vmatpush1.bf16.msra.mxu0 %v4037
  %4071 = vmatprep.subr.bf16.mxu0 0
  %4072 = vmatpush1.bf16.msra.mxu0 %v4038
  %4073 = vmatprep.subr.bf16.mxu0 0
  %4074 = vmatpush1.bf16.msra.mxu0 %v4039
  %4075 = vmatprep.subr.bf16.mxu0 0
  %4076 = vmatpush1.bf16.msra.mxu0 %v4040
  %4077 = vmatprep.subr.bf16.mxu0 0
  %4078 = vmatpush1.bf16.msra.mxu0 %v4041
  %4079 = vmatprep.subr.bf16.mxu0 0
  %4080 = vmatpush1.bf16.msra.mxu0 %v4042
  %4081 = vmatprep.subr.bf16.mxu0 0
  %4082 = vmatpush1.bf16.msra.mxu0 %v4043
  %4083 = vmatprep.subr.bf16.mxu0 0
  %4084 = vmatpush1.bf16.msra.mxu0 0
  %4085 = vmatprep.subr.bf16.mxu0 0
  %4086 = vmatpush1.bf16.msra.mxu0 0
  %4087 = vmatprep.subr.bf16.mxu0 0
  %4088 = vmatpush1.bf16.msra.mxu0 0
  %4089 = vmatprep.subr.bf16.mxu0 0
  %4090 = vmatpush1.bf16.msra.mxu0 0
  %4091 = vmatprep.mubr.bf16.mxu0 %v4057
  %4092 = vmatmul.mubr.bf16.gmra.mrb[0].mxu0 %v3957
  %v4093 = vpop.f32.mrb[0].mxu0
  %v4094 = vadd.f32 0.0, %v4093
  %v4095 = vpop.f32.mrb[0].mxu0
  %v4096 = vpop.f32.mrb[0].mxu0
  %v4097 = vpop.f32.mrb[0].mxu0
  %4098 = vdwg.mxu0
  %v4099 = vadd.f32 %v3897, %v4094
  %4100 = vrot.lane.b32.xlu0 %v3902, 80
  %v4101 = vpop.permute.xlu0 %4100
  %4102 = vrot.lane.b32.xlu0 %v3903, 80
  %v4103 = vpop.permute.xlu0 %4102
  %vm4104 = vcmask 654336
  %v4105 = vsel %vm4104, %v4101, %v4103
  %v4108 = vsel %vm131, %v4103, 0
  %4110 = vmatprep.subr.bf16.mxu0 %v98
  %4111 = vmatpush1.bf16.msra.mxu0 %v97
  %4112 = vmatprep.subr.bf16.mxu0 %v100
  %4113 = vmatpush1.bf16.msra.mxu0 %v99
  %4114 = vmatprep.subr.bf16.mxu0 %v102
  %4115 = vmatpush1.bf16.msra.mxu0 %v101
  %4116 = vmatprep.subr.bf16.mxu0 %v104
  %4117 = vmatpush1.bf16.msra.mxu0 %v103
  %4118 = vmatprep.subr.bf16.mxu0 %v106
  %4119 = vmatpush1.bf16.msra.mxu0 %v105
  %4120 = vmatprep.subr.bf16.mxu0 %v108
  %4121 = vmatpush1.bf16.msra.mxu0 %v107
  %4122 = vmatprep.subr.bf16.mxu0 %v110
  %4123 = vmatpush1.bf16.msra.mxu0 %v109
  %4124 = vmatprep.subr.bf16.mxu0 %v112
  %4125 = vmatpush1.bf16.msra.mxu0 %v111
  %4126 = vmatprep.subr.bf16.mxu0 %v140
  %4127 = vmatpush1.bf16.msra.mxu0 %v137
  %4128 = vmatprep.subr.bf16.mxu0 0
  %4129 = vmatpush1.bf16.msra.mxu0 0
  %4130 = vmatprep.subr.bf16.mxu0 0
  %4131 = vmatpush1.bf16.msra.mxu0 0
  %4132 = vmatprep.subr.bf16.mxu0 0
  %4133 = vmatpush1.bf16.msra.mxu0 0
  %4134 = vmatprep.subr.bf16.mxu0 0
  %4135 = vmatpush1.bf16.msra.mxu0 0
  %4136 = vmatprep.subr.bf16.mxu0 0
  %4137 = vmatpush1.bf16.msra.mxu0 0
  %4138 = vmatprep.subr.bf16.mxu0 0
  %4139 = vmatpush1.bf16.msra.mxu0 0
  %4140 = vmatprep.subr.bf16.mxu0 0
  %4141 = vmatpush1.bf16.msra.mxu0 0
  %4142 = vmatprep.mubr.bf16.mxu0 %v4108
  %4143 = vmatmul.mubr.bf16.gmra.mrb[0].mxu0 %v4105
  %v4144 = vpop.f32.mrb[0].mxu0
  %v4145 = vadd.f32 0.0, %v4144
  %v4146 = vpop.f32.mrb[0].mxu0
  %v4147 = vadd.f32 0.0, %v4146
  %v4148 = vpop.f32.mrb[0].mxu0
  %v4149 = vpop.f32.mrb[0].mxu0
  %4150 = vdwg.mxu0
  %v4151 = vmax.f32 %v4145, 0.0
  %v4152 = vmax.f32 %v4147, 0.0
  %v4153 = vpack.c.bf16 %v4151, %v4151
  %v4154 = vpack.c.bf16 %v4152, %v4152
  %s4155 = scalar_lea.vmem %s2, 1920
  %v4156 = vld [vmem:[%s4155] sm:$0xf]
  %v4157 = vld [vmem:[%s4155 + $0x4] sm:$0xf]
  %v4158 = vld [vmem:[%s4155 + $0x8] sm:$0xf]
  %v4159 = vld [vmem:[%s4155 + $0xc] sm:$0xf]
  %v4160 = vld [vmem:[%s4155 + $0x10] sm:$0xf]
  %v4161 = vld [vmem:[%s4155 + $0x14] sm:$0xf]
  %v4162 = vld [vmem:[%s4155 + $0x18] sm:$0xf]
  %v4163 = vld [vmem:[%s4155 + $0x1c] sm:$0xf]
  %v4164 = vld [vmem:[%s4155 + $0x20] sm:$0xf]
  %v4165 = vld [vmem:[%s4155 + $0x24] sm:$0xf]
  %v4166 = vld [vmem:[%s4155 + $0x28] sm:$0xf]
  %v4167 = vld [vmem:[%s4155 + $0x2c] sm:$0xf]
  %v4168 = vld [vmem:[%s4155 + $0x30] sm:$0xf]
  %v4169 = vld [vmem:[%s4155 + $0x34] sm:$0xf]
  %v4170 = vld [vmem:[%s4155 + $0x38] sm:$0xf]
  %v4171 = vld [vmem:[%s4155 + $0x3c] sm:$0xf]
  %v4172 = vld [vmem:[%s4155 + $0x40] sm:$0xf]
  %v4173 = vld [vmem:[%s4155 + $0x44] sm:$0xf]
  %v4174 = vld [vmem:[%s4155 + $0x48] sm:$0xf]
  %v4175 = vld [vmem:[%s4155 + $0x4c] sm:$0xf]
  %v4176 = vld [vmem:[%s4155 + $0x50] sm:$0xf]
  %v4177 = vld [vmem:[%s4155 + $0x54] sm:$0xf]
  %v4178 = vld [vmem:[%s4155 + $0x58] sm:$0xf]
  %v4179 = vld [vmem:[%s4155 + $0x5c] sm:$0xf]
  %v4204 = vunpack.c.l.b16 %v4156
  %v4205 = vunpack.c.l.b16 %v4157
  %v4206 = vunpack.c.l.b16 %v4158
  %v4207 = vunpack.c.l.b16 %v4159
  %v4208 = vunpack.c.l.b16 %v4160
  %v4209 = vunpack.c.l.b16 %v4161
  %v4210 = vunpack.c.l.b16 %v4162
  %v4211 = vunpack.c.l.b16 %v4163
  %v4212 = vunpack.c.l.b16 %v4164
  %v4213 = vunpack.c.l.b16 %v4165
  %v4214 = vunpack.c.l.b16 %v4166
  %v4215 = vunpack.c.l.b16 %v4167
  %v4216 = vunpack.c.l.b16 %v4168
  %v4217 = vunpack.c.l.b16 %v4169
  %v4218 = vunpack.c.l.b16 %v4170
  %v4219 = vunpack.c.l.b16 %v4171
  %v4220 = vunpack.c.l.b16 %v4172
  %v4221 = vunpack.c.l.b16 %v4173
  %v4222 = vunpack.c.l.b16 %v4174
  %v4223 = vunpack.c.l.b16 %v4175
  %v4224 = vunpack.c.l.b16 %v4176
  %v4225 = vunpack.c.l.b16 %v4177
  %v4226 = vunpack.c.l.b16 %v4178
  %v4227 = vunpack.c.l.b16 %v4179
  %v4228 = vpack.c.b16 %v4205, %v4204
  %v4229 = vpack.c.b16 %v4207, %v4206
  %v4230 = vpack.c.b16 %v4209, %v4208
  %v4231 = vpack.c.b16 %v4211, %v4210
  %v4232 = vpack.c.b16 %v4213, %v4212
  %v4233 = vpack.c.b16 %v4215, %v4214
  %v4234 = vpack.c.b16 %v4217, %v4216
  %v4235 = vpack.c.b16 %v4219, %v4218
  %v4236 = vpack.c.b16 %v4221, %v4220
  %v4237 = vpack.c.b16 %v4223, %v4222
  %v4238 = vpack.c.b16 %v4225, %v4224
  %v4239 = vpack.c.b16 %v4227, %v4226
  %v4253 = vsel %vm363, %v4154, 0
  %4255 = vmatprep.subr.bf16.mxu0 0
  %4256 = vmatpush1.bf16.msra.mxu0 %v4228
  %4257 = vmatprep.subr.bf16.mxu0 0
  %4258 = vmatpush1.bf16.msra.mxu0 %v4229
  %4259 = vmatprep.subr.bf16.mxu0 0
  %4260 = vmatpush1.bf16.msra.mxu0 %v4230
  %4261 = vmatprep.subr.bf16.mxu0 0
  %4262 = vmatpush1.bf16.msra.mxu0 %v4231
  %4263 = vmatprep.subr.bf16.mxu0 0
  %4264 = vmatpush1.bf16.msra.mxu0 %v4232
  %4265 = vmatprep.subr.bf16.mxu0 0
  %4266 = vmatpush1.bf16.msra.mxu0 %v4233
  %4267 = vmatprep.subr.bf16.mxu0 0
  %4268 = vmatpush1.bf16.msra.mxu0 %v4234
  %4269 = vmatprep.subr.bf16.mxu0 0
  %4270 = vmatpush1.bf16.msra.mxu0 %v4235
  %4271 = vmatprep.subr.bf16.mxu0 0
  %4272 = vmatpush1.bf16.msra.mxu0 %v4236
  %4273 = vmatprep.subr.bf16.mxu0 0
  %4274 = vmatpush1.bf16.msra.mxu0 %v4237
  %4275 = vmatprep.subr.bf16.mxu0 0
  %4276 = vmatpush1.bf16.msra.mxu0 %v4238
  %4277 = vmatprep.subr.bf16.mxu0 0
  %4278 = vmatpush1.bf16.msra.mxu0 %v4239
  %4279 = vmatprep.subr.bf16.mxu0 0
  %4280 = vmatpush1.bf16.msra.mxu0 0
  %4281 = vmatprep.subr.bf16.mxu0 0
  %4282 = vmatpush1.bf16.msra.mxu0 0
  %4283 = vmatprep.subr.bf16.mxu0 0
  %4284 = vmatpush1.bf16.msra.mxu0 0
  %4285 = vmatprep.subr.bf16.mxu0 0
  %4286 = vmatpush1.bf16.msra.mxu0 0
  %4287 = vmatprep.mubr.bf16.mxu0 %v4253
  %4288 = vmatmul.mubr.bf16.gmra.mrb[0].mxu0 %v4153
  %v4289 = vpop.f32.mrb[0].mxu0
  %v4290 = vadd.f32 0.0, %v4289
  %v4291 = vpop.f32.mrb[0].mxu0
  %v4292 = vpop.f32.mrb[0].mxu0
  %v4293 = vpop.f32.mrb[0].mxu0
  %4294 = vdwg.mxu0
  %v4295 = vadd.f32 %v4099, %v4290
  %4296 = vrot.lane.b32.xlu0 %v3902, 52
  %v4297 = vpop.permute.xlu0 %4296
  %4298 = vrot.lane.b32.xlu0 %v3903, 52
  %v4299 = vpop.permute.xlu0 %4298
  %vm4300 = vcmask 424960
  %v4301 = vsel %vm4300, %v4297, %v4299
  %v4304 = vsel %vm131, %v4299, 0
  %4306 = vmatprep.subr.bf16.mxu0 %v98
  %4307 = vmatpush1.bf16.msra.mxu0 %v97
  %4308 = vmatprep.subr.bf16.mxu0 %v100
  %4309 = vmatpush1.bf16.msra.mxu0 %v99
  %4310 = vmatprep.subr.bf16.mxu0 %v102
  %4311 = vmatpush1.bf16.msra.mxu0 %v101
  %4312 = vmatprep.subr.bf16.mxu0 %v104
  %4313 = vmatpush1.bf16.msra.mxu0 %v103
  %4314 = vmatprep.subr.bf16.mxu0 %v106
  %4315 = vmatpush1.bf16.msra.mxu0 %v105
  %4316 = vmatprep.subr.bf16.mxu0 %v108
  %4317 = vmatpush1.bf16.msra.mxu0 %v107
  %4318 = vmatprep.subr.bf16.mxu0 %v110
  %4319 = vmatpush1.bf16.msra.mxu0 %v109
  %4320 = vmatprep.subr.bf16.mxu0 %v112
  %4321 = vmatpush1.bf16.msra.mxu0 %v111
  %4322 = vmatprep.subr.bf16.mxu0 %v140
  %4323 = vmatpush1.bf16.msra.mxu0 %v137
  %4324 = vmatprep.subr.bf16.mxu0 0
  %4325 = vmatpush1.bf16.msra.mxu0 0
  %4326 = vmatprep.subr.bf16.mxu0 0
  %4327 = vmatpush1.bf16.msra.mxu0 0
  %4328 = vmatprep.subr.bf16.mxu0 0
  %4329 = vmatpush1.bf16.msra.mxu0 0
  %4330 = vmatprep.subr.bf16.mxu0 0
  %4331 = vmatpush1.bf16.msra.mxu0 0
  %4332 = vmatprep.subr.bf16.mxu0 0
  %4333 = vmatpush1.bf16.msra.mxu0 0
  %4334 = vmatprep.subr.bf16.mxu0 0
  %4335 = vmatpush1.bf16.msra.mxu0 0
  %4336 = vmatprep.subr.bf16.mxu0 0
  %4337 = vmatpush1.bf16.msra.mxu0 0
  %4338 = vmatprep.mubr.bf16.mxu0 %v4304
  %4339 = vmatmul.mubr.bf16.gmra.mrb[0].mxu0 %v4301
  %v4340 = vpop.f32.mrb[0].mxu0
  %v4341 = vadd.f32 0.0, %v4340
  %v4342 = vpop.f32.mrb[0].mxu0
  %v4343 = vadd.f32 0.0, %v4342
  %v4344 = vpop.f32.mrb[0].mxu0
  %v4345 = vpop.f32.mrb[0].mxu0
  %4346 = vdwg.mxu0
  %v4347 = vmax.f32 %v4341, 0.0
  %v4348 = vmax.f32 %v4343, 0.0
  %v4349 = vpack.c.bf16 %v4347, %v4347
  %v4350 = vpack.c.bf16 %v4348, %v4348
  %s4351 = scalar_lea.vmem %s2, 2016
  %v4352 = vld [vmem:[%s4351] sm:$0xf]
  %v4353 = vld [vmem:[%s4351 + $0x4] sm:$0xf]
  %v4354 = vld [vmem:[%s4351 + $0x8] sm:$0xf]
  %v4355 = vld [vmem:[%s4351 + $0xc] sm:$0xf]
  %v4356 = vld [vmem:[%s4351 + $0x10] sm:$0xf]
  %v4357 = vld [vmem:[%s4351 + $0x14] sm:$0xf]
  %v4358 = vld [vmem:[%s4351 + $0x18] sm:$0xf]
  %v4359 = vld [vmem:[%s4351 + $0x1c] sm:$0xf]
  %v4360 = vld [vmem:[%s4351 + $0x20] sm:$0xf]
  %v4361 = vld [vmem:[%s4351 + $0x24] sm:$0xf]
  %v4362 = vld [vmem:[%s4351 + $0x28] sm:$0xf]
  %v4363 = vld [vmem:[%s4351 + $0x2c] sm:$0xf]
  %v4364 = vld [vmem:[%s4351 + $0x30] sm:$0xf]
  %v4365 = vld [vmem:[%s4351 + $0x34] sm:$0xf]
  %v4366 = vld [vmem:[%s4351 + $0x38] sm:$0xf]
  %v4367 = vld [vmem:[%s4351 + $0x3c] sm:$0xf]
  %v4368 = vld [vmem:[%s4351 + $0x40] sm:$0xf]
  %v4369 = vld [vmem:[%s4351 + $0x44] sm:$0xf]
  %v4370 = vld [vmem:[%s4351 + $0x48] sm:$0xf]
  %v4371 = vld [vmem:[%s4351 + $0x4c] sm:$0xf]
  %v4372 = vld [vmem:[%s4351 + $0x50] sm:$0xf]
  %v4373 = vld [vmem:[%s4351 + $0x54] sm:$0xf]
  %v4374 = vld [vmem:[%s4351 + $0x58] sm:$0xf]
  %v4375 = vld [vmem:[%s4351 + $0x5c] sm:$0xf]
  %v4400 = vunpack.c.l.b16 %v4352
  %v4401 = vunpack.c.l.b16 %v4353
  %v4402 = vunpack.c.l.b16 %v4354
  %v4403 = vunpack.c.l.b16 %v4355
  %v4404 = vunpack.c.l.b16 %v4356
  %v4405 = vunpack.c.l.b16 %v4357
  %v4406 = vunpack.c.l.b16 %v4358
  %v4407 = vunpack.c.l.b16 %v4359
  %v4408 = vunpack.c.l.b16 %v4360
  %v4409 = vunpack.c.l.b16 %v4361
  %v4410 = vunpack.c.l.b16 %v4362
  %v4411 = vunpack.c.l.b16 %v4363
  %v4412 = vunpack.c.l.b16 %v4364
  %v4413 = vunpack.c.l.b16 %v4365
  %v4414 = vunpack.c.l.b16 %v4366
  %v4415 = vunpack.c.l.b16 %v4367
  %v4416 = vunpack.c.l.b16 %v4368
  %v4417 = vunpack.c.l.b16 %v4369
  %v4418 = vunpack.c.l.b16 %v4370
  %v4419 = vunpack.c.l.b16 %v4371
  %v4420 = vunpack.c.l.b16 %v4372
  %v4421 = vunpack.c.l.b16 %v4373
  %v4422 = vunpack.c.l.b16 %v4374
  %v4423 = vunpack.c.l.b16 %v4375
  %v4424 = vpack.c.b16 %v4401, %v4400
  %v4425 = vpack.c.b16 %v4403, %v4402
  %v4426 = vpack.c.b16 %v4405, %v4404
  %v4427 = vpack.c.b16 %v4407, %v4406
  %v4428 = vpack.c.b16 %v4409, %v4408
  %v4429 = vpack.c.b16 %v4411, %v4410
  %v4430 = vpack.c.b16 %v4413, %v4412
  %v4431 = vpack.c.b16 %v4415, %v4414
  %v4432 = vpack.c.b16 %v4417, %v4416
  %v4433 = vpack.c.b16 %v4419, %v4418
  %v4434 = vpack.c.b16 %v4421, %v4420
  %v4435 = vpack.c.b16 %v4423, %v4422
  %v4449 = vsel %vm363, %v4350, 0
  %4451 = vmatprep.subr.bf16.mxu0 0
  %4452 = vmatpush1.bf16.msra.mxu0 %v4424
  %4453 = vmatprep.subr.bf16.mxu0 0
  %4454 = vmatpush1.bf16.msra.mxu0 %v4425
  %4455 = vmatprep.subr.bf16.mxu0 0
  %4456 = vmatpush1.bf16.msra.mxu0 %v4426
  %4457 = vmatprep.subr.bf16.mxu0 0
  %4458 = vmatpush1.bf16.msra.mxu0 %v4427
  %4459 = vmatprep.subr.bf16.mxu0 0
  %4460 = vmatpush1.bf16.msra.mxu0 %v4428
  %4461 = vmatprep.subr.bf16.mxu0 0
  %4462 = vmatpush1.bf16.msra.mxu0 %v4429
  %4463 = vmatprep.subr.bf16.mxu0 0
  %4464 = vmatpush1.bf16.msra.mxu0 %v4430
  %4465 = vmatprep.subr.bf16.mxu0 0
  %4466 = vmatpush1.bf16.msra.mxu0 %v4431
  %4467 = vmatprep.subr.bf16.mxu0 0
  %4468 = vmatpush1.bf16.msra.mxu0 %v4432
  %4469 = vmatprep.subr.bf16.mxu0 0
  %4470 = vmatpush1.bf16.msra.mxu0 %v4433
  %4471 = vmatprep.subr.bf16.mxu0 0
  %4472 = vmatpush1.bf16.msra.mxu0 %v4434
  %4473 = vmatprep.subr.bf16.mxu0 0
  %4474 = vmatpush1.bf16.msra.mxu0 %v4435
  %4475 = vmatprep.subr.bf16.mxu0 0
  %4476 = vmatpush1.bf16.msra.mxu0 0
  %4477 = vmatprep.subr.bf16.mxu0 0
  %4478 = vmatpush1.bf16.msra.mxu0 0
  %4479 = vmatprep.subr.bf16.mxu0 0
  %4480 = vmatpush1.bf16.msra.mxu0 0
  %4481 = vmatprep.subr.bf16.mxu0 0
  %4482 = vmatpush1.bf16.msra.mxu0 0
  %4483 = vmatprep.mubr.bf16.mxu0 %v4449
  %4484 = vmatmul.mubr.bf16.gmra.mrb[0].mxu0 %v4349
  %v4485 = vpop.f32.mrb[0].mxu0
  %v4486 = vadd.f32 0.0, %v4485
  %v4487 = vpop.f32.mrb[0].mxu0
  %v4488 = vpop.f32.mrb[0].mxu0
  %v4489 = vpop.f32.mrb[0].mxu0
  %4490 = vdwg.mxu0
  %v4491 = vadd.f32 %v4295, %v4486
  %4492 = vrot.lane.b32.xlu0 %v3902, 24
  %v4493 = vpop.permute.xlu0 %4492
  %4494 = vrot.lane.b32.xlu0 %v3903, 24
  %v4495 = vpop.permute.xlu0 %4494
  %vm4496 = vcmask 195584
  %v4497 = vsel %vm4496, %v4493, %v4495
  %v4500 = vsel %vm131, %v4495, 0
  %4502 = vmatprep.subr.bf16.mxu0 %v98
  %4503 = vmatpush1.bf16.msra.mxu0 %v97
  %4504 = vmatprep.subr.bf16.mxu0 %v100
  %4505 = vmatpush1.bf16.msra.mxu0 %v99
  %4506 = vmatprep.subr.bf16.mxu0 %v102
  %4507 = vmatpush1.bf16.msra.mxu0 %v101
  %4508 = vmatprep.subr.bf16.mxu0 %v104
  %4509 = vmatpush1.bf16.msra.mxu0 %v103
  %4510 = vmatprep.subr.bf16.mxu0 %v106
  %4511 = vmatpush1.bf16.msra.mxu0 %v105
  %4512 = vmatprep.subr.bf16.mxu0 %v108
  %4513 = vmatpush1.bf16.msra.mxu0 %v107
  %4514 = vmatprep.subr.bf16.mxu0 %v110
  %4515 = vmatpush1.bf16.msra.mxu0 %v109
  %4516 = vmatprep.subr.bf16.mxu0 %v112
  %4517 = vmatpush1.bf16.msra.mxu0 %v111
  %4518 = vmatprep.subr.bf16.mxu0 %v140
  %4519 = vmatpush1.bf16.msra.mxu0 %v137
  %4520 = vmatprep.subr.bf16.mxu0 0
  %4521 = vmatpush1.bf16.msra.mxu0 0
  %4522 = vmatprep.subr.bf16.mxu0 0
  %4523 = vmatpush1.bf16.msra.mxu0 0
  %4524 = vmatprep.subr.bf16.mxu0 0
  %4525 = vmatpush1.bf16.msra.mxu0 0
  %4526 = vmatprep.subr.bf16.mxu0 0
  %4527 = vmatpush1.bf16.msra.mxu0 0
  %4528 = vmatprep.subr.bf16.mxu0 0
  %4529 = vmatpush1.bf16.msra.mxu0 0
  %4530 = vmatprep.subr.bf16.mxu0 0
  %4531 = vmatpush1.bf16.msra.mxu0 0
  %4532 = vmatprep.subr.bf16.mxu0 0
  %4533 = vmatpush1.bf16.msra.mxu0 0
  %4534 = vmatprep.mubr.bf16.mxu0 %v4500
  %4535 = vmatmul.mubr.bf16.gmra.mrb[0].mxu0 %v4497
  %v4536 = vpop.f32.mrb[0].mxu0
  %v4537 = vadd.f32 0.0, %v4536
  %v4538 = vpop.f32.mrb[0].mxu0
  %v4539 = vadd.f32 0.0, %v4538
  %v4540 = vpop.f32.mrb[0].mxu0
  %v4541 = vpop.f32.mrb[0].mxu0
  %4542 = vdwg.mxu0
  %v4543 = vmax.f32 %v4537, 0.0
  %v4544 = vmax.f32 %v4539, 0.0
  %v4545 = vpack.c.bf16 %v4543, %v4543
  %v4546 = vpack.c.bf16 %v4544, %v4544
  %s4547 = scalar_lea.vmem %s2, 2112
  %v4548 = vld [vmem:[%s4547] sm:$0xf]
  %v4549 = vld [vmem:[%s4547 + $0x4] sm:$0xf]
  %v4550 = vld [vmem:[%s4547 + $0x8] sm:$0xf]
  %v4551 = vld [vmem:[%s4547 + $0xc] sm:$0xf]
  %v4552 = vld [vmem:[%s4547 + $0x10] sm:$0xf]
  %v4553 = vld [vmem:[%s4547 + $0x14] sm:$0xf]
  %v4554 = vld [vmem:[%s4547 + $0x18] sm:$0xf]
  %v4555 = vld [vmem:[%s4547 + $0x1c] sm:$0xf]
  %v4556 = vld [vmem:[%s4547 + $0x20] sm:$0xf]
  %v4557 = vld [vmem:[%s4547 + $0x24] sm:$0xf]
  %v4558 = vld [vmem:[%s4547 + $0x28] sm:$0xf]
  %v4559 = vld [vmem:[%s4547 + $0x2c] sm:$0xf]
  %v4560 = vld [vmem:[%s4547 + $0x30] sm:$0xf]
  %v4561 = vld [vmem:[%s4547 + $0x34] sm:$0xf]
  %v4562 = vld [vmem:[%s4547 + $0x38] sm:$0xf]
  %v4563 = vld [vmem:[%s4547 + $0x3c] sm:$0xf]
  %v4564 = vld [vmem:[%s4547 + $0x40] sm:$0xf]
  %v4565 = vld [vmem:[%s4547 + $0x44] sm:$0xf]
  %v4566 = vld [vmem:[%s4547 + $0x48] sm:$0xf]
  %v4567 = vld [vmem:[%s4547 + $0x4c] sm:$0xf]
  %v4568 = vld [vmem:[%s4547 + $0x50] sm:$0xf]
  %v4569 = vld [vmem:[%s4547 + $0x54] sm:$0xf]
  %v4570 = vld [vmem:[%s4547 + $0x58] sm:$0xf]
  %v4571 = vld [vmem:[%s4547 + $0x5c] sm:$0xf]
  %v4596 = vunpack.c.l.b16 %v4548
  %v4597 = vunpack.c.l.b16 %v4549
  %v4598 = vunpack.c.l.b16 %v4550
  %v4599 = vunpack.c.l.b16 %v4551
  %v4600 = vunpack.c.l.b16 %v4552
  %v4601 = vunpack.c.l.b16 %v4553
  %v4602 = vunpack.c.l.b16 %v4554
  %v4603 = vunpack.c.l.b16 %v4555
  %v4604 = vunpack.c.l.b16 %v4556
  %v4605 = vunpack.c.l.b16 %v4557
  %v4606 = vunpack.c.l.b16 %v4558
  %v4607 = vunpack.c.l.b16 %v4559
  %v4608 = vunpack.c.l.b16 %v4560
  %v4609 = vunpack.c.l.b16 %v4561
  %v4610 = vunpack.c.l.b16 %v4562
  %v4611 = vunpack.c.l.b16 %v4563
  %v4612 = vunpack.c.l.b16 %v4564
  %v4613 = vunpack.c.l.b16 %v4565
  %v4614 = vunpack.c.l.b16 %v4566
  %v4615 = vunpack.c.l.b16 %v4567
  %v4616 = vunpack.c.l.b16 %v4568
  %v4617 = vunpack.c.l.b16 %v4569
  %v4618 = vunpack.c.l.b16 %v4570
  %v4619 = vunpack.c.l.b16 %v4571
  %v4620 = vpack.c.b16 %v4597, %v4596
  %v4621 = vpack.c.b16 %v4599, %v4598
  %v4622 = vpack.c.b16 %v4601, %v4600
  %v4623 = vpack.c.b16 %v4603, %v4602
  %v4624 = vpack.c.b16 %v4605, %v4604
  %v4625 = vpack.c.b16 %v4607, %v4606
  %v4626 = vpack.c.b16 %v4609, %v4608
  %v4627 = vpack.c.b16 %v4611, %v4610
  %v4628 = vpack.c.b16 %v4613, %v4612
  %v4629 = vpack.c.b16 %v4615, %v4614
  %v4630 = vpack.c.b16 %v4617, %v4616
  %v4631 = vpack.c.b16 %v4619, %v4618
  %v4645 = vsel %vm363, %v4546, 0
  %4647 = vmatprep.subr.bf16.mxu0 0
  %4648 = vmatpush1.bf16.msra.mxu0 %v4620
  %4649 = vmatprep.subr.bf16.mxu0 0
  %4650 = vmatpush1.bf16.msra.mxu0 %v4621
  %4651 = vmatprep.subr.bf16.mxu0 0
  %4652 = vmatpush1.bf16.msra.mxu0 %v4622
  %4653 = vmatprep.subr.bf16.mxu0 0
  %4654 = vmatpush1.bf16.msra.mxu0 %v4623
  %4655 = vmatprep.subr.bf16.mxu0 0
  %4656 = vmatpush1.bf16.msra.mxu0 %v4624
  %4657 = vmatprep.subr.bf16.mxu0 0
  %4658 = vmatpush1.bf16.msra.mxu0 %v4625
  %4659 = vmatprep.subr.bf16.mxu0 0
  %4660 = vmatpush1.bf16.msra.mxu0 %v4626
  %4661 = vmatprep.subr.bf16.mxu0 0
  %4662 = vmatpush1.bf16.msra.mxu0 %v4627
  %4663 = vmatprep.subr.bf16.mxu0 0
  %4664 = vmatpush1.bf16.msra.mxu0 %v4628
  %4665 = vmatprep.subr.bf16.mxu0 0
  %4666 = vmatpush1.bf16.msra.mxu0 %v4629
  %4667 = vmatprep.subr.bf16.mxu0 0
  %4668 = vmatpush1.bf16.msra.mxu0 %v4630
  %4669 = vmatprep.subr.bf16.mxu0 0
  %4670 = vmatpush1.bf16.msra.mxu0 %v4631
  %4671 = vmatprep.subr.bf16.mxu0 0
  %4672 = vmatpush1.bf16.msra.mxu0 0
  %4673 = vmatprep.subr.bf16.mxu0 0
  %4674 = vmatpush1.bf16.msra.mxu0 0
  %4675 = vmatprep.subr.bf16.mxu0 0
  %4676 = vmatpush1.bf16.msra.mxu0 0
  %4677 = vmatprep.subr.bf16.mxu0 0
  %4678 = vmatpush1.bf16.msra.mxu0 0
  %4679 = vmatprep.mubr.bf16.mxu0 %v4645
  %4680 = vmatmul.mubr.bf16.gmra.mrb[0].mxu0 %v4545
  %v4681 = vpop.f32.mrb[0].mxu0
  %v4682 = vadd.f32 0.0, %v4681
  %v4683 = vpop.f32.mrb[0].mxu0
  %v4684 = vpop.f32.mrb[0].mxu0
  %v4685 = vpop.f32.mrb[0].mxu0
  %4686 = vdwg.mxu0
  %v4687 = vadd.f32 %v4491, %v4682
  %v4688 = vld [vmem:[%s0 + $0x14] sm:$0xff]
  %v4690 = vunpack.c.l.b16 %v4688
  %v4691 = vunpack.c.h.b16 %v4688
  %v4692 = vpack.c.b16 %v4690, %v4690
  %v4693 = vpack.c.b16 %v4691, %v4691
  %4694 = vrot.lane.b32.xlu0 %v4692, 124
  %v4695 = vpop.permute.xlu0 %4694
  %4696 = vrot.lane.b32.xlu0 %v4693, 124
  %v4697 = vpop.permute.xlu0 %4696
  %vm4698 = vcmask 1014784
  %v4699 = vsel %vm4698, %v4695, %v4697
  %v4702 = vsel %vm131, %v4697, 0
  %4704 = vmatprep.subr.bf16.mxu0 %v98
  %4705 = vmatpush1.bf16.msra.mxu0 %v97
  %4706 = vmatprep.subr.bf16.mxu0 %v100
  %4707 = vmatpush1.bf16.msra.mxu0 %v99
  %4708 = vmatprep.subr.bf16.mxu0 %v102
  %4709 = vmatpush1.bf16.msra.mxu0 %v101
  %4710 = vmatprep.subr.bf16.mxu0 %v104
  %4711 = vmatpush1.bf16.msra.mxu0 %v103
  %4712 = vmatprep.subr.bf16.mxu0 %v106
  %4713 = vmatpush1.bf16.msra.mxu0 %v105
  %4714 = vmatprep.subr.bf16.mxu0 %v108
  %4715 = vmatpush1.bf16.msra.mxu0 %v107
  %4716 = vmatprep.subr.bf16.mxu0 %v110
  %4717 = vmatpush1.bf16.msra.mxu0 %v109
  %4718 = vmatprep.subr.bf16.mxu0 %v112
  %4719 = vmatpush1.bf16.msra.mxu0 %v111
  %4720 = vmatprep.subr.bf16.mxu0 %v140
  %4721 = vmatpush1.bf16.msra.mxu0 %v137
  %4722 = vmatprep.subr.bf16.mxu0 0
  %4723 = vmatpush1.bf16.msra.mxu0 0
  %4724 = vmatprep.subr.bf16.mxu0 0
  %4725 = vmatpush1.bf16.msra.mxu0 0
  %4726 = vmatprep.subr.bf16.mxu0 0
  %4727 = vmatpush1.bf16.msra.mxu0 0
  %4728 = vmatprep.subr.bf16.mxu0 0
  %4729 = vmatpush1.bf16.msra.mxu0 0
  %4730 = vmatprep.subr.bf16.mxu0 0
  %4731 = vmatpush1.bf16.msra.mxu0 0
  %4732 = vmatprep.subr.bf16.mxu0 0
  %4733 = vmatpush1.bf16.msra.mxu0 0
  %4734 = vmatprep.subr.bf16.mxu0 0
  %4735 = vmatpush1.bf16.msra.mxu0 0
  %4736 = vmatprep.mubr.bf16.mxu0 %v4702
  %4737 = vmatmul.mubr.bf16.gmra.mrb[0].mxu0 %v4699
  %v4738 = vpop.f32.mrb[0].mxu0
  %v4739 = vadd.f32 0.0, %v4738
  %v4740 = vpop.f32.mrb[0].mxu0
  %v4741 = vadd.f32 0.0, %v4740
  %v4742 = vpop.f32.mrb[0].mxu0
  %v4743 = vpop.f32.mrb[0].mxu0
  %4744 = vdwg.mxu0
  %v4745 = vmax.f32 %v4739, 0.0
  %v4746 = vmax.f32 %v4741, 0.0
  %v4747 = vpack.c.bf16 %v4745, %v4745
  %v4748 = vpack.c.bf16 %v4746, %v4746
  %s4749 = scalar_lea.vmem %s2, 2208
  %v4750 = vld [vmem:[%s4749] sm:$0xf]
  %v4751 = vld [vmem:[%s4749 + $0x4] sm:$0xf]
  %v4752 = vld [vmem:[%s4749 + $0x8] sm:$0xf]
  %v4753 = vld [vmem:[%s4749 + $0xc] sm:$0xf]
  %v4754 = vld [vmem:[%s4749 + $0x10] sm:$0xf]
  %v4755 = vld [vmem:[%s4749 + $0x14] sm:$0xf]
  %v4756 = vld [vmem:[%s4749 + $0x18] sm:$0xf]
  %v4757 = vld [vmem:[%s4749 + $0x1c] sm:$0xf]
  %v4758 = vld [vmem:[%s4749 + $0x20] sm:$0xf]
  %v4759 = vld [vmem:[%s4749 + $0x24] sm:$0xf]
  %v4760 = vld [vmem:[%s4749 + $0x28] sm:$0xf]
  %v4761 = vld [vmem:[%s4749 + $0x2c] sm:$0xf]
  %v4762 = vld [vmem:[%s4749 + $0x30] sm:$0xf]
  %v4763 = vld [vmem:[%s4749 + $0x34] sm:$0xf]
  %v4764 = vld [vmem:[%s4749 + $0x38] sm:$0xf]
  %v4765 = vld [vmem:[%s4749 + $0x3c] sm:$0xf]
  %v4766 = vld [vmem:[%s4749 + $0x40] sm:$0xf]
  %v4767 = vld [vmem:[%s4749 + $0x44] sm:$0xf]
  %v4768 = vld [vmem:[%s4749 + $0x48] sm:$0xf]
  %v4769 = vld [vmem:[%s4749 + $0x4c] sm:$0xf]
  %v4770 = vld [vmem:[%s4749 + $0x50] sm:$0xf]
  %v4771 = vld [vmem:[%s4749 + $0x54] sm:$0xf]
  %v4772 = vld [vmem:[%s4749 + $0x58] sm:$0xf]
  %v4773 = vld [vmem:[%s4749 + $0x5c] sm:$0xf]
  %v4798 = vunpack.c.l.b16 %v4750
  %v4799 = vunpack.c.l.b16 %v4751
  %v4800 = vunpack.c.l.b16 %v4752
  %v4801 = vunpack.c.l.b16 %v4753
  %v4802 = vunpack.c.l.b16 %v4754
  %v4803 = vunpack.c.l.b16 %v4755
  %v4804 = vunpack.c.l.b16 %v4756
  %v4805 = vunpack.c.l.b16 %v4757
  %v4806 = vunpack.c.l.b16 %v4758
  %v4807 = vunpack.c.l.b16 %v4759
  %v4808 = vunpack.c.l.b16 %v4760
  %v4809 = vunpack.c.l.b16 %v4761
  %v4810 = vunpack.c.l.b16 %v4762
  %v4811 = vunpack.c.l.b16 %v4763
  %v4812 = vunpack.c.l.b16 %v4764
  %v4813 = vunpack.c.l.b16 %v4765
  %v4814 = vunpack.c.l.b16 %v4766
  %v4815 = vunpack.c.l.b16 %v4767
  %v4816 = vunpack.c.l.b16 %v4768
  %v4817 = vunpack.c.l.b16 %v4769
  %v4818 = vunpack.c.l.b16 %v4770
  %v4819 = vunpack.c.l.b16 %v4771
  %v4820 = vunpack.c.l.b16 %v4772
  %v4821 = vunpack.c.l.b16 %v4773
  %v4822 = vpack.c.b16 %v4799, %v4798
  %v4823 = vpack.c.b16 %v4801, %v4800
  %v4824 = vpack.c.b16 %v4803, %v4802
  %v4825 = vpack.c.b16 %v4805, %v4804
  %v4826 = vpack.c.b16 %v4807, %v4806
  %v4827 = vpack.c.b16 %v4809, %v4808
  %v4828 = vpack.c.b16 %v4811, %v4810
  %v4829 = vpack.c.b16 %v4813, %v4812
  %v4830 = vpack.c.b16 %v4815, %v4814
  %v4831 = vpack.c.b16 %v4817, %v4816
  %v4832 = vpack.c.b16 %v4819, %v4818
  %v4833 = vpack.c.b16 %v4821, %v4820
  %v4847 = vsel %vm363, %v4748, 0
  %4849 = vmatprep.subr.bf16.mxu0 0
  %4850 = vmatpush1.bf16.msra.mxu0 %v4822
  %4851 = vmatprep.subr.bf16.mxu0 0
  %4852 = vmatpush1.bf16.msra.mxu0 %v4823
  %4853 = vmatprep.subr.bf16.mxu0 0
  %4854 = vmatpush1.bf16.msra.mxu0 %v4824
  %4855 = vmatprep.subr.bf16.mxu0 0
  %4856 = vmatpush1.bf16.msra.mxu0 %v4825
  %4857 = vmatprep.subr.bf16.mxu0 0
  %4858 = vmatpush1.bf16.msra.mxu0 %v4826
  %4859 = vmatprep.subr.bf16.mxu0 0
  %4860 = vmatpush1.bf16.msra.mxu0 %v4827
  %4861 = vmatprep.subr.bf16.mxu0 0
  %4862 = vmatpush1.bf16.msra.mxu0 %v4828
  %4863 = vmatprep.subr.bf16.mxu0 0
  %4864 = vmatpush1.bf16.msra.mxu0 %v4829
  %4865 = vmatprep.subr.bf16.mxu0 0
  %4866 = vmatpush1.bf16.msra.mxu0 %v4830
  %4867 = vmatprep.subr.bf16.mxu0 0
  %4868 = vmatpush1.bf16.msra.mxu0 %v4831
  %4869 = vmatprep.subr.bf16.mxu0 0
  %4870 = vmatpush1.bf16.msra.mxu0 %v4832
  %4871 = vmatprep.subr.bf16.mxu0 0
  %4872 = vmatpush1.bf16.msra.mxu0 %v4833
  %4873 = vmatprep.subr.bf16.mxu0 0
  %4874 = vmatpush1.bf16.msra.mxu0 0
  %4875 = vmatprep.subr.bf16.mxu0 0
  %4876 = vmatpush1.bf16.msra.mxu0 0
  %4877 = vmatprep.subr.bf16.mxu0 0
  %4878 = vmatpush1.bf16.msra.mxu0 0
  %4879 = vmatprep.subr.bf16.mxu0 0
  %4880 = vmatpush1.bf16.msra.mxu0 0
  %4881 = vmatprep.mubr.bf16.mxu0 %v4847
  %4882 = vmatmul.mubr.bf16.gmra.mrb[0].mxu0 %v4747
  %v4883 = vpop.f32.mrb[0].mxu0
  %v4884 = vadd.f32 0.0, %v4883
  %v4885 = vpop.f32.mrb[0].mxu0
  %v4886 = vpop.f32.mrb[0].mxu0
  %v4887 = vpop.f32.mrb[0].mxu0
  %4888 = vdwg.mxu0
  %v4889 = vadd.f32 %v4687, %v4884
  %v4890 = vld [vmem:[%s3] sm:$0x1]
  %v4892 = vlaneseq
  %v4893 = vshrl.u32 %v4892, 7
  %v4894 = vsub.s32 0, %v4893
  %v4895 = vrot.slane %v4890, %v4894
  %v4897 = vadd.f32 %v4889, %v4895
  %vm4898 = vcmask 80896
  %4899 = vst.msk [vmem:[%s4] sm:$0xff] %vm4898, %v4897
  // Predicated region
  $region18: #{my_conv_net_forward.1} parent=0 // pred_check
    _
  $region19: #{my_conv_net_forward.1} parent=0 // pred_check_branch
    %4901 = sbr.rel (0) target = $region21
  $region20: #{my_conv_net_forward.1} parent=0 // pred_region
    _
  $region21: #{my_conv_net_forward.1} parent=0 // pred_fallthru
    _
  // Predicated region
  $region22: #{my_conv_net_forward.1} parent=0 // pred_check
    _
  $region23: #{my_conv_net_forward.1} parent=0 // pred_check_branch
    %4903 = sbr.rel (0) target = $region25
  $region24: #{my_conv_net_forward.1} parent=0 // pred_region
    _
  $region25: #{my_conv_net_forward.1} parent=0 // pred_fallthru
    _

</llo_original>
